<compile_context>
chip_gen: v5e
topology: v5e:2x2
jax: 0.10.0
libtpu: 0.0.40
codegen_flags: <defaults>
</compile_context>

<pallas_src>
import jax
import jax.numpy as jnp
from jax.experimental import pallas as pl
from jax.experimental.pallas import tpu as pltpu

NUM_CLASSES = 5
GATE_LANES = 128          # lane tile per gate per direction (H <= 128)
NUM_GATES = 3             # r, z, n (torch gate order)
CLASS_LANES = 128         # padded class dim for a lane-dense output store


# ---------------------------------------------------------------------------
# Pallas kernel: bidirectional GRU recurrence + FC + softmax
# ---------------------------------------------------------------------------
def bigru_fc_softmax_kernel(
    gi_ref,      # [T, Bp, 6*128] f32  precomputed input projections, both dirs, biases folded
    whh_ref,     # [2*128, 6*128] bf16 block-structured recurrent weight (fwd+bwd fused)
    bhhn_ref,    # [1, 2*128]     f32  b_hh for the n gate only (must stay inside r*(...))
    fcw_ref,     # [2*128, 128]   bf16 padded fc1 weight^T
    fcb_ref,     # [1, 128]       f32  padded fc1 bias (-1e30 in pad lanes => softmax mask)
    out_ref,     # [Bp, 128]      f32  softmax probabilities (pad lanes ~0)
):
    T = gi_ref.shape[0]
    Bp = gi_ref.shape[1]
    G = whh_ref.shape[0]              # 256 = 2 directions * 128 lanes

    whh = whh_ref[...]                # hoisted out of the loop (bf16)
    bhh_n = bhhn_ref[...]             # [1, G] f32

    # h_cat = [h_fwd (lanes 0:128) | h_bwd (lanes 128:256)]; kept as a register value.
    h = jnp.zeros((Bp, G), jnp.float32)

    # Static Python loop => fully unrolled; fwd/bwd chains interleave for the scheduler.
    for t in range(T):
        gi = gi_ref[t]                                     # [Bp, 3G], b_ih (+ b_hh r/z) folded
        gh = jnp.dot(h.astype(jnp.bfloat16), whh,
                     preferred_element_type=jnp.float32)   # one fused MXU op per step
        r = jax.nn.sigmoid(gi[:, 0:G]         + gh[:, 0:G])
        z = jax.nn.sigmoid(gi[:, G:2 * G]     + gh[:, G:2 * G])
        n = jnp.tanh(gi[:, 2 * G:3 * G] + r * (gh[:, 2 * G:3 * G] + bhh_n))
        h = (1.0 - z) * n + z * h

    # fc1 on cat(h_fwd, h_bwd) (padded rows of fcw are zero), then softmax(dim=1).
    logits = jnp.dot(h.astype(jnp.bfloat16), fcw_ref[...],
                     preferred_element_type=jnp.float32) + fcb_ref[...]
    m = jnp.max(logits, axis=1, keepdims=True)
    e = jnp.exp(logits - m)                                # pad lanes: exp(-1e30 - m) == 0
    s = jnp.sum(e, axis=1, keepdims=True)
    inv = pl.reciprocal(s, approx=True)                    # EUP seed
    inv = inv * (2.0 - s * inv)                            # one Newton step -> ~f32 accuracy
    out_ref[...] = e * inv


# ---------------------------------------------------------------------------
# Parameter preparation: fuse/pad weights into the kernel layout (done once)
# ---------------------------------------------------------------------------
def _place_gate_cols(w, H, direction):
    # w: [in_dim, 3H] (gate order r,z,n) -> [in_dim, 6*128] with lane-aligned gate blocks
    out = jnp.zeros((w.shape[0], NUM_GATES * 2 * GATE_LANES), jnp.float32)
    for g in range(NUM_GATES):
        c = (2 * g + direction) * GATE_LANES
        out = out.at[:, c:c + H].set(w[:, g * H:(g + 1) * H])
    return out


def _place_gate_bias(b, H, direction):
    out = jnp.zeros((NUM_GATES * 2 * GATE_LANES,), jnp.float32)
    b = b.reshape(-1)
    for g in range(NUM_GATES):
        c = (2 * g + direction) * GATE_LANES
        out = out.at[c:c + H].set(b[g * H:(g + 1) * H])
    return out


def _place_whh(whh, H, direction):
    # whh: [H, 3H] -> block-structured [2*128, 6*128]; rows = lane-padded h of this direction.
    out = jnp.zeros((2 * GATE_LANES, NUM_GATES * 2 * GATE_LANES), jnp.float32)
    r0 = direction * GATE_LANES
    for g in range(NUM_GATES):
        c = (2 * g + direction) * GATE_LANES
        out = out.at[r0:r0 + H, c:c + H].set(whh[:, g * H:(g + 1) * H])
    return out


def prepare_kernel_params(p, H, C):
    assert H <= GATE_LANES and C <= CLASS_LANES
    wih_pad_f = _place_gate_cols(p["wih_f"], H, 0)
    wih_pad_b = _place_gate_cols(p["wih_b"], H, 1)

    bias_ih = _place_gate_bias(p["bih_f"], H, 0) + _place_gate_bias(p["bih_b"], H, 1)
    bhh_full = _place_gate_bias(p["bhh_f"], H, 0) + _place_gate_bias(p["bhh_b"], H, 1)
    n_start = 2 * 2 * GATE_LANES                       # start of the n-gate blocks
    bhh_rz = bhh_full.at[n_start:].set(0.0)            # r/z parts -> folded into gi
    bhh_n = bhh_full[n_start:]                         # n part stays inside r*( . )
    gi_bias = (bias_ih + bhh_rz).reshape(1, 1, -1)

    whh_blk = (_place_whh(p["whh_f"], H, 0)
               + _place_whh(p["whh_b"], H, 1)).astype(jnp.bfloat16)

    fcw_pad = jnp.zeros((2 * GATE_LANES, CLASS_LANES), jnp.float32)
    fcw_pad = fcw_pad.at[0:H, 0:C].set(p["fcw"][0:H])                      # h_fwd rows
    fcw_pad = fcw_pad.at[GATE_LANES:GATE_LANES + H, 0:C].set(p["fcw"][H:2 * H])  # h_bwd rows
    fcw_pad = fcw_pad.astype(jnp.bfloat16)
    fcb_pad = jnp.full((1, CLASS_LANES), -1e30, jnp.float32)               # softmax mask
    fcb_pad = fcb_pad.at[0, 0:C].set(p["fcb"].reshape(-1))

    return {
        "wih_pad_f": wih_pad_f, "wih_pad_b": wih_pad_b, "gi_bias": gi_bias,
        "whh_blk": whh_blk, "bhh_n": bhh_n.reshape(1, -1),
        "fcw_pad": fcw_pad, "fcb_pad": fcb_pad,
    }


# ---------------------------------------------------------------------------
# Wrapper
# ---------------------------------------------------------------------------
def rnn_classifier_forward(tokens, params, kparams):
    """tokens: [B, T] int32 ids in [0, vocab]. Returns [B, num_classes] softmax probs."""
    B, T = tokens.shape
    C = params["fcw"].shape[1]
    Bp = ((B + 7) // 8) * 8                                  # sublane-aligned batch

    # Embedding gather (padding_idx=0 handled by a zeroed row 0) — XLA glue by design.
    emb = jnp.take(params["embedding"], tokens, axis=0).astype(jnp.float32)  # [B, T, E]
    emb = jnp.transpose(emb, (1, 0, 2))                                       # [T, B, E]
    if Bp != B:
        emb = jnp.pad(emb, ((0, 0), (0, Bp - B), (0, 0)))

    # Hoisted input projections for both directions (backward sees the time-reversed seq);
    # b_ih and the r/z parts of b_hh are folded in here, so the kernel never sees E.
    gi_all = (jnp.einsum("tbe,eg->tbg", emb, kparams["wih_pad_f"])
              + jnp.einsum("tbe,eg->tbg", emb[::-1], kparams["wih_pad_b"])
              + kparams["gi_bias"])                                           # [T, Bp, 768]

    vmem = pl.BlockSpec(memory_space=pltpu.MemorySpace.VMEM)
    # NOTE: at large B/T, add a batch grid axis (dimension_semantics=("parallel",)) and stream
    # T with a BlockSpec instead of keeping the whole gi_all resident (v7x: 64 MiB VMEM, 2 TCs).
    out_pad = pl.pallas_call(
        bigru_fc_softmax_kernel,
        out_shape=jax.ShapeDtypeStruct((Bp, CLASS_LANES), jnp.float32),
        in_specs=[vmem] * 5,
        out_specs=vmem,
    )(gi_all, kparams["whh_blk"], kparams["bhh_n"],
      kparams["fcw_pad"], kparams["fcb_pad"])

    return out_pad[:B, :C]


# ---------------------------------------------------------------------------
# Deterministic parameter init (shapes from RNNClassifier.__init__)
# ---------------------------------------------------------------------------
def init_params(key, input_voc_size, embedding_size, hidden_size, num_classes=NUM_CLASSES):
    E, H, C = embedding_size, hidden_size, num_classes
    ks = jax.random.split(key, 12)
    u = lambda k, shape, s: jax.random.uniform(k, shape, jnp.float32, -s, s)
    s_rnn = 1.0 / jnp.sqrt(H)
    s_fc = 1.0 / jnp.sqrt(2.0 * H)

    emb_table = jax.random.normal(ks[0], (input_voc_size + 1, E), jnp.float32)
    emb_table = emb_table.at[0].set(0.0)  # padding_idx=0

    return {
        "embedding": emb_table,
        # weights stored pre-transposed for x @ W, gate order r|z|n (torch.nn.GRU)
        "wih_f": u(ks[1], (E, 3 * H), s_rnn),
        "whh_f": u(ks[2], (H, 3 * H), s_rnn),
        "bih_f": u(ks[3], (3 * H,), s_rnn),
        "bhh_f": u(ks[4], (3 * H,), s_rnn),
        "wih_b": u(ks[5], (E, 3 * H), s_rnn),
        "whh_b": u(ks[6], (H, 3 * H), s_rnn),
        "bih_b": u(ks[7], (3 * H,), s_rnn),
        "bhh_b": u(ks[8], (3 * H,), s_rnn),
        # fc1: Linear(2H, 5)
        "fcw": u(ks[9], (2 * H, C), s_fc),
        "fcb": u(ks[10], (C,), s_fc),
    }


if __name__ == "__main__":
    VOCAB = 20   # input_voc_size
    E = 32       # embedding_size
    H = 32       # hidden_size
    B = 2        # batch
    T = 8        # sequence length

    key = jax.random.PRNGKey(0)
    pkey, xkey = jax.random.split(key)
    params = init_params(pkey, VOCAB, E, H)
    kparams = prepare_kernel_params(params, H, NUM_CLASSES)

    tokens = jax.random.randint(xkey, (B, T), 0, VOCAB + 1, dtype=jnp.int32)

    probs = rnn_classifier_forward(tokens, params, kparams)
    probs = jax.block_until_ready(probs)

    assert probs.shape == (B, NUM_CLASSES)
    assert bool(jnp.all(jnp.isfinite(probs)))
    assert bool(jnp.allclose(jnp.sum(probs, axis=1), 1.0, atol=1e-5))

    print("KERNEL_OK")
</pallas_src>

<mosaic_0001>
module attributes {stable_mosaic.version = 11 : i64} {
  func.func @bigru_fc_softmax_kernel(%arg0: memref<8x8x768xf32, #tpu.memory_space<vmem>>, %arg1: memref<256x768xbf16, #tpu.memory_space<vmem>>, %arg2: memref<1x256xf32, #tpu.memory_space<vmem>>, %arg3: memref<256x128xbf16, #tpu.memory_space<vmem>>, %arg4: memref<1x128xf32, #tpu.memory_space<vmem>>, %arg5: memref<8x128xf32, #tpu.memory_space<vmem>>) attributes {dimension_semantics = [], scalar_prefetch = 0 : i64, scratch_operands = 0 : i64, tpu.core_type = #tpu.core_type<tc>} {
    %c0 = arith.constant 0 : index
    %c0_0 = arith.constant 0 : index
    %0 = vector.load %arg1[%c0, %c0_0] : memref<256x768xbf16, #tpu.memory_space<vmem>>, vector<256x768xbf16>
    %c0_1 = arith.constant 0 : index
    %c0_2 = arith.constant 0 : index
    %1 = vector.load %arg2[%c0_1, %c0_2] : memref<1x256xf32, #tpu.memory_space<vmem>>, vector<1x256xf32>
    %cst = arith.constant 0.000000e+00 : f32
    %2 = vector.broadcast %cst : f32 to vector<8x256xf32>
    %c0_3 = arith.constant 0 : index
    %c0_4 = arith.constant 0 : index
    %c0_5 = arith.constant 0 : index
    %3 = vector.load %arg0[%c0_3, %c0_4, %c0_5] : memref<8x8x768xf32, #tpu.memory_space<vmem>>, vector<1x8x768xf32>
    %4 = vector.shape_cast %3 : vector<1x8x768xf32> to vector<8x768xf32>
    %5 = arith.truncf %2 : vector<8x256xf32> to vector<8x256xbf16>
    %cst_6 = arith.constant dense<0.000000e+00> : vector<8x768xf32>
    %6 = tpu.matmul %5, %0, %cst_6 {dimension_numbers = #tpu.dot_dimension_numbers<[1], [0], [0], [1], [0, 0, 1, 1], [], []>} : vector<8x256xbf16>, vector<256x768xbf16>, vector<8x768xf32> -> vector<8x768xf32>
    %7 = vector.extract_strided_slice %4 {offsets = [0, 0], sizes = [8, 256], strides = [1, 1]} : vector<8x768xf32> to vector<8x256xf32>
    %8 = vector.extract_strided_slice %6 {offsets = [0, 0], sizes = [8, 256], strides = [1, 1]} : vector<8x768xf32> to vector<8x256xf32>
    %9 = arith.addf %7, %8 : vector<8x256xf32>
    %10 = arith.negf %9 : vector<8x256xf32>
    %11 = math.exp %10 : vector<8x256xf32>
    %cst_7 = arith.constant 1.000000e+00 : f32
    %12 = vector.broadcast %cst_7 : f32 to vector<8x256xf32>
    %13 = arith.addf %12, %11 : vector<8x256xf32>
    %14 = arith.divf %12, %13 : vector<8x256xf32>
    %15 = vector.extract_strided_slice %4 {offsets = [0, 256], sizes = [8, 256], strides = [1, 1]} : vector<8x768xf32> to vector<8x256xf32>
    %16 = vector.extract_strided_slice %6 {offsets = [0, 256], sizes = [8, 256], strides = [1, 1]} : vector<8x768xf32> to vector<8x256xf32>
    %17 = arith.addf %15, %16 : vector<8x256xf32>
    %18 = arith.negf %17 : vector<8x256xf32>
    %19 = math.exp %18 : vector<8x256xf32>
    %cst_8 = arith.constant 1.000000e+00 : f32
    %20 = vector.broadcast %cst_8 : f32 to vector<8x256xf32>
    %21 = arith.addf %20, %19 : vector<8x256xf32>
    %22 = arith.divf %20, %21 : vector<8x256xf32>
    %23 = vector.extract_strided_slice %4 {offsets = [0, 512], sizes = [8, 256], strides = [1, 1]} : vector<8x768xf32> to vector<8x256xf32>
    %24 = vector.extract_strided_slice %6 {offsets = [0, 512], sizes = [8, 256], strides = [1, 1]} : vector<8x768xf32> to vector<8x256xf32>
    %25 = vector.broadcast %1 : vector<1x256xf32> to vector<8x256xf32>
    %26 = arith.addf %24, %25 : vector<8x256xf32>
    %27 = arith.mulf %14, %26 : vector<8x256xf32>
    %28 = arith.addf %23, %27 : vector<8x256xf32>
    %29 = math.tanh %28 : vector<8x256xf32>
    %cst_9 = arith.constant 1.000000e+00 : f32
    %30 = vector.broadcast %cst_9 : f32 to vector<8x256xf32>
    %31 = arith.subf %30, %22 : vector<8x256xf32>
    %32 = arith.mulf %31, %29 : vector<8x256xf32>
    %33 = arith.mulf %22, %2 : vector<8x256xf32>
    %34 = arith.addf %32, %33 : vector<8x256xf32>
    %c1 = arith.constant 1 : index
    %c0_10 = arith.constant 0 : index
    %c0_11 = arith.constant 0 : index
    %35 = vector.load %arg0[%c1, %c0_10, %c0_11] : memref<8x8x768xf32, #tpu.memory_space<vmem>>, vector<1x8x768xf32>
    %36 = vector.shape_cast %35 : vector<1x8x768xf32> to vector<8x768xf32>
    %37 = arith.truncf %34 : vector<8x256xf32> to vector<8x256xbf16>
    %cst_12 = arith.constant dense<0.000000e+00> : vector<8x768xf32>
    %38 = tpu.matmul %37, %0, %cst_12 {dimension_numbers = #tpu.dot_dimension_numbers<[1], [0], [0], [1], [0, 0, 1, 1], [], []>} : vector<8x256xbf16>, vector<256x768xbf16>, vector<8x768xf32> -> vector<8x768xf32>
    %39 = vector.extract_strided_slice %36 {offsets = [0, 0], sizes = [8, 256], strides = [1, 1]} : vector<8x768xf32> to vector<8x256xf32>
    %40 = vector.extract_strided_slice %38 {offsets = [0, 0], sizes = [8, 256], strides = [1, 1]} : vector<8x768xf32> to vector<8x256xf32>
    %41 = arith.addf %39, %40 : vector<8x256xf32>
    %42 = arith.negf %41 : vector<8x256xf32>
    %43 = math.exp %42 : vector<8x256xf32>
    %cst_13 = arith.constant 1.000000e+00 : f32
    %44 = vector.broadcast %cst_13 : f32 to vector<8x256xf32>
    %45 = arith.addf %44, %43 : vector<8x256xf32>
    %46 = arith.divf %44, %45 : vector<8x256xf32>
    %47 = vector.extract_strided_slice %36 {offsets = [0, 256], sizes = [8, 256], strides = [1, 1]} : vector<8x768xf32> to vector<8x256xf32>
    %48 = vector.extract_strided_slice %38 {offsets = [0, 256], sizes = [8, 256], strides = [1, 1]} : vector<8x768xf32> to vector<8x256xf32>
    %49 = arith.addf %47, %48 : vector<8x256xf32>
    %50 = arith.negf %49 : vector<8x256xf32>
    %51 = math.exp %50 : vector<8x256xf32>
    %cst_14 = arith.constant 1.000000e+00 : f32
    %52 = vector.broadcast %cst_14 : f32 to vector<8x256xf32>
    %53 = arith.addf %52, %51 : vector<8x256xf32>
    %54 = arith.divf %52, %53 : vector<8x256xf32>
    %55 = vector.extract_strided_slice %36 {offsets = [0, 512], sizes = [8, 256], strides = [1, 1]} : vector<8x768xf32> to vector<8x256xf32>
    %56 = vector.extract_strided_slice %38 {offsets = [0, 512], sizes = [8, 256], strides = [1, 1]} : vector<8x768xf32> to vector<8x256xf32>
    %57 = vector.broadcast %1 : vector<1x256xf32> to vector<8x256xf32>
    %58 = arith.addf %56, %57 : vector<8x256xf32>
    %59 = arith.mulf %46, %58 : vector<8x256xf32>
    %60 = arith.addf %55, %59 : vector<8x256xf32>
    %61 = math.tanh %60 : vector<8x256xf32>
    %cst_15 = arith.constant 1.000000e+00 : f32
    %62 = vector.broadcast %cst_15 : f32 to vector<8x256xf32>
    %63 = arith.subf %62, %54 : vector<8x256xf32>
    %64 = arith.mulf %63, %61 : vector<8x256xf32>
    %65 = arith.mulf %54, %34 : vector<8x256xf32>
    %66 = arith.addf %64, %65 : vector<8x256xf32>
    %c2 = arith.constant 2 : index
    %c0_16 = arith.constant 0 : index
    %c0_17 = arith.constant 0 : index
    %67 = vector.load %arg0[%c2, %c0_16, %c0_17] : memref<8x8x768xf32, #tpu.memory_space<vmem>>, vector<1x8x768xf32>
    %68 = vector.shape_cast %67 : vector<1x8x768xf32> to vector<8x768xf32>
    %69 = arith.truncf %66 : vector<8x256xf32> to vector<8x256xbf16>
    %cst_18 = arith.constant dense<0.000000e+00> : vector<8x768xf32>
    %70 = tpu.matmul %69, %0, %cst_18 {dimension_numbers = #tpu.dot_dimension_numbers<[1], [0], [0], [1], [0, 0, 1, 1], [], []>} : vector<8x256xbf16>, vector<256x768xbf16>, vector<8x768xf32> -> vector<8x768xf32>
    %71 = vector.extract_strided_slice %68 {offsets = [0, 0], sizes = [8, 256], strides = [1, 1]} : vector<8x768xf32> to vector<8x256xf32>
    %72 = vector.extract_strided_slice %70 {offsets = [0, 0], sizes = [8, 256], strides = [1, 1]} : vector<8x768xf32> to vector<8x256xf32>
    %73 = arith.addf %71, %72 : vector<8x256xf32>
    %74 = arith.negf %73 : vector<8x256xf32>
    %75 = math.exp %74 : vector<8x256xf32>
    %cst_19 = arith.constant 1.000000e+00 : f32
    %76 = vector.broadcast %cst_19 : f32 to vector<8x256xf32>
    %77 = arith.addf %76, %75 : vector<8x256xf32>
    %78 = arith.divf %76, %77 : vector<8x256xf32>
    %79 = vector.extract_strided_slice %68 {offsets = [0, 256], sizes = [8, 256], strides = [1, 1]} : vector<8x768xf32> to vector<8x256xf32>
    %80 = vector.extract_strided_slice %70 {offsets = [0, 256], sizes = [8, 256], strides = [1, 1]} : vector<8x768xf32> to vector<8x256xf32>
    %81 = arith.addf %79, %80 : vector<8x256xf32>
    %82 = arith.negf %81 : vector<8x256xf32>
    %83 = math.exp %82 : vector<8x256xf32>
    %cst_20 = arith.constant 1.000000e+00 : f32
    %84 = vector.broadcast %cst_20 : f32 to vector<8x256xf32>
    %85 = arith.addf %84, %83 : vector<8x256xf32>
    %86 = arith.divf %84, %85 : vector<8x256xf32>
    %87 = vector.extract_strided_slice %68 {offsets = [0, 512], sizes = [8, 256], strides = [1, 1]} : vector<8x768xf32> to vector<8x256xf32>
    %88 = vector.extract_strided_slice %70 {offsets = [0, 512], sizes = [8, 256], strides = [1, 1]} : vector<8x768xf32> to vector<8x256xf32>
    %89 = vector.broadcast %1 : vector<1x256xf32> to vector<8x256xf32>
    %90 = arith.addf %88, %89 : vector<8x256xf32>
    %91 = arith.mulf %78, %90 : vector<8x256xf32>
    %92 = arith.addf %87, %91 : vector<8x256xf32>
    %93 = math.tanh %92 : vector<8x256xf32>
    %cst_21 = arith.constant 1.000000e+00 : f32
    %94 = vector.broadcast %cst_21 : f32 to vector<8x256xf32>
    %95 = arith.subf %94, %86 : vector<8x256xf32>
    %96 = arith.mulf %95, %93 : vector<8x256xf32>
    %97 = arith.mulf %86, %66 : vector<8x256xf32>
    %98 = arith.addf %96, %97 : vector<8x256xf32>
    %c3 = arith.constant 3 : index
    %c0_22 = arith.constant 0 : index
    %c0_23 = arith.constant 0 : index
    %99 = vector.load %arg0[%c3, %c0_22, %c0_23] : memref<8x8x768xf32, #tpu.memory_space<vmem>>, vector<1x8x768xf32>
    %100 = vector.shape_cast %99 : vector<1x8x768xf32> to vector<8x768xf32>
    %101 = arith.truncf %98 : vector<8x256xf32> to vector<8x256xbf16>
    %cst_24 = arith.constant dense<0.000000e+00> : vector<8x768xf32>
    %102 = tpu.matmul %101, %0, %cst_24 {dimension_numbers = #tpu.dot_dimension_numbers<[1], [0], [0], [1], [0, 0, 1, 1], [], []>} : vector<8x256xbf16>, vector<256x768xbf16>, vector<8x768xf32> -> vector<8x768xf32>
    %103 = vector.extract_strided_slice %100 {offsets = [0, 0], sizes = [8, 256], strides = [1, 1]} : vector<8x768xf32> to vector<8x256xf32>
    %104 = vector.extract_strided_slice %102 {offsets = [0, 0], sizes = [8, 256], strides = [1, 1]} : vector<8x768xf32> to vector<8x256xf32>
    %105 = arith.addf %103, %104 : vector<8x256xf32>
    %106 = arith.negf %105 : vector<8x256xf32>
    %107 = math.exp %106 : vector<8x256xf32>
    %cst_25 = arith.constant 1.000000e+00 : f32
    %108 = vector.broadcast %cst_25 : f32 to vector<8x256xf32>
    %109 = arith.addf %108, %107 : vector<8x256xf32>
    %110 = arith.divf %108, %109 : vector<8x256xf32>
    %111 = vector.extract_strided_slice %100 {offsets = [0, 256], sizes = [8, 256], strides = [1, 1]} : vector<8x768xf32> to vector<8x256xf32>
    %112 = vector.extract_strided_slice %102 {offsets = [0, 256], sizes = [8, 256], strides = [1, 1]} : vector<8x768xf32> to vector<8x256xf32>
    %113 = arith.addf %111, %112 : vector<8x256xf32>
    %114 = arith.negf %113 : vector<8x256xf32>
    %115 = math.exp %114 : vector<8x256xf32>
    %cst_26 = arith.constant 1.000000e+00 : f32
    %116 = vector.broadcast %cst_26 : f32 to vector<8x256xf32>
    %117 = arith.addf %116, %115 : vector<8x256xf32>
    %118 = arith.divf %116, %117 : vector<8x256xf32>
    %119 = vector.extract_strided_slice %100 {offsets = [0, 512], sizes = [8, 256], strides = [1, 1]} : vector<8x768xf32> to vector<8x256xf32>
    %120 = vector.extract_strided_slice %102 {offsets = [0, 512], sizes = [8, 256], strides = [1, 1]} : vector<8x768xf32> to vector<8x256xf32>
    %121 = vector.broadcast %1 : vector<1x256xf32> to vector<8x256xf32>
    %122 = arith.addf %120, %121 : vector<8x256xf32>
    %123 = arith.mulf %110, %122 : vector<8x256xf32>
    %124 = arith.addf %119, %123 : vector<8x256xf32>
    %125 = math.tanh %124 : vector<8x256xf32>
    %cst_27 = arith.constant 1.000000e+00 : f32
    %126 = vector.broadcast %cst_27 : f32 to vector<8x256xf32>
    %127 = arith.subf %126, %118 : vector<8x256xf32>
    %128 = arith.mulf %127, %125 : vector<8x256xf32>
    %129 = arith.mulf %118, %98 : vector<8x256xf32>
    %130 = arith.addf %128, %129 : vector<8x256xf32>
    %c4 = arith.constant 4 : index
    %c0_28 = arith.constant 0 : index
    %c0_29 = arith.constant 0 : index
    %131 = vector.load %arg0[%c4, %c0_28, %c0_29] : memref<8x8x768xf32, #tpu.memory_space<vmem>>, vector<1x8x768xf32>
    %132 = vector.shape_cast %131 : vector<1x8x768xf32> to vector<8x768xf32>
    %133 = arith.truncf %130 : vector<8x256xf32> to vector<8x256xbf16>
    %cst_30 = arith.constant dense<0.000000e+00> : vector<8x768xf32>
    %134 = tpu.matmul %133, %0, %cst_30 {dimension_numbers = #tpu.dot_dimension_numbers<[1], [0], [0], [1], [0, 0, 1, 1], [], []>} : vector<8x256xbf16>, vector<256x768xbf16>, vector<8x768xf32> -> vector<8x768xf32>
    %135 = vector.extract_strided_slice %132 {offsets = [0, 0], sizes = [8, 256], strides = [1, 1]} : vector<8x768xf32> to vector<8x256xf32>
    %136 = vector.extract_strided_slice %134 {offsets = [0, 0], sizes = [8, 256], strides = [1, 1]} : vector<8x768xf32> to vector<8x256xf32>
    %137 = arith.addf %135, %136 : vector<8x256xf32>
    %138 = arith.negf %137 : vector<8x256xf32>
    %139 = math.exp %138 : vector<8x256xf32>
    %cst_31 = arith.constant 1.000000e+00 : f32
    %140 = vector.broadcast %cst_31 : f32 to vector<8x256xf32>
    %141 = arith.addf %140, %139 : vector<8x256xf32>
    %142 = arith.divf %140, %141 : vector<8x256xf32>
    %143 = vector.extract_strided_slice %132 {offsets = [0, 256], sizes = [8, 256], strides = [1, 1]} : vector<8x768xf32> to vector<8x256xf32>
    %144 = vector.extract_strided_slice %134 {offsets = [0, 256], sizes = [8, 256], strides = [1, 1]} : vector<8x768xf32> to vector<8x256xf32>
    %145 = arith.addf %143, %144 : vector<8x256xf32>
    %146 = arith.negf %145 : vector<8x256xf32>
    %147 = math.exp %146 : vector<8x256xf32>
    %cst_32 = arith.constant 1.000000e+00 : f32
    %148 = vector.broadcast %cst_32 : f32 to vector<8x256xf32>
    %149 = arith.addf %148, %147 : vector<8x256xf32>
    %150 = arith.divf %148, %149 : vector<8x256xf32>
    %151 = vector.extract_strided_slice %132 {offsets = [0, 512], sizes = [8, 256], strides = [1, 1]} : vector<8x768xf32> to vector<8x256xf32>
    %152 = vector.extract_strided_slice %134 {offsets = [0, 512], sizes = [8, 256], strides = [1, 1]} : vector<8x768xf32> to vector<8x256xf32>
    %153 = vector.broadcast %1 : vector<1x256xf32> to vector<8x256xf32>
    %154 = arith.addf %152, %153 : vector<8x256xf32>
    %155 = arith.mulf %142, %154 : vector<8x256xf32>
    %156 = arith.addf %151, %155 : vector<8x256xf32>
    %157 = math.tanh %156 : vector<8x256xf32>
    %cst_33 = arith.constant 1.000000e+00 : f32
    %158 = vector.broadcast %cst_33 : f32 to vector<8x256xf32>
    %159 = arith.subf %158, %150 : vector<8x256xf32>
    %160 = arith.mulf %159, %157 : vector<8x256xf32>
    %161 = arith.mulf %150, %130 : vector<8x256xf32>
    %162 = arith.addf %160, %161 : vector<8x256xf32>
    %c5 = arith.constant 5 : index
    %c0_34 = arith.constant 0 : index
    %c0_35 = arith.constant 0 : index
    %163 = vector.load %arg0[%c5, %c0_34, %c0_35] : memref<8x8x768xf32, #tpu.memory_space<vmem>>, vector<1x8x768xf32>
    %164 = vector.shape_cast %163 : vector<1x8x768xf32> to vector<8x768xf32>
    %165 = arith.truncf %162 : vector<8x256xf32> to vector<8x256xbf16>
    %cst_36 = arith.constant dense<0.000000e+00> : vector<8x768xf32>
    %166 = tpu.matmul %165, %0, %cst_36 {dimension_numbers = #tpu.dot_dimension_numbers<[1], [0], [0], [1], [0, 0, 1, 1], [], []>} : vector<8x256xbf16>, vector<256x768xbf16>, vector<8x768xf32> -> vector<8x768xf32>
    %167 = vector.extract_strided_slice %164 {offsets = [0, 0], sizes = [8, 256], strides = [1, 1]} : vector<8x768xf32> to vector<8x256xf32>
    %168 = vector.extract_strided_slice %166 {offsets = [0, 0], sizes = [8, 256], strides = [1, 1]} : vector<8x768xf32> to vector<8x256xf32>
    %169 = arith.addf %167, %168 : vector<8x256xf32>
    %170 = arith.negf %169 : vector<8x256xf32>
    %171 = math.exp %170 : vector<8x256xf32>
    %cst_37 = arith.constant 1.000000e+00 : f32
    %172 = vector.broadcast %cst_37 : f32 to vector<8x256xf32>
    %173 = arith.addf %172, %171 : vector<8x256xf32>
    %174 = arith.divf %172, %173 : vector<8x256xf32>
    %175 = vector.extract_strided_slice %164 {offsets = [0, 256], sizes = [8, 256], strides = [1, 1]} : vector<8x768xf32> to vector<8x256xf32>
    %176 = vector.extract_strided_slice %166 {offsets = [0, 256], sizes = [8, 256], strides = [1, 1]} : vector<8x768xf32> to vector<8x256xf32>
    %177 = arith.addf %175, %176 : vector<8x256xf32>
    %178 = arith.negf %177 : vector<8x256xf32>
    %179 = math.exp %178 : vector<8x256xf32>
    %cst_38 = arith.constant 1.000000e+00 : f32
    %180 = vector.broadcast %cst_38 : f32 to vector<8x256xf32>
    %181 = arith.addf %180, %179 : vector<8x256xf32>
    %182 = arith.divf %180, %181 : vector<8x256xf32>
    %183 = vector.extract_strided_slice %164 {offsets = [0, 512], sizes = [8, 256], strides = [1, 1]} : vector<8x768xf32> to vector<8x256xf32>
    %184 = vector.extract_strided_slice %166 {offsets = [0, 512], sizes = [8, 256], strides = [1, 1]} : vector<8x768xf32> to vector<8x256xf32>
    %185 = vector.broadcast %1 : vector<1x256xf32> to vector<8x256xf32>
    %186 = arith.addf %184, %185 : vector<8x256xf32>
    %187 = arith.mulf %174, %186 : vector<8x256xf32>
    %188 = arith.addf %183, %187 : vector<8x256xf32>
    %189 = math.tanh %188 : vector<8x256xf32>
    %cst_39 = arith.constant 1.000000e+00 : f32
    %190 = vector.broadcast %cst_39 : f32 to vector<8x256xf32>
    %191 = arith.subf %190, %182 : vector<8x256xf32>
    %192 = arith.mulf %191, %189 : vector<8x256xf32>
    %193 = arith.mulf %182, %162 : vector<8x256xf32>
    %194 = arith.addf %192, %193 : vector<8x256xf32>
    %c6 = arith.constant 6 : index
    %c0_40 = arith.constant 0 : index
    %c0_41 = arith.constant 0 : index
    %195 = vector.load %arg0[%c6, %c0_40, %c0_41] : memref<8x8x768xf32, #tpu.memory_space<vmem>>, vector<1x8x768xf32>
    %196 = vector.shape_cast %195 : vector<1x8x768xf32> to vector<8x768xf32>
    %197 = arith.truncf %194 : vector<8x256xf32> to vector<8x256xbf16>
    %cst_42 = arith.constant dense<0.000000e+00> : vector<8x768xf32>
    %198 = tpu.matmul %197, %0, %cst_42 {dimension_numbers = #tpu.dot_dimension_numbers<[1], [0], [0], [1], [0, 0, 1, 1], [], []>} : vector<8x256xbf16>, vector<256x768xbf16>, vector<8x768xf32> -> vector<8x768xf32>
    %199 = vector.extract_strided_slice %196 {offsets = [0, 0], sizes = [8, 256], strides = [1, 1]} : vector<8x768xf32> to vector<8x256xf32>
    %200 = vector.extract_strided_slice %198 {offsets = [0, 0], sizes = [8, 256], strides = [1, 1]} : vector<8x768xf32> to vector<8x256xf32>
    %201 = arith.addf %199, %200 : vector<8x256xf32>
    %202 = arith.negf %201 : vector<8x256xf32>
    %203 = math.exp %202 : vector<8x256xf32>
    %cst_43 = arith.constant 1.000000e+00 : f32
    %204 = vector.broadcast %cst_43 : f32 to vector<8x256xf32>
    %205 = arith.addf %204, %203 : vector<8x256xf32>
    %206 = arith.divf %204, %205 : vector<8x256xf32>
    %207 = vector.extract_strided_slice %196 {offsets = [0, 256], sizes = [8, 256], strides = [1, 1]} : vector<8x768xf32> to vector<8x256xf32>
    %208 = vector.extract_strided_slice %198 {offsets = [0, 256], sizes = [8, 256], strides = [1, 1]} : vector<8x768xf32> to vector<8x256xf32>
    %209 = arith.addf %207, %208 : vector<8x256xf32>
    %210 = arith.negf %209 : vector<8x256xf32>
    %211 = math.exp %210 : vector<8x256xf32>
    %cst_44 = arith.constant 1.000000e+00 : f32
    %212 = vector.broadcast %cst_44 : f32 to vector<8x256xf32>
    %213 = arith.addf %212, %211 : vector<8x256xf32>
    %214 = arith.divf %212, %213 : vector<8x256xf32>
    %215 = vector.extract_strided_slice %196 {offsets = [0, 512], sizes = [8, 256], strides = [1, 1]} : vector<8x768xf32> to vector<8x256xf32>
    %216 = vector.extract_strided_slice %198 {offsets = [0, 512], sizes = [8, 256], strides = [1, 1]} : vector<8x768xf32> to vector<8x256xf32>
    %217 = vector.broadcast %1 : vector<1x256xf32> to vector<8x256xf32>
    %218 = arith.addf %216, %217 : vector<8x256xf32>
    %219 = arith.mulf %206, %218 : vector<8x256xf32>
    %220 = arith.addf %215, %219 : vector<8x256xf32>
    %221 = math.tanh %220 : vector<8x256xf32>
    %cst_45 = arith.constant 1.000000e+00 : f32
    %222 = vector.broadcast %cst_45 : f32 to vector<8x256xf32>
    %223 = arith.subf %222, %214 : vector<8x256xf32>
    %224 = arith.mulf %223, %221 : vector<8x256xf32>
    %225 = arith.mulf %214, %194 : vector<8x256xf32>
    %226 = arith.addf %224, %225 : vector<8x256xf32>
    %c7 = arith.constant 7 : index
    %c0_46 = arith.constant 0 : index
    %c0_47 = arith.constant 0 : index
    %227 = vector.load %arg0[%c7, %c0_46, %c0_47] : memref<8x8x768xf32, #tpu.memory_space<vmem>>, vector<1x8x768xf32>
    %228 = vector.shape_cast %227 : vector<1x8x768xf32> to vector<8x768xf32>
    %229 = arith.truncf %226 : vector<8x256xf32> to vector<8x256xbf16>
    %cst_48 = arith.constant dense<0.000000e+00> : vector<8x768xf32>
    %230 = tpu.matmul %229, %0, %cst_48 {dimension_numbers = #tpu.dot_dimension_numbers<[1], [0], [0], [1], [0, 0, 1, 1], [], []>} : vector<8x256xbf16>, vector<256x768xbf16>, vector<8x768xf32> -> vector<8x768xf32>
    %231 = vector.extract_strided_slice %228 {offsets = [0, 0], sizes = [8, 256], strides = [1, 1]} : vector<8x768xf32> to vector<8x256xf32>
    %232 = vector.extract_strided_slice %230 {offsets = [0, 0], sizes = [8, 256], strides = [1, 1]} : vector<8x768xf32> to vector<8x256xf32>
    %233 = arith.addf %231, %232 : vector<8x256xf32>
    %234 = arith.negf %233 : vector<8x256xf32>
    %235 = math.exp %234 : vector<8x256xf32>
    %cst_49 = arith.constant 1.000000e+00 : f32
    %236 = vector.broadcast %cst_49 : f32 to vector<8x256xf32>
    %237 = arith.addf %236, %235 : vector<8x256xf32>
    %238 = arith.divf %236, %237 : vector<8x256xf32>
    %239 = vector.extract_strided_slice %228 {offsets = [0, 256], sizes = [8, 256], strides = [1, 1]} : vector<8x768xf32> to vector<8x256xf32>
    %240 = vector.extract_strided_slice %230 {offsets = [0, 256], sizes = [8, 256], strides = [1, 1]} : vector<8x768xf32> to vector<8x256xf32>
    %241 = arith.addf %239, %240 : vector<8x256xf32>
    %242 = arith.negf %241 : vector<8x256xf32>
    %243 = math.exp %242 : vector<8x256xf32>
    %cst_50 = arith.constant 1.000000e+00 : f32
    %244 = vector.broadcast %cst_50 : f32 to vector<8x256xf32>
    %245 = arith.addf %244, %243 : vector<8x256xf32>
    %246 = arith.divf %244, %245 : vector<8x256xf32>
    %247 = vector.extract_strided_slice %228 {offsets = [0, 512], sizes = [8, 256], strides = [1, 1]} : vector<8x768xf32> to vector<8x256xf32>
    %248 = vector.extract_strided_slice %230 {offsets = [0, 512], sizes = [8, 256], strides = [1, 1]} : vector<8x768xf32> to vector<8x256xf32>
    %249 = vector.broadcast %1 : vector<1x256xf32> to vector<8x256xf32>
    %250 = arith.addf %248, %249 : vector<8x256xf32>
    %251 = arith.mulf %238, %250 : vector<8x256xf32>
    %252 = arith.addf %247, %251 : vector<8x256xf32>
    %253 = math.tanh %252 : vector<8x256xf32>
    %cst_51 = arith.constant 1.000000e+00 : f32
    %254 = vector.broadcast %cst_51 : f32 to vector<8x256xf32>
    %255 = arith.subf %254, %246 : vector<8x256xf32>
    %256 = arith.mulf %255, %253 : vector<8x256xf32>
    %257 = arith.mulf %246, %226 : vector<8x256xf32>
    %258 = arith.addf %256, %257 : vector<8x256xf32>
    %259 = arith.truncf %258 : vector<8x256xf32> to vector<8x256xbf16>
    %c0_52 = arith.constant 0 : index
    %c0_53 = arith.constant 0 : index
    %260 = vector.load %arg3[%c0_52, %c0_53] : memref<256x128xbf16, #tpu.memory_space<vmem>>, vector<256x128xbf16>
    %cst_54 = arith.constant dense<0.000000e+00> : vector<8x128xf32>
    %261 = tpu.matmul %259, %260, %cst_54 {dimension_numbers = #tpu.dot_dimension_numbers<[1], [0], [0], [1], [0, 0, 1, 1], [], []>} : vector<8x256xbf16>, vector<256x128xbf16>, vector<8x128xf32> -> vector<8x128xf32>
    %c0_55 = arith.constant 0 : index
    %c0_56 = arith.constant 0 : index
    %262 = vector.load %arg4[%c0_55, %c0_56] : memref<1x128xf32, #tpu.memory_space<vmem>>, vector<1x128xf32>
    %263 = vector.broadcast %262 : vector<1x128xf32> to vector<8x128xf32>
    %264 = arith.addf %261, %263 : vector<8x128xf32>
    %cst_57 = arith.constant dense<0xFF800000> : vector<8xf32>
    %265 = vector.multi_reduction <maximumf>, %264, %cst_57 [1] : vector<8x128xf32> to vector<8xf32>
    %266 = vector.shape_cast %265 : vector<8xf32> to vector<8x1xf32>
    %267 = vector.broadcast %266 : vector<8x1xf32> to vector<8x128xf32>
    %268 = arith.subf %264, %267 : vector<8x128xf32>
    %269 = math.exp %268 : vector<8x128xf32>
    %cst_58 = arith.constant dense<0.000000e+00> : vector<8xf32>
    %270 = vector.multi_reduction <add>, %269, %cst_58 [1] : vector<8x128xf32> to vector<8xf32>
    %271 = vector.shape_cast %270 : vector<8xf32> to vector<8x1xf32>
    %272 = tpu.reciprocal %271 {approx = true} : vector<8x1xf32> -> vector<8x1xf32>
    %273 = arith.mulf %271, %272 : vector<8x1xf32>
    %cst_59 = arith.constant 2.000000e+00 : f32
    %274 = vector.broadcast %cst_59 : f32 to vector<8x1xf32>
    %275 = arith.subf %274, %273 : vector<8x1xf32>
    %276 = arith.mulf %272, %275 : vector<8x1xf32>
    %277 = vector.broadcast %276 : vector<8x1xf32> to vector<8x128xf32>
    %278 = arith.mulf %269, %277 : vector<8x128xf32>
    %c0_60 = arith.constant 0 : index
    %c0_61 = arith.constant 0 : index
    %279 = vector.load %arg5[%c0_60, %c0_61] : memref<8x128xf32, #tpu.memory_space<vmem>>, vector<8x128xf32>
    tpu.vector_store %arg5[%c0_60, %c0_61], %278 {strides = array<i32>} : memref<8x128xf32, #tpu.memory_space<vmem>>, vector<8x128xf32>,
    return
  }
}

</mosaic_0001>

<llo_original>
// kernel: tpu_custom_call.1
$region0: #{tpu_custom_call.1}
  #allocation0 [shape = 'u32[]', space=smem, size = 0x4, offset = 0x4, fixed_abs, tag = 'smem constant byte address 0x4 - core index']
  #allocation1 [shape = 'u32[72,128]{1,0:T(1,128)}', space=vmem, size = 0x9000, scoped, tag = 'internal scratch']
  %s0 = inlined_call_operand.hbm [shape: f32[8,8,768], index: 0, kind: input, shape index: {}]
  %s1 = inlined_call_operand.hbm [shape: bf16[256,768], index: 1, kind: input, shape index: {}]
  %s2 = inlined_call_operand.hbm [shape: f32[1,256], index: 2, kind: input, shape index: {}]
  %s3 = inlined_call_operand.hbm [shape: bf16[256,128], index: 3, kind: input, shape index: {}]
  %s4 = inlined_call_operand.vmem [shape: f32[1,128], index: 4, kind: input, shape index: {}]
  %s5 = inlined_call_operand.hbm [shape: f32[8,128], index: 5, kind: output, shape index: {}]
  %s6 = sld [smem:[#allocation0]]
  $region46: #{tpu_custom_call.1} parent=0
    _
  %s8 = ssub.s32 1, %s6
  %s9 = scalar_select 0, %s8, %s6
  $region1: #{tpu_custom_call.1} parent=0
    #allocation2 [shape = 'u8[196608]{0}', space=vmem, size = 0x30000, scoped, tag = 'input window, operand 0, single buffered']
    #allocation3 [shape = 's32[1]{0}', space=sflag, size = 0x4, scoped, tag = 'scoped memory for tpu_custom_call.1']
    #allocation4 [shape = 's32[1]{0}', space=sflag, size = 0x4, scoped, tag = 'scoped memory for tpu_custom_call.1']
    #allocation5 [shape = 'u8[393216]{0}', space=vmem, size = 0x60000, scoped, tag = 'input window, operand 1, single buffered']
    #allocation6 [shape = 's32[1]{0}', space=sflag, size = 0x4, scoped, tag = 'scoped memory for tpu_custom_call.1']
    #allocation7 [shape = 'u8[1024]{0}', space=vmem, size = 0x400, scoped, tag = 'input window, operand 2, single buffered']
    #allocation8 [shape = 'u8[65536]{0}', space=vmem, size = 0x10000, scoped, tag = 'input window, operand 3, single buffered']
    #allocation9 [shape = 's32[1]{0}', space=sflag, size = 0x4, scoped, tag = 'scoped memory for tpu_custom_call.1']
    #allocation10 [shape = 'u8[4096]{0}', space=vmem, size = 0x1000, scoped, tag = 'output window, operand 0, single buffered']
    %10 = vsyncpa [#allocation3], 0
    %11 = vsyncpa [#allocation6], 0
    %12 = vsyncpa [#allocation9], 0
    %13 = vsyncpa [#allocation4], 0
    // Predicated region
    $region2: #{tpu_custom_call.1} parent=1 // pred_check
      _
    $region3: #{tpu_custom_call.1} parent=1 // pred_check_branch
      %15 = sbr.rel (0) target = $region5
    $region4: #{tpu_custom_call.1} parent=1 // pred_region
      %17 = vsyncadd [#allocation3], 0
      %s18 = sshll.u32 %s0, 4
      %s19 = int_to_ptr.hbm [resolvable:$true] %s18
      %s20 = sshll.u32 [#allocation2], 4
      %s21 = int_to_ptr.vmem [resolvable:$true] %s20
      %26 = dma.hbm_to_vmem [thread:$0]  %s19, 6144, %s21, [#allocation3], 768, 768, 48
    $region5: #{tpu_custom_call.1} parent=1 // pred_fallthru
      _
    // Predicated region
    $region6: #{tpu_custom_call.1} parent=1 // pred_check
      _
    $region7: #{tpu_custom_call.1} parent=1 // pred_check_branch
      %28 = sbr.rel (0) target = $region9
    $region8: #{tpu_custom_call.1} parent=1 // pred_region
      %30 = vsyncadd [#allocation6], 0
      %s31 = sshll.u32 %s1, 4
      %s32 = int_to_ptr.hbm [resolvable:$true] %s31
      %s33 = sshll.u32 [#allocation5], 4
      %s34 = int_to_ptr.vmem [resolvable:$true] %s33
      %39 = dma.hbm_to_vmem [thread:$0]  %s32, 12288, %s34, [#allocation6], 384, 384, 24
    $region9: #{tpu_custom_call.1} parent=1 // pred_fallthru
      _
    // Predicated region
    $region10: #{tpu_custom_call.1} parent=1 // pred_check
      _
    $region11: #{tpu_custom_call.1} parent=1 // pred_check_branch
      %41 = sbr.rel (0) target = $region13
    $region12: #{tpu_custom_call.1} parent=1 // pred_region
      %43 = vsyncadd [#allocation6], 0
      %s45 = sshll.u32 %s2, 4
      %s46 = int_to_ptr.hbm [resolvable:$true] %s45
      %s47 = sshll.u32 [#allocation7], 4
      %s48 = int_to_ptr.vmem [resolvable:$true] %s47
      %50 = dma.hbm_to_vmem [thread:$0]  %s46, 32, %s48, [#allocation6]
    $region13: #{tpu_custom_call.1} parent=1 // pred_fallthru
      _
    // Predicated region
    $region14: #{tpu_custom_call.1} parent=1 // pred_check
      _
    $region15: #{tpu_custom_call.1} parent=1 // pred_check_branch
      %52 = sbr.rel (0) target = $region17
    $region16: #{tpu_custom_call.1} parent=1 // pred_region
      %54 = vsyncadd [#allocation9], 0
      %s55 = sshll.u32 %s3, 4
      %s56 = int_to_ptr.hbm [resolvable:$true] %s55
      %s57 = sshll.u32 [#allocation8], 4
      %s58 = int_to_ptr.vmem [resolvable:$true] %s57
      %63 = dma.hbm_to_vmem [thread:$0]  %s56, 2048, %s58, [#allocation9], 64, 64, 4
    $region17: #{tpu_custom_call.1} parent=1 // pred_fallthru
      _
    // Predicated region
    $region18: #{tpu_custom_call.1} parent=1 // pred_check
      _
    $region19: #{tpu_custom_call.1} parent=1 // pred_check_branch
      %65 = sbr.rel (0) target = $region21
    $region20: #{tpu_custom_call.1} parent=1 // pred_region
      _
    $region21: #{tpu_custom_call.1} parent=1 // pred_fallthru
      _
    // Predicated region
    $region22: #{tpu_custom_call.1} parent=1 // pred_check
      _
    $region23: #{tpu_custom_call.1} parent=1 // pred_check_branch
      %67 = sbr.rel (0) target = $region25
    $region24: #{tpu_custom_call.1} parent=1 // pred_region
      %69 = dma.done [#allocation3], 6144
    $region25: #{tpu_custom_call.1} parent=1 // pred_fallthru
      _
    // Predicated region
    $region26: #{tpu_custom_call.1} parent=1 // pred_check
      _
    $region27: #{tpu_custom_call.1} parent=1 // pred_check_branch
      %71 = sbr.rel (0) target = $region29
    $region28: #{tpu_custom_call.1} parent=1 // pred_region
      %73 = dma.done [#allocation6], 12288
    $region29: #{tpu_custom_call.1} parent=1 // pred_fallthru
      _
    // Predicated region
    $region30: #{tpu_custom_call.1} parent=1 // pred_check
      _
    $region31: #{tpu_custom_call.1} parent=1 // pred_check_branch
      %75 = sbr.rel (0) target = $region33
    $region32: #{tpu_custom_call.1} parent=1 // pred_region
      %77 = dma.done [#allocation6], 32
    $region33: #{tpu_custom_call.1} parent=1 // pred_fallthru
      _
    // Predicated region
    $region34: #{tpu_custom_call.1} parent=1 // pred_check
      _
    $region35: #{tpu_custom_call.1} parent=1 // pred_check_branch
      %79 = sbr.rel (0) target = $region37
    $region36: #{tpu_custom_call.1} parent=1 // pred_region
      %81 = dma.done [#allocation9], 2048
    $region37: #{tpu_custom_call.1} parent=1 // pred_fallthru
      _
    %v83 = vld [vmem:[#allocation5] sm:$0xff]
    %v84 = vld [vmem:[#allocation5 + $0x8] sm:$0xff]
    %v85 = vld [vmem:[#allocation5 + $0x10] sm:$0xff]
    %v86 = vld [vmem:[#allocation5 + $0x18] sm:$0xff]
    %v87 = vld [vmem:[#allocation5 + $0x20] sm:$0xff]
    %v88 = vld [vmem:[#allocation5 + $0x28] sm:$0xff]
    %v89 = vld [vmem:[#allocation5 + $0x30] sm:$0xff]
    %v90 = vld [vmem:[#allocation5 + $0x38] sm:$0xff]
    %v91 = vld [vmem:[#allocation5 + $0x40] sm:$0xff]
    %v92 = vld [vmem:[#allocation5 + $0x48] sm:$0xff]
    %v93 = vld [vmem:[#allocation5 + $0x50] sm:$0xff]
    %v94 = vld [vmem:[#allocation5 + $0x58] sm:$0xff]
    %v95 = vld [vmem:[#allocation5 + $0x60] sm:$0xff]
    %v96 = vld [vmem:[#allocation5 + $0x68] sm:$0xff]
    %v97 = vld [vmem:[#allocation5 + $0x70] sm:$0xff]
    %v98 = vld [vmem:[#allocation5 + $0x78] sm:$0xff]
    %v99 = vld [vmem:[#allocation5 + $0x80] sm:$0xff]
    %v100 = vld [vmem:[#allocation5 + $0x88] sm:$0xff]
    %v101 = vld [vmem:[#allocation5 + $0x90] sm:$0xff]
    %v102 = vld [vmem:[#allocation5 + $0x98] sm:$0xff]
    %v103 = vld [vmem:[#allocation5 + $0xa0] sm:$0xff]
    %v104 = vld [vmem:[#allocation5 + $0xa8] sm:$0xff]
    %v105 = vld [vmem:[#allocation5 + $0xb0] sm:$0xff]
    %v106 = vld [vmem:[#allocation5 + $0xb8] sm:$0xff]
    %v107 = vld [vmem:[#allocation5 + $0xc0] sm:$0xff]
    %v108 = vld [vmem:[#allocation5 + $0xc8] sm:$0xff]
    %v109 = vld [vmem:[#allocation5 + $0xd0] sm:$0xff]
    %v110 = vld [vmem:[#allocation5 + $0xd8] sm:$0xff]
    %v111 = vld [vmem:[#allocation5 + $0xe0] sm:$0xff]
    %v112 = vld [vmem:[#allocation5 + $0xe8] sm:$0xff]
    %v113 = vld [vmem:[#allocation5 + $0xf0] sm:$0xff]
    %v114 = vld [vmem:[#allocation5 + $0xf8] sm:$0xff]
    %v115 = vld [vmem:[#allocation5 + $0x100] sm:$0xff]
    %v116 = vld [vmem:[#allocation5 + $0x108] sm:$0xff]
    %v117 = vld [vmem:[#allocation5 + $0x110] sm:$0xff]
    %v118 = vld [vmem:[#allocation5 + $0x118] sm:$0xff]
    %v119 = vld [vmem:[#allocation5 + $0x120] sm:$0xff]
    %v120 = vld [vmem:[#allocation5 + $0x128] sm:$0xff]
    %v121 = vld [vmem:[#allocation5 + $0x130] sm:$0xff]
    %v122 = vld [vmem:[#allocation5 + $0x138] sm:$0xff]
    %v123 = vld [vmem:[#allocation5 + $0x140] sm:$0xff]
    %v124 = vld [vmem:[#allocation5 + $0x148] sm:$0xff]
    %v125 = vld [vmem:[#allocation5 + $0x150] sm:$0xff]
    %v126 = vld [vmem:[#allocation5 + $0x158] sm:$0xff]
    %v127 = vld [vmem:[#allocation5 + $0x160] sm:$0xff]
    %v128 = vld [vmem:[#allocation5 + $0x168] sm:$0xff]
    %v129 = vld [vmem:[#allocation5 + $0x170] sm:$0xff]
    %v130 = vld [vmem:[#allocation5 + $0x178] sm:$0xff]
    %v131 = vld [vmem:[#allocation5 + $0x180] sm:$0xff]
    %v132 = vld [vmem:[#allocation5 + $0x188] sm:$0xff]
    %v133 = vld [vmem:[#allocation5 + $0x190] sm:$0xff]
    %v134 = vld [vmem:[#allocation5 + $0x198] sm:$0xff]
    %v135 = vld [vmem:[#allocation5 + $0x1a0] sm:$0xff]
    %v136 = vld [vmem:[#allocation5 + $0x1a8] sm:$0xff]
    %v137 = vld [vmem:[#allocation5 + $0x1b0] sm:$0xff]
    %v138 = vld [vmem:[#allocation5 + $0x1b8] sm:$0xff]
    %v139 = vld [vmem:[#allocation5 + $0x1c0] sm:$0xff]
    %v140 = vld [vmem:[#allocation5 + $0x1c8] sm:$0xff]
    %v141 = vld [vmem:[#allocation5 + $0x1d0] sm:$0xff]
    %v142 = vld [vmem:[#allocation5 + $0x1d8] sm:$0xff]
    %v143 = vld [vmem:[#allocation5 + $0x1e0] sm:$0xff]
    %v144 = vld [vmem:[#allocation5 + $0x1e8] sm:$0xff]
    %v145 = vld [vmem:[#allocation5 + $0x1f0] sm:$0xff]
    %v146 = vld [vmem:[#allocation5 + $0x1f8] sm:$0xff]
    %v147 = vld [vmem:[#allocation5 + $0x200] sm:$0xff]
    %v148 = vld [vmem:[#allocation5 + $0x208] sm:$0xff]
    %v149 = vld [vmem:[#allocation5 + $0x210] sm:$0xff]
    %v150 = vld [vmem:[#allocation5 + $0x218] sm:$0xff]
    %v151 = vld [vmem:[#allocation5 + $0x220] sm:$0xff]
    %v152 = vld [vmem:[#allocation5 + $0x228] sm:$0xff]
    %v153 = vld [vmem:[#allocation5 + $0x230] sm:$0xff]
    %v154 = vld [vmem:[#allocation5 + $0x238] sm:$0xff]
    %v155 = vld [vmem:[#allocation5 + $0x240] sm:$0xff]
    %v156 = vld [vmem:[#allocation5 + $0x248] sm:$0xff]
    %v157 = vld [vmem:[#allocation5 + $0x250] sm:$0xff]
    %v158 = vld [vmem:[#allocation5 + $0x258] sm:$0xff]
    %v159 = vld [vmem:[#allocation5 + $0x260] sm:$0xff]
    %v160 = vld [vmem:[#allocation5 + $0x268] sm:$0xff]
    %v161 = vld [vmem:[#allocation5 + $0x270] sm:$0xff]
    %v162 = vld [vmem:[#allocation5 + $0x278] sm:$0xff]
    %v163 = vld [vmem:[#allocation5 + $0x280] sm:$0xff]
    %v164 = vld [vmem:[#allocation5 + $0x288] sm:$0xff]
    %v165 = vld [vmem:[#allocation5 + $0x290] sm:$0xff]
    %v166 = vld [vmem:[#allocation5 + $0x298] sm:$0xff]
    %v167 = vld [vmem:[#allocation5 + $0x2a0] sm:$0xff]
    %v168 = vld [vmem:[#allocation5 + $0x2a8] sm:$0xff]
    %v169 = vld [vmem:[#allocation5 + $0x2b0] sm:$0xff]
    %v170 = vld [vmem:[#allocation5 + $0x2b8] sm:$0xff]
    %v171 = vld [vmem:[#allocation5 + $0x2c0] sm:$0xff]
    %v172 = vld [vmem:[#allocation5 + $0x2c8] sm:$0xff]
    %v173 = vld [vmem:[#allocation5 + $0x2d0] sm:$0xff]
    %v174 = vld [vmem:[#allocation5 + $0x2d8] sm:$0xff]
    %v175 = vld [vmem:[#allocation5 + $0x2e0] sm:$0xff]
    %v176 = vld [vmem:[#allocation5 + $0x2e8] sm:$0xff]
    %v177 = vld [vmem:[#allocation5 + $0x2f0] sm:$0xff]
    %v178 = vld [vmem:[#allocation5 + $0x2f8] sm:$0xff]
    %v179 = vld [vmem:[#allocation7] sm:$0x3]
    %v180 = vld [vmem:[#allocation2] sm:$0xff]
    %v181 = vld [vmem:[#allocation2 + $0x8] sm:$0xff]
    %v182 = vld [vmem:[#allocation2 + $0x10] sm:$0xff]
    %v183 = vld [vmem:[#allocation2 + $0x18] sm:$0xff]
    %v184 = vld [vmem:[#allocation2 + $0x20] sm:$0xff]
    %v185 = vld [vmem:[#allocation2 + $0x28] sm:$0xff]
    %v282 = vunpack.c.l.b16 %v83
    %v283 = vunpack.c.h.b16 %v83
    %v284 = vunpack.c.l.b16 %v84
    %v285 = vunpack.c.h.b16 %v84
    %v286 = vunpack.c.l.b16 %v85
    %v287 = vunpack.c.h.b16 %v85
    %v288 = vunpack.c.l.b16 %v86
    %v289 = vunpack.c.h.b16 %v86
    %v290 = vunpack.c.l.b16 %v87
    %v291 = vunpack.c.h.b16 %v87
    %v292 = vunpack.c.l.b16 %v88
    %v293 = vunpack.c.h.b16 %v88
    %v294 = vunpack.c.l.b16 %v89
    %v295 = vunpack.c.h.b16 %v89
    %v296 = vunpack.c.l.b16 %v90
    %v297 = vunpack.c.h.b16 %v90
    %v298 = vunpack.c.l.b16 %v91
    %v299 = vunpack.c.h.b16 %v91
    %v300 = vunpack.c.l.b16 %v92
    %v301 = vunpack.c.h.b16 %v92
    %v302 = vunpack.c.l.b16 %v93
    %v303 = vunpack.c.h.b16 %v93
    %v304 = vunpack.c.l.b16 %v94
    %v305 = vunpack.c.h.b16 %v94
    %v306 = vunpack.c.l.b16 %v95
    %v307 = vunpack.c.h.b16 %v95
    %v308 = vunpack.c.l.b16 %v96
    %v309 = vunpack.c.h.b16 %v96
    %v310 = vunpack.c.l.b16 %v97
    %v311 = vunpack.c.h.b16 %v97
    %v312 = vunpack.c.l.b16 %v98
    %v313 = vunpack.c.h.b16 %v98
    %v314 = vunpack.c.l.b16 %v99
    %v315 = vunpack.c.h.b16 %v99
    %v316 = vunpack.c.l.b16 %v100
    %v317 = vunpack.c.h.b16 %v100
    %v318 = vunpack.c.l.b16 %v101
    %v319 = vunpack.c.h.b16 %v101
    %v320 = vunpack.c.l.b16 %v102
    %v321 = vunpack.c.h.b16 %v102
    %v322 = vunpack.c.l.b16 %v103
    %v323 = vunpack.c.h.b16 %v103
    %v324 = vunpack.c.l.b16 %v104
    %v325 = vunpack.c.h.b16 %v104
    %v326 = vunpack.c.l.b16 %v105
    %v327 = vunpack.c.h.b16 %v105
    %v328 = vunpack.c.l.b16 %v106
    %v329 = vunpack.c.h.b16 %v106
    %v330 = vunpack.c.l.b16 %v107
    %v331 = vunpack.c.h.b16 %v107
    %v332 = vunpack.c.l.b16 %v108
    %v333 = vunpack.c.h.b16 %v108
    %v334 = vunpack.c.l.b16 %v109
    %v335 = vunpack.c.h.b16 %v109
    %v336 = vunpack.c.l.b16 %v110
    %v337 = vunpack.c.h.b16 %v110
    %v338 = vunpack.c.l.b16 %v111
    %v339 = vunpack.c.h.b16 %v111
    %v340 = vunpack.c.l.b16 %v112
    %v341 = vunpack.c.h.b16 %v112
    %v342 = vunpack.c.l.b16 %v113
    %v343 = vunpack.c.h.b16 %v113
    %v344 = vunpack.c.l.b16 %v114
    %v345 = vunpack.c.h.b16 %v114
    %v346 = vunpack.c.l.b16 %v115
    %v347 = vunpack.c.h.b16 %v115
    %v348 = vunpack.c.l.b16 %v116
    %v349 = vunpack.c.h.b16 %v116
    %v350 = vunpack.c.l.b16 %v117
    %v351 = vunpack.c.h.b16 %v117
    %v352 = vunpack.c.l.b16 %v118
    %v353 = vunpack.c.h.b16 %v118
    %v354 = vunpack.c.l.b16 %v119
    %v355 = vunpack.c.h.b16 %v119
    %v356 = vunpack.c.l.b16 %v120
    %v357 = vunpack.c.h.b16 %v120
    %v358 = vunpack.c.l.b16 %v121
    %v359 = vunpack.c.h.b16 %v121
    %v360 = vunpack.c.l.b16 %v122
    %v361 = vunpack.c.h.b16 %v122
    %v362 = vunpack.c.l.b16 %v123
    %v363 = vunpack.c.h.b16 %v123
    %v364 = vunpack.c.l.b16 %v124
    %v365 = vunpack.c.h.b16 %v124
    %v366 = vunpack.c.l.b16 %v125
    %v367 = vunpack.c.h.b16 %v125
    %v368 = vunpack.c.l.b16 %v126
    %v369 = vunpack.c.h.b16 %v126
    %v370 = vunpack.c.l.b16 %v127
    %v371 = vunpack.c.h.b16 %v127
    %v372 = vunpack.c.l.b16 %v128
    %v373 = vunpack.c.h.b16 %v128
    %v374 = vunpack.c.l.b16 %v129
    %v375 = vunpack.c.h.b16 %v129
    %v376 = vunpack.c.l.b16 %v130
    %v377 = vunpack.c.h.b16 %v130
    %v378 = vunpack.c.l.b16 %v131
    %v379 = vunpack.c.h.b16 %v131
    %v380 = vunpack.c.l.b16 %v132
    %v381 = vunpack.c.h.b16 %v132
    %v382 = vunpack.c.l.b16 %v133
    %v383 = vunpack.c.h.b16 %v133
    %v384 = vunpack.c.l.b16 %v134
    %v385 = vunpack.c.h.b16 %v134
    %v386 = vunpack.c.l.b16 %v135
    %v387 = vunpack.c.h.b16 %v135
    %v388 = vunpack.c.l.b16 %v136
    %v389 = vunpack.c.h.b16 %v136
    %v390 = vunpack.c.l.b16 %v137
    %v391 = vunpack.c.h.b16 %v137
    %v392 = vunpack.c.l.b16 %v138
    %v393 = vunpack.c.h.b16 %v138
    %v394 = vunpack.c.l.b16 %v139
    %v395 = vunpack.c.h.b16 %v139
    %v396 = vunpack.c.l.b16 %v140
    %v397 = vunpack.c.h.b16 %v140
    %v398 = vunpack.c.l.b16 %v141
    %v399 = vunpack.c.h.b16 %v141
    %v400 = vunpack.c.l.b16 %v142
    %v401 = vunpack.c.h.b16 %v142
    %v402 = vunpack.c.l.b16 %v143
    %v403 = vunpack.c.h.b16 %v143
    %v404 = vunpack.c.l.b16 %v144
    %v405 = vunpack.c.h.b16 %v144
    %v406 = vunpack.c.l.b16 %v145
    %v407 = vunpack.c.h.b16 %v145
    %v408 = vunpack.c.l.b16 %v146
    %v409 = vunpack.c.h.b16 %v146
    %v410 = vunpack.c.l.b16 %v147
    %v411 = vunpack.c.h.b16 %v147
    %v412 = vunpack.c.l.b16 %v148
    %v413 = vunpack.c.h.b16 %v148
    %v414 = vunpack.c.l.b16 %v149
    %v415 = vunpack.c.h.b16 %v149
    %v416 = vunpack.c.l.b16 %v150
    %v417 = vunpack.c.h.b16 %v150
    %v418 = vunpack.c.l.b16 %v151
    %v419 = vunpack.c.h.b16 %v151
    %v420 = vunpack.c.l.b16 %v152
    %v421 = vunpack.c.h.b16 %v152
    %v422 = vunpack.c.l.b16 %v153
    %v423 = vunpack.c.h.b16 %v153
    %v424 = vunpack.c.l.b16 %v154
    %v425 = vunpack.c.h.b16 %v154
    %v426 = vunpack.c.l.b16 %v155
    %v427 = vunpack.c.h.b16 %v155
    %v428 = vunpack.c.l.b16 %v156
    %v429 = vunpack.c.h.b16 %v156
    %v430 = vunpack.c.l.b16 %v157
    %v431 = vunpack.c.h.b16 %v157
    %v432 = vunpack.c.l.b16 %v158
    %v433 = vunpack.c.h.b16 %v158
    %v434 = vunpack.c.l.b16 %v159
    %v435 = vunpack.c.h.b16 %v159
    %v436 = vunpack.c.l.b16 %v160
    %v437 = vunpack.c.h.b16 %v160
    %v438 = vunpack.c.l.b16 %v161
    %v439 = vunpack.c.h.b16 %v161
    %v440 = vunpack.c.l.b16 %v162
    %v441 = vunpack.c.h.b16 %v162
    %v442 = vunpack.c.l.b16 %v163
    %v443 = vunpack.c.h.b16 %v163
    %v444 = vunpack.c.l.b16 %v164
    %v445 = vunpack.c.h.b16 %v164
    %v446 = vunpack.c.l.b16 %v165
    %v447 = vunpack.c.h.b16 %v165
    %v448 = vunpack.c.l.b16 %v166
    %v449 = vunpack.c.h.b16 %v166
    %v450 = vunpack.c.l.b16 %v167
    %v451 = vunpack.c.h.b16 %v167
    %v452 = vunpack.c.l.b16 %v168
    %v453 = vunpack.c.h.b16 %v168
    %v454 = vunpack.c.l.b16 %v169
    %v455 = vunpack.c.h.b16 %v169
    %v456 = vunpack.c.l.b16 %v170
    %v457 = vunpack.c.h.b16 %v170
    %v458 = vunpack.c.l.b16 %v171
    %v459 = vunpack.c.h.b16 %v171
    %v460 = vunpack.c.l.b16 %v172
    %v461 = vunpack.c.h.b16 %v172
    %v462 = vunpack.c.l.b16 %v173
    %v463 = vunpack.c.h.b16 %v173
    %v464 = vunpack.c.l.b16 %v174
    %v465 = vunpack.c.h.b16 %v174
    %v466 = vunpack.c.l.b16 %v175
    %v467 = vunpack.c.h.b16 %v175
    %v468 = vunpack.c.l.b16 %v176
    %v469 = vunpack.c.h.b16 %v176
    %v470 = vunpack.c.l.b16 %v177
    %v471 = vunpack.c.h.b16 %v177
    %v472 = vunpack.c.l.b16 %v178
    %v473 = vunpack.c.h.b16 %v178
    %v474 = vpack.c.b16 %v288, %v282
    %v475 = vpack.c.b16 %v289, %v283
    %v476 = vpack.c.b16 %v290, %v284
    %v477 = vpack.c.b16 %v291, %v285
    %v478 = vpack.c.b16 %v292, %v286
    %v479 = vpack.c.b16 %v293, %v287
    %v480 = vpack.c.b16 %v300, %v294
    %v481 = vpack.c.b16 %v301, %v295
    %v482 = vpack.c.b16 %v302, %v296
    %v483 = vpack.c.b16 %v303, %v297
    %v484 = vpack.c.b16 %v304, %v298
    %v485 = vpack.c.b16 %v305, %v299
    %v486 = vpack.c.b16 %v312, %v306
    %v487 = vpack.c.b16 %v313, %v307
    %v488 = vpack.c.b16 %v314, %v308
    %v489 = vpack.c.b16 %v315, %v309
    %v490 = vpack.c.b16 %v316, %v310
    %v491 = vpack.c.b16 %v317, %v311
    %v492 = vpack.c.b16 %v324, %v318
    %v493 = vpack.c.b16 %v325, %v319
    %v494 = vpack.c.b16 %v326, %v320
    %v495 = vpack.c.b16 %v327, %v321
    %v496 = vpack.c.b16 %v328, %v322
    %v497 = vpack.c.b16 %v329, %v323
    %v498 = vpack.c.b16 %v336, %v330
    %v499 = vpack.c.b16 %v337, %v331
    %v500 = vpack.c.b16 %v338, %v332
    %v501 = vpack.c.b16 %v339, %v333
    %v502 = vpack.c.b16 %v340, %v334
    %v503 = vpack.c.b16 %v341, %v335
    %v504 = vpack.c.b16 %v348, %v342
    %v505 = vpack.c.b16 %v349, %v343
    %v506 = vpack.c.b16 %v350, %v344
    %v507 = vpack.c.b16 %v351, %v345
    %v508 = vpack.c.b16 %v352, %v346
    %v509 = vpack.c.b16 %v353, %v347
    %v510 = vpack.c.b16 %v360, %v354
    %v511 = vpack.c.b16 %v361, %v355
    %v512 = vpack.c.b16 %v362, %v356
    %v513 = vpack.c.b16 %v363, %v357
    %v514 = vpack.c.b16 %v364, %v358
    %v515 = vpack.c.b16 %v365, %v359
    %v516 = vpack.c.b16 %v372, %v366
    %v517 = vpack.c.b16 %v373, %v367
    %v518 = vpack.c.b16 %v374, %v368
    %v519 = vpack.c.b16 %v375, %v369
    %v520 = vpack.c.b16 %v376, %v370
    %v521 = vpack.c.b16 %v377, %v371
    %v522 = vpack.c.b16 %v384, %v378
    %v523 = vpack.c.b16 %v385, %v379
    %v524 = vpack.c.b16 %v386, %v380
    %v525 = vpack.c.b16 %v387, %v381
    %v526 = vpack.c.b16 %v388, %v382
    %v527 = vpack.c.b16 %v389, %v383
    %v528 = vpack.c.b16 %v396, %v390
    %v529 = vpack.c.b16 %v397, %v391
    %v530 = vpack.c.b16 %v398, %v392
    %v531 = vpack.c.b16 %v399, %v393
    %v532 = vpack.c.b16 %v400, %v394
    %v533 = vpack.c.b16 %v401, %v395
    %v534 = vpack.c.b16 %v408, %v402
    %v535 = vpack.c.b16 %v409, %v403
    %v536 = vpack.c.b16 %v410, %v404
    %v537 = vpack.c.b16 %v411, %v405
    %v538 = vpack.c.b16 %v412, %v406
    %v539 = vpack.c.b16 %v413, %v407
    %v540 = vpack.c.b16 %v420, %v414
    %v541 = vpack.c.b16 %v421, %v415
    %v542 = vpack.c.b16 %v422, %v416
    %v543 = vpack.c.b16 %v423, %v417
    %v544 = vpack.c.b16 %v424, %v418
    %v545 = vpack.c.b16 %v425, %v419
    %v546 = vpack.c.b16 %v432, %v426
    %v547 = vpack.c.b16 %v433, %v427
    %v548 = vpack.c.b16 %v434, %v428
    %v549 = vpack.c.b16 %v435, %v429
    %v550 = vpack.c.b16 %v436, %v430
    %v551 = vpack.c.b16 %v437, %v431
    %v552 = vpack.c.b16 %v444, %v438
    %v553 = vpack.c.b16 %v445, %v439
    %v554 = vpack.c.b16 %v446, %v440
    %v555 = vpack.c.b16 %v447, %v441
    %v556 = vpack.c.b16 %v448, %v442
    %v557 = vpack.c.b16 %v449, %v443
    %v558 = vpack.c.b16 %v456, %v450
    %v559 = vpack.c.b16 %v457, %v451
    %v560 = vpack.c.b16 %v458, %v452
    %v561 = vpack.c.b16 %v459, %v453
    %v562 = vpack.c.b16 %v460, %v454
    %v563 = vpack.c.b16 %v461, %v455
    %v564 = vpack.c.b16 %v468, %v462
    %v565 = vpack.c.b16 %v469, %v463
    %v566 = vpack.c.b16 %v470, %v464
    %v567 = vpack.c.b16 %v471, %v465
    %v568 = vpack.c.b16 %v472, %v466
    %v569 = vpack.c.b16 %v473, %v467
    %666 = vmatpush.bf16.msra.mxu0 %v516
    %667 = vmatpush.bf16.msra.mxu0 %v510
    %668 = vmatpush.bf16.msra.mxu0 %v504
    %669 = vmatpush.bf16.msra.mxu0 %v498
    %670 = vmatpush.bf16.msra.mxu0 %v492
    %671 = vmatpush.bf16.msra.mxu0 %v486
    %672 = vmatpush.bf16.msra.mxu0 %v480
    %673 = vmatpush.bf16.msra.mxu0 %v474
    %674 = vmatmul.bf16.gmra.mxu0 0
    %v675 = vpop.f32.mrf.mxu0
    %v676 = vadd.f32 0.0, %v675
    %v677 = vpop.f32.mrf.mxu0
    %678 = vdwg.mxu0
    %679 = vmatpush.bf16.msra.mxu0 %v564
    %680 = vmatpush.bf16.msra.mxu0 %v558
    %681 = vmatpush.bf16.msra.mxu0 %v552
    %682 = vmatpush.bf16.msra.mxu0 %v546
    %683 = vmatpush.bf16.msra.mxu0 %v540
    %684 = vmatpush.bf16.msra.mxu0 %v534
    %685 = vmatpush.bf16.msra.mxu0 %v528
    %686 = vmatpush.bf16.msra.mxu0 %v522
    %687 = vmatmul.bf16.gmra.mxu0 0
    %v688 = vpop.f32.mrf.mxu0
    %v689 = vadd.f32 %v676, %v688
    %v690 = vpop.f32.mrf.mxu0
    %691 = vdwg.mxu0
    %692 = vmatpush.bf16.msra.mxu0 %v517
    %693 = vmatpush.bf16.msra.mxu0 %v511
    %694 = vmatpush.bf16.msra.mxu0 %v505
    %695 = vmatpush.bf16.msra.mxu0 %v499
    %696 = vmatpush.bf16.msra.mxu0 %v493
    %697 = vmatpush.bf16.msra.mxu0 %v487
    %698 = vmatpush.bf16.msra.mxu0 %v481
    %699 = vmatpush.bf16.msra.mxu0 %v475
    %700 = vmatmul.bf16.gmra.mxu0 0
    %v701 = vpop.f32.mrf.mxu0
    %v702 = vadd.f32 0.0, %v701
    %v703 = vpop.f32.mrf.mxu0
    %704 = vdwg.mxu0
    %705 = vmatpush.bf16.msra.mxu0 %v565
    %706 = vmatpush.bf16.msra.mxu0 %v559
    %707 = vmatpush.bf16.msra.mxu0 %v553
    %708 = vmatpush.bf16.msra.mxu0 %v547
    %709 = vmatpush.bf16.msra.mxu0 %v541
    %710 = vmatpush.bf16.msra.mxu0 %v535
    %711 = vmatpush.bf16.msra.mxu0 %v529
    %712 = vmatpush.bf16.msra.mxu0 %v523
    %713 = vmatmul.bf16.gmra.mxu0 0
    %v714 = vpop.f32.mrf.mxu0
    %v715 = vadd.f32 %v702, %v714
    %v716 = vpop.f32.mrf.mxu0
    %717 = vdwg.mxu0
    %718 = vmatpush.bf16.msra.mxu0 %v518
    %719 = vmatpush.bf16.msra.mxu0 %v512
    %720 = vmatpush.bf16.msra.mxu0 %v506
    %721 = vmatpush.bf16.msra.mxu0 %v500
    %722 = vmatpush.bf16.msra.mxu0 %v494
    %723 = vmatpush.bf16.msra.mxu0 %v488
    %724 = vmatpush.bf16.msra.mxu0 %v482
    %725 = vmatpush.bf16.msra.mxu0 %v476
    %726 = vmatmul.bf16.gmra.mxu0 0
    %v727 = vpop.f32.mrf.mxu0
    %v728 = vadd.f32 0.0, %v727
    %v729 = vpop.f32.mrf.mxu0
    %730 = vdwg.mxu0
    %731 = vmatpush.bf16.msra.mxu0 %v566
    %732 = vmatpush.bf16.msra.mxu0 %v560
    %733 = vmatpush.bf16.msra.mxu0 %v554
    %734 = vmatpush.bf16.msra.mxu0 %v548
    %735 = vmatpush.bf16.msra.mxu0 %v542
    %736 = vmatpush.bf16.msra.mxu0 %v536
    %737 = vmatpush.bf16.msra.mxu0 %v530
    %738 = vmatpush.bf16.msra.mxu0 %v524
    %739 = vmatmul.bf16.gmra.mxu0 0
    %v740 = vpop.f32.mrf.mxu0
    %v741 = vadd.f32 %v728, %v740
    %v742 = vpop.f32.mrf.mxu0
    %743 = vdwg.mxu0
    %744 = vmatpush.bf16.msra.mxu0 %v519
    %745 = vmatpush.bf16.msra.mxu0 %v513
    %746 = vmatpush.bf16.msra.mxu0 %v507
    %747 = vmatpush.bf16.msra.mxu0 %v501
    %748 = vmatpush.bf16.msra.mxu0 %v495
    %749 = vmatpush.bf16.msra.mxu0 %v489
    %750 = vmatpush.bf16.msra.mxu0 %v483
    %751 = vmatpush.bf16.msra.mxu0 %v477
    %752 = vmatmul.bf16.gmra.mxu0 0
    %v753 = vpop.f32.mrf.mxu0
    %v754 = vadd.f32 0.0, %v753
    %v755 = vpop.f32.mrf.mxu0
    %756 = vdwg.mxu0
    %757 = vmatpush.bf16.msra.mxu0 %v567
    %758 = vmatpush.bf16.msra.mxu0 %v561
    %759 = vmatpush.bf16.msra.mxu0 %v555
    %760 = vmatpush.bf16.msra.mxu0 %v549
    %761 = vmatpush.bf16.msra.mxu0 %v543
    %762 = vmatpush.bf16.msra.mxu0 %v537
    %763 = vmatpush.bf16.msra.mxu0 %v531
    %764 = vmatpush.bf16.msra.mxu0 %v525
    %765 = vmatmul.bf16.gmra.mxu0 0
    %v766 = vpop.f32.mrf.mxu0
    %v767 = vadd.f32 %v754, %v766
    %v768 = vpop.f32.mrf.mxu0
    %769 = vdwg.mxu0
    %770 = vmatpush.bf16.msra.mxu0 %v520
    %771 = vmatpush.bf16.msra.mxu0 %v514
    %772 = vmatpush.bf16.msra.mxu0 %v508
    %773 = vmatpush.bf16.msra.mxu0 %v502
    %774 = vmatpush.bf16.msra.mxu0 %v496
    %775 = vmatpush.bf16.msra.mxu0 %v490
    %776 = vmatpush.bf16.msra.mxu0 %v484
    %777 = vmatpush.bf16.msra.mxu0 %v478
    %778 = vmatmul.bf16.gmra.mxu0 0
    %v779 = vpop.f32.mrf.mxu0
    %v780 = vadd.f32 0.0, %v779
    %v781 = vpop.f32.mrf.mxu0
    %782 = vdwg.mxu0
    %783 = vmatpush.bf16.msra.mxu0 %v568
    %784 = vmatpush.bf16.msra.mxu0 %v562
    %785 = vmatpush.bf16.msra.mxu0 %v556
    %786 = vmatpush.bf16.msra.mxu0 %v550
    %787 = vmatpush.bf16.msra.mxu0 %v544
    %788 = vmatpush.bf16.msra.mxu0 %v538
    %789 = vmatpush.bf16.msra.mxu0 %v532
    %790 = vmatpush.bf16.msra.mxu0 %v526
    %791 = vmatmul.bf16.gmra.mxu0 0
    %v792 = vpop.f32.mrf.mxu0
    %v793 = vadd.f32 %v780, %v792
    %v794 = vpop.f32.mrf.mxu0
    %795 = vdwg.mxu0
    %796 = vmatpush.bf16.msra.mxu0 %v521
    %797 = vmatpush.bf16.msra.mxu0 %v515
    %798 = vmatpush.bf16.msra.mxu0 %v509
    %799 = vmatpush.bf16.msra.mxu0 %v503
    %800 = vmatpush.bf16.msra.mxu0 %v497
    %801 = vmatpush.bf16.msra.mxu0 %v491
    %802 = vmatpush.bf16.msra.mxu0 %v485
    %803 = vmatpush.bf16.msra.mxu0 %v479
    %804 = vmatmul.bf16.gmra.mxu0 0
    %v805 = vpop.f32.mrf.mxu0
    %v806 = vadd.f32 0.0, %v805
    %v807 = vpop.f32.mrf.mxu0
    %808 = vdwg.mxu0
    %809 = vmatpush.bf16.msra.mxu0 %v569
    %810 = vmatpush.bf16.msra.mxu0 %v563
    %811 = vmatpush.bf16.msra.mxu0 %v557
    %812 = vmatpush.bf16.msra.mxu0 %v551
    %813 = vmatpush.bf16.msra.mxu0 %v545
    %814 = vmatpush.bf16.msra.mxu0 %v539
    %815 = vmatpush.bf16.msra.mxu0 %v533
    %816 = vmatpush.bf16.msra.mxu0 %v527
    %817 = vmatmul.bf16.gmra.mxu0 0
    %v818 = vpop.f32.mrf.mxu0
    %v819 = vadd.f32 %v806, %v818
    %v820 = vpop.f32.mrf.mxu0
    %821 = vdwg.mxu0
    %v822 = vadd.f32 %v180, %v689
    %v823 = vadd.f32 %v181, %v715
    %v824 = vxor.u32 %v822, 2147483648
    %v825 = vxor.u32 %v823, 2147483648
    %v826 = vmul.f32 %v824, 1.442695
    %v827 = vpow.pop %v826
    %v828 = vmul.f32 %v825, 1.442695
    %v829 = vpow.pop %v828
    %v830 = vadd.f32 %v827, 1.0
    %v831 = vadd.f32 %v829, 1.0
    %v832 = vrcp.pop %v830
    %v833 = vmul.f32 %v830, %v832
    %v834 = vsub.f32 1.0, %v833
    %v835 = vmul.f32 %v832, %v834
    %v836 = vadd.f32 %v832, %v835
    %vm837 = vweird.f32 %v830
    %vm838 = vweird.f32 %v832
    %vm839 = vmor %vm837, %vm838
    %v840 = vsel %vm839, %v832, %v836
    %v841 = vand.u32 2147483647, %v830
    %vm842 = vcmp.eq.f32.partialorder %v841, 8.507059e+37
    %v843 = vand.u32 %v830, 2147483648
    %v844 = vor.u32 1.1754944e-38, %v843
    %v845 = vsel %vm842, %v844, %v840
    %v846 = vmul.f32 1.0, %v845
    %v847 = vrcp.pop %v831
    %v848 = vmul.f32 %v831, %v847
    %v849 = vsub.f32 1.0, %v848
    %v850 = vmul.f32 %v847, %v849
    %v851 = vadd.f32 %v847, %v850
    %vm852 = vweird.f32 %v831
    %vm853 = vweird.f32 %v847
    %vm854 = vmor %vm852, %vm853
    %v855 = vsel %vm854, %v847, %v851
    %v856 = vand.u32 2147483647, %v831
    %vm857 = vcmp.eq.f32.partialorder %v856, 8.507059e+37
    %v858 = vand.u32 %v831, 2147483648
    %v859 = vor.u32 1.1754944e-38, %v858
    %v860 = vsel %vm857, %v859, %v855
    %v861 = vmul.f32 1.0, %v860
    %v862 = vadd.f32 %v182, %v741
    %v863 = vadd.f32 %v183, %v767
    %v864 = vxor.u32 %v862, 2147483648
    %v865 = vxor.u32 %v863, 2147483648
    %v866 = vmul.f32 %v864, 1.442695
    %v867 = vpow.pop %v866
    %v868 = vmul.f32 %v865, 1.442695
    %v869 = vpow.pop %v868
    %v870 = vadd.f32 %v867, 1.0
    %v871 = vadd.f32 %v869, 1.0
    %v872 = vrcp.pop %v870
    %v873 = vmul.f32 %v870, %v872
    %v874 = vsub.f32 1.0, %v873
    %v875 = vmul.f32 %v872, %v874
    %v876 = vadd.f32 %v872, %v875
    %vm877 = vweird.f32 %v870
    %vm878 = vweird.f32 %v872
    %vm879 = vmor %vm877, %vm878
    %v880 = vsel %vm879, %v872, %v876
    %v881 = vand.u32 2147483647, %v870
    %vm882 = vcmp.eq.f32.partialorder %v881, 8.507059e+37
    %v883 = vand.u32 %v870, 2147483648
    %v884 = vor.u32 1.1754944e-38, %v883
    %v885 = vsel %vm882, %v884, %v880
    %v886 = vmul.f32 1.0, %v885
    %v887 = vrcp.pop %v871
    %v888 = vmul.f32 %v871, %v887
    %v889 = vsub.f32 1.0, %v888
    %v890 = vmul.f32 %v887, %v889
    %v891 = vadd.f32 %v887, %v890
    %vm892 = vweird.f32 %v871
    %vm893 = vweird.f32 %v887
    %vm894 = vmor %vm892, %vm893
    %v895 = vsel %vm894, %v887, %v891
    %v896 = vand.u32 2147483647, %v871
    %vm897 = vcmp.eq.f32.partialorder %v896, 8.507059e+37
    %v898 = vand.u32 %v871, 2147483648
    %v899 = vor.u32 1.1754944e-38, %v898
    %v900 = vsel %vm897, %v899, %v895
    %v901 = vmul.f32 1.0, %v900
    %v903 = vperm.slane %v179, 0
    %v904 = vperm.slane %v179, 1
    %v907 = vadd.f32 %v793, %v903
    %v908 = vadd.f32 %v819, %v904
    %v909 = vmul.f32 %v846, %v907
    %v910 = vmul.f32 %v861, %v908
    %v911 = vadd.f32 %v184, %v909
    %v912 = vadd.f32 %v185, %v910
    %v913 = vtanh.pop %v911
    %v914 = vtanh.pop %v912
    %v915 = vsub.f32 1.0, %v886
    %v916 = vsub.f32 1.0, %v901
    %v917 = vmul.f32 %v915, %v913
    %v918 = vmul.f32 %v916, %v914
    %v919 = vmul.f32 %v886, 0.0
    %v920 = vmul.f32 %v901, 0.0
    %v921 = vadd.f32 %v917, %v919
    %v922 = vadd.f32 %v918, %v920
    %s923 = scalar_lea.vmem [#allocation2], 48
    %v924 = vld [vmem:[%s923] sm:$0xff]
    %v925 = vld [vmem:[%s923 + $0x8] sm:$0xff]
    %v926 = vld [vmem:[%s923 + $0x10] sm:$0xff]
    %v927 = vld [vmem:[%s923 + $0x18] sm:$0xff]
    %v928 = vld [vmem:[%s923 + $0x20] sm:$0xff]
    %v929 = vld [vmem:[%s923 + $0x28] sm:$0xff]
    %v930 = vpack.c.bf16 %v921, %v921
    %v931 = vpack.c.bf16 %v922, %v922
    %932 = vmatpush.bf16.msra.mxu0 %v516
    %933 = vmatpush.bf16.msra.mxu0 %v510
    %934 = vmatpush.bf16.msra.mxu0 %v504
    %935 = vmatpush.bf16.msra.mxu0 %v498
    %936 = vmatpush.bf16.msra.mxu0 %v492
    %937 = vmatpush.bf16.msra.mxu0 %v486
    %938 = vmatpush.bf16.msra.mxu0 %v480
    %939 = vmatpush.bf16.msra.mxu0 %v474
    %940 = vmatmul.bf16.gmra.mxu0 %v930
    %v941 = vpop.f32.mrf.mxu0
    %v942 = vadd.f32 0.0, %v941
    %v943 = vpop.f32.mrf.mxu0
    %944 = vdwg.mxu0
    %945 = vmatpush.bf16.msra.mxu0 %v564
    %946 = vmatpush.bf16.msra.mxu0 %v558
    %947 = vmatpush.bf16.msra.mxu0 %v552
    %948 = vmatpush.bf16.msra.mxu0 %v546
    %949 = vmatpush.bf16.msra.mxu0 %v540
    %950 = vmatpush.bf16.msra.mxu0 %v534
    %951 = vmatpush.bf16.msra.mxu0 %v528
    %952 = vmatpush.bf16.msra.mxu0 %v522
    %953 = vmatmul.bf16.gmra.mxu0 %v931
    %v954 = vpop.f32.mrf.mxu0
    %v955 = vadd.f32 %v942, %v954
    %v956 = vpop.f32.mrf.mxu0
    %957 = vdwg.mxu0
    %958 = vmatpush.bf16.msra.mxu0 %v517
    %959 = vmatpush.bf16.msra.mxu0 %v511
    %960 = vmatpush.bf16.msra.mxu0 %v505
    %961 = vmatpush.bf16.msra.mxu0 %v499
    %962 = vmatpush.bf16.msra.mxu0 %v493
    %963 = vmatpush.bf16.msra.mxu0 %v487
    %964 = vmatpush.bf16.msra.mxu0 %v481
    %965 = vmatpush.bf16.msra.mxu0 %v475
    %966 = vmatmul.bf16.gmra.mxu0 %v930
    %v967 = vpop.f32.mrf.mxu0
    %v968 = vadd.f32 0.0, %v967
    %v969 = vpop.f32.mrf.mxu0
    %970 = vdwg.mxu0
    %971 = vmatpush.bf16.msra.mxu0 %v565
    %972 = vmatpush.bf16.msra.mxu0 %v559
    %973 = vmatpush.bf16.msra.mxu0 %v553
    %974 = vmatpush.bf16.msra.mxu0 %v547
    %975 = vmatpush.bf16.msra.mxu0 %v541
    %976 = vmatpush.bf16.msra.mxu0 %v535
    %977 = vmatpush.bf16.msra.mxu0 %v529
    %978 = vmatpush.bf16.msra.mxu0 %v523
    %979 = vmatmul.bf16.gmra.mxu0 %v931
    %v980 = vpop.f32.mrf.mxu0
    %v981 = vadd.f32 %v968, %v980
    %v982 = vpop.f32.mrf.mxu0
    %983 = vdwg.mxu0
    %984 = vmatpush.bf16.msra.mxu0 %v518
    %985 = vmatpush.bf16.msra.mxu0 %v512
    %986 = vmatpush.bf16.msra.mxu0 %v506
    %987 = vmatpush.bf16.msra.mxu0 %v500
    %988 = vmatpush.bf16.msra.mxu0 %v494
    %989 = vmatpush.bf16.msra.mxu0 %v488
    %990 = vmatpush.bf16.msra.mxu0 %v482
    %991 = vmatpush.bf16.msra.mxu0 %v476
    %992 = vmatmul.bf16.gmra.mxu0 %v930
    %v993 = vpop.f32.mrf.mxu0
    %v994 = vadd.f32 0.0, %v993
    %v995 = vpop.f32.mrf.mxu0
    %996 = vdwg.mxu0
    %997 = vmatpush.bf16.msra.mxu0 %v566
    %998 = vmatpush.bf16.msra.mxu0 %v560
    %999 = vmatpush.bf16.msra.mxu0 %v554
    %1000 = vmatpush.bf16.msra.mxu0 %v548
    %1001 = vmatpush.bf16.msra.mxu0 %v542
    %1002 = vmatpush.bf16.msra.mxu0 %v536
    %1003 = vmatpush.bf16.msra.mxu0 %v530
    %1004 = vmatpush.bf16.msra.mxu0 %v524
    %1005 = vmatmul.bf16.gmra.mxu0 %v931
    %v1006 = vpop.f32.mrf.mxu0
    %v1007 = vadd.f32 %v994, %v1006
    %v1008 = vpop.f32.mrf.mxu0
    %1009 = vdwg.mxu0
    %1010 = vmatpush.bf16.msra.mxu0 %v519
    %1011 = vmatpush.bf16.msra.mxu0 %v513
    %1012 = vmatpush.bf16.msra.mxu0 %v507
    %1013 = vmatpush.bf16.msra.mxu0 %v501
    %1014 = vmatpush.bf16.msra.mxu0 %v495
    %1015 = vmatpush.bf16.msra.mxu0 %v489
    %1016 = vmatpush.bf16.msra.mxu0 %v483
    %1017 = vmatpush.bf16.msra.mxu0 %v477
    %1018 = vmatmul.bf16.gmra.mxu0 %v930
    %v1019 = vpop.f32.mrf.mxu0
    %v1020 = vadd.f32 0.0, %v1019
    %v1021 = vpop.f32.mrf.mxu0
    %1022 = vdwg.mxu0
    %1023 = vmatpush.bf16.msra.mxu0 %v567
    %1024 = vmatpush.bf16.msra.mxu0 %v561
    %1025 = vmatpush.bf16.msra.mxu0 %v555
    %1026 = vmatpush.bf16.msra.mxu0 %v549
    %1027 = vmatpush.bf16.msra.mxu0 %v543
    %1028 = vmatpush.bf16.msra.mxu0 %v537
    %1029 = vmatpush.bf16.msra.mxu0 %v531
    %1030 = vmatpush.bf16.msra.mxu0 %v525
    %1031 = vmatmul.bf16.gmra.mxu0 %v931
    %v1032 = vpop.f32.mrf.mxu0
    %v1033 = vadd.f32 %v1020, %v1032
    %v1034 = vpop.f32.mrf.mxu0
    %1035 = vdwg.mxu0
    %1036 = vmatpush.bf16.msra.mxu0 %v520
    %1037 = vmatpush.bf16.msra.mxu0 %v514
    %1038 = vmatpush.bf16.msra.mxu0 %v508
    %1039 = vmatpush.bf16.msra.mxu0 %v502
    %1040 = vmatpush.bf16.msra.mxu0 %v496
    %1041 = vmatpush.bf16.msra.mxu0 %v490
    %1042 = vmatpush.bf16.msra.mxu0 %v484
    %1043 = vmatpush.bf16.msra.mxu0 %v478
    %1044 = vmatmul.bf16.gmra.mxu0 %v930
    %v1045 = vpop.f32.mrf.mxu0
    %v1046 = vadd.f32 0.0, %v1045
    %v1047 = vpop.f32.mrf.mxu0
    %1048 = vdwg.mxu0
    %1049 = vmatpush.bf16.msra.mxu0 %v568
    %1050 = vmatpush.bf16.msra.mxu0 %v562
    %1051 = vmatpush.bf16.msra.mxu0 %v556
    %1052 = vmatpush.bf16.msra.mxu0 %v550
    %1053 = vmatpush.bf16.msra.mxu0 %v544
    %1054 = vmatpush.bf16.msra.mxu0 %v538
    %1055 = vmatpush.bf16.msra.mxu0 %v532
    %1056 = vmatpush.bf16.msra.mxu0 %v526
    %1057 = vmatmul.bf16.gmra.mxu0 %v931
    %v1058 = vpop.f32.mrf.mxu0
    %v1059 = vadd.f32 %v1046, %v1058
    %v1060 = vpop.f32.mrf.mxu0
    %1061 = vdwg.mxu0
    %1062 = vmatpush.bf16.msra.mxu0 %v521
    %1063 = vmatpush.bf16.msra.mxu0 %v515
    %1064 = vmatpush.bf16.msra.mxu0 %v509
    %1065 = vmatpush.bf16.msra.mxu0 %v503
    %1066 = vmatpush.bf16.msra.mxu0 %v497
    %1067 = vmatpush.bf16.msra.mxu0 %v491
    %1068 = vmatpush.bf16.msra.mxu0 %v485
    %1069 = vmatpush.bf16.msra.mxu0 %v479
    %1070 = vmatmul.bf16.gmra.mxu0 %v930
    %v1071 = vpop.f32.mrf.mxu0
    %v1072 = vadd.f32 0.0, %v1071
    %v1073 = vpop.f32.mrf.mxu0
    %1074 = vdwg.mxu0
    %1075 = vmatpush.bf16.msra.mxu0 %v569
    %1076 = vmatpush.bf16.msra.mxu0 %v563
    %1077 = vmatpush.bf16.msra.mxu0 %v557
    %1078 = vmatpush.bf16.msra.mxu0 %v551
    %1079 = vmatpush.bf16.msra.mxu0 %v545
    %1080 = vmatpush.bf16.msra.mxu0 %v539
    %1081 = vmatpush.bf16.msra.mxu0 %v533
    %1082 = vmatpush.bf16.msra.mxu0 %v527
    %1083 = vmatmul.bf16.gmra.mxu0 %v931
    %v1084 = vpop.f32.mrf.mxu0
    %v1085 = vadd.f32 %v1072, %v1084
    %v1086 = vpop.f32.mrf.mxu0
    %1087 = vdwg.mxu0
    %v1088 = vadd.f32 %v924, %v955
    %v1089 = vadd.f32 %v925, %v981
    %v1090 = vxor.u32 %v1088, 2147483648
    %v1091 = vxor.u32 %v1089, 2147483648
    %v1092 = vmul.f32 %v1090, 1.442695
    %v1093 = vpow.pop %v1092
    %v1094 = vmul.f32 %v1091, 1.442695
    %v1095 = vpow.pop %v1094
    %v1096 = vadd.f32 %v1093, 1.0
    %v1097 = vadd.f32 %v1095, 1.0
    %v1098 = vrcp.pop %v1096
    %v1099 = vmul.f32 %v1096, %v1098
    %v1100 = vsub.f32 1.0, %v1099
    %v1101 = vmul.f32 %v1098, %v1100
    %v1102 = vadd.f32 %v1098, %v1101
    %vm1103 = vweird.f32 %v1096
    %vm1104 = vweird.f32 %v1098
    %vm1105 = vmor %vm1103, %vm1104
    %v1106 = vsel %vm1105, %v1098, %v1102
    %v1107 = vand.u32 2147483647, %v1096
    %vm1108 = vcmp.eq.f32.partialorder %v1107, 8.507059e+37
    %v1109 = vand.u32 %v1096, 2147483648
    %v1110 = vor.u32 1.1754944e-38, %v1109
    %v1111 = vsel %vm1108, %v1110, %v1106
    %v1112 = vmul.f32 1.0, %v1111
    %v1113 = vrcp.pop %v1097
    %v1114 = vmul.f32 %v1097, %v1113
    %v1115 = vsub.f32 1.0, %v1114
    %v1116 = vmul.f32 %v1113, %v1115
    %v1117 = vadd.f32 %v1113, %v1116
    %vm1118 = vweird.f32 %v1097
    %vm1119 = vweird.f32 %v1113
    %vm1120 = vmor %vm1118, %vm1119
    %v1121 = vsel %vm1120, %v1113, %v1117
    %v1122 = vand.u32 2147483647, %v1097
    %vm1123 = vcmp.eq.f32.partialorder %v1122, 8.507059e+37
    %v1124 = vand.u32 %v1097, 2147483648
    %v1125 = vor.u32 1.1754944e-38, %v1124
    %v1126 = vsel %vm1123, %v1125, %v1121
    %v1127 = vmul.f32 1.0, %v1126
    %v1128 = vadd.f32 %v926, %v1007
    %v1129 = vadd.f32 %v927, %v1033
    %v1130 = vxor.u32 %v1128, 2147483648
    %v1131 = vxor.u32 %v1129, 2147483648
    %v1132 = vmul.f32 %v1130, 1.442695
    %v1133 = vpow.pop %v1132
    %v1134 = vmul.f32 %v1131, 1.442695
    %v1135 = vpow.pop %v1134
    %v1136 = vadd.f32 %v1133, 1.0
    %v1137 = vadd.f32 %v1135, 1.0
    %v1138 = vrcp.pop %v1136
    %v1139 = vmul.f32 %v1136, %v1138
    %v1140 = vsub.f32 1.0, %v1139
    %v1141 = vmul.f32 %v1138, %v1140
    %v1142 = vadd.f32 %v1138, %v1141
    %vm1143 = vweird.f32 %v1136
    %vm1144 = vweird.f32 %v1138
    %vm1145 = vmor %vm1143, %vm1144
    %v1146 = vsel %vm1145, %v1138, %v1142
    %v1147 = vand.u32 2147483647, %v1136
    %vm1148 = vcmp.eq.f32.partialorder %v1147, 8.507059e+37
    %v1149 = vand.u32 %v1136, 2147483648
    %v1150 = vor.u32 1.1754944e-38, %v1149
    %v1151 = vsel %vm1148, %v1150, %v1146
    %v1152 = vmul.f32 1.0, %v1151
    %v1153 = vrcp.pop %v1137
    %v1154 = vmul.f32 %v1137, %v1153
    %v1155 = vsub.f32 1.0, %v1154
    %v1156 = vmul.f32 %v1153, %v1155
    %v1157 = vadd.f32 %v1153, %v1156
    %vm1158 = vweird.f32 %v1137
    %vm1159 = vweird.f32 %v1153
    %vm1160 = vmor %vm1158, %vm1159
    %v1161 = vsel %vm1160, %v1153, %v1157
    %v1162 = vand.u32 2147483647, %v1137
    %vm1163 = vcmp.eq.f32.partialorder %v1162, 8.507059e+37
    %v1164 = vand.u32 %v1137, 2147483648
    %v1165 = vor.u32 1.1754944e-38, %v1164
    %v1166 = vsel %vm1163, %v1165, %v1161
    %v1167 = vmul.f32 1.0, %v1166
    %v1168 = vadd.f32 %v1059, %v903
    %v1169 = vadd.f32 %v1085, %v904
    %v1170 = vmul.f32 %v1112, %v1168
    %v1171 = vmul.f32 %v1127, %v1169
    %v1172 = vadd.f32 %v928, %v1170
    %v1173 = vadd.f32 %v929, %v1171
    %v1174 = vtanh.pop %v1172
    %v1175 = vtanh.pop %v1173
    %v1176 = vsub.f32 1.0, %v1152
    %v1177 = vsub.f32 1.0, %v1167
    %v1178 = vmul.f32 %v1176, %v1174
    %v1179 = vmul.f32 %v1177, %v1175
    %v1180 = vmul.f32 %v1152, %v921
    %v1181 = vmul.f32 %v1167, %v922
    %v1182 = vadd.f32 %v1178, %v1180
    %v1183 = vadd.f32 %v1179, %v1181
    %s1184 = scalar_lea.vmem [#allocation2], 96
    %v1185 = vld [vmem:[%s1184] sm:$0xff]
    %v1186 = vld [vmem:[%s1184 + $0x8] sm:$0xff]
    %v1187 = vld [vmem:[%s1184 + $0x10] sm:$0xff]
    %v1188 = vld [vmem:[%s1184 + $0x18] sm:$0xff]
    %v1189 = vld [vmem:[%s1184 + $0x20] sm:$0xff]
    %v1190 = vld [vmem:[%s1184 + $0x28] sm:$0xff]
    %v1191 = vpack.c.bf16 %v1182, %v1182
    %v1192 = vpack.c.bf16 %v1183, %v1183
    %1193 = vmatpush.bf16.msra.mxu0 %v516
    %1194 = vmatpush.bf16.msra.mxu0 %v510
    %1195 = vmatpush.bf16.msra.mxu0 %v504
    %1196 = vmatpush.bf16.msra.mxu0 %v498
    %1197 = vmatpush.bf16.msra.mxu0 %v492
    %1198 = vmatpush.bf16.msra.mxu0 %v486
    %1199 = vmatpush.bf16.msra.mxu0 %v480
    %1200 = vmatpush.bf16.msra.mxu0 %v474
    %1201 = vmatmul.bf16.gmra.mxu0 %v1191
    %v1202 = vpop.f32.mrf.mxu0
    %v1203 = vadd.f32 0.0, %v1202
    %v1204 = vpop.f32.mrf.mxu0
    %1205 = vdwg.mxu0
    %1206 = vmatpush.bf16.msra.mxu0 %v564
    %1207 = vmatpush.bf16.msra.mxu0 %v558
    %1208 = vmatpush.bf16.msra.mxu0 %v552
    %1209 = vmatpush.bf16.msra.mxu0 %v546
    %1210 = vmatpush.bf16.msra.mxu0 %v540
    %1211 = vmatpush.bf16.msra.mxu0 %v534
    %1212 = vmatpush.bf16.msra.mxu0 %v528
    %1213 = vmatpush.bf16.msra.mxu0 %v522
    %1214 = vmatmul.bf16.gmra.mxu0 %v1192
    %v1215 = vpop.f32.mrf.mxu0
    %v1216 = vadd.f32 %v1203, %v1215
    %v1217 = vpop.f32.mrf.mxu0
    %1218 = vdwg.mxu0
    %1219 = vmatpush.bf16.msra.mxu0 %v517
    %1220 = vmatpush.bf16.msra.mxu0 %v511
    %1221 = vmatpush.bf16.msra.mxu0 %v505
    %1222 = vmatpush.bf16.msra.mxu0 %v499
    %1223 = vmatpush.bf16.msra.mxu0 %v493
    %1224 = vmatpush.bf16.msra.mxu0 %v487
    %1225 = vmatpush.bf16.msra.mxu0 %v481
    %1226 = vmatpush.bf16.msra.mxu0 %v475
    %1227 = vmatmul.bf16.gmra.mxu0 %v1191
    %v1228 = vpop.f32.mrf.mxu0
    %v1229 = vadd.f32 0.0, %v1228
    %v1230 = vpop.f32.mrf.mxu0
    %1231 = vdwg.mxu0
    %1232 = vmatpush.bf16.msra.mxu0 %v565
    %1233 = vmatpush.bf16.msra.mxu0 %v559
    %1234 = vmatpush.bf16.msra.mxu0 %v553
    %1235 = vmatpush.bf16.msra.mxu0 %v547
    %1236 = vmatpush.bf16.msra.mxu0 %v541
    %1237 = vmatpush.bf16.msra.mxu0 %v535
    %1238 = vmatpush.bf16.msra.mxu0 %v529
    %1239 = vmatpush.bf16.msra.mxu0 %v523
    %1240 = vmatmul.bf16.gmra.mxu0 %v1192
    %v1241 = vpop.f32.mrf.mxu0
    %v1242 = vadd.f32 %v1229, %v1241
    %v1243 = vpop.f32.mrf.mxu0
    %1244 = vdwg.mxu0
    %1245 = vmatpush.bf16.msra.mxu0 %v518
    %1246 = vmatpush.bf16.msra.mxu0 %v512
    %1247 = vmatpush.bf16.msra.mxu0 %v506
    %1248 = vmatpush.bf16.msra.mxu0 %v500
    %1249 = vmatpush.bf16.msra.mxu0 %v494
    %1250 = vmatpush.bf16.msra.mxu0 %v488
    %1251 = vmatpush.bf16.msra.mxu0 %v482
    %1252 = vmatpush.bf16.msra.mxu0 %v476
    %1253 = vmatmul.bf16.gmra.mxu0 %v1191
    %v1254 = vpop.f32.mrf.mxu0
    %v1255 = vadd.f32 0.0, %v1254
    %v1256 = vpop.f32.mrf.mxu0
    %1257 = vdwg.mxu0
    %1258 = vmatpush.bf16.msra.mxu0 %v566
    %1259 = vmatpush.bf16.msra.mxu0 %v560
    %1260 = vmatpush.bf16.msra.mxu0 %v554
    %1261 = vmatpush.bf16.msra.mxu0 %v548
    %1262 = vmatpush.bf16.msra.mxu0 %v542
    %1263 = vmatpush.bf16.msra.mxu0 %v536
    %1264 = vmatpush.bf16.msra.mxu0 %v530
    %1265 = vmatpush.bf16.msra.mxu0 %v524
    %1266 = vmatmul.bf16.gmra.mxu0 %v1192
    %v1267 = vpop.f32.mrf.mxu0
    %v1268 = vadd.f32 %v1255, %v1267
    %v1269 = vpop.f32.mrf.mxu0
    %1270 = vdwg.mxu0
    %1271 = vmatpush.bf16.msra.mxu0 %v519
    %1272 = vmatpush.bf16.msra.mxu0 %v513
    %1273 = vmatpush.bf16.msra.mxu0 %v507
    %1274 = vmatpush.bf16.msra.mxu0 %v501
    %1275 = vmatpush.bf16.msra.mxu0 %v495
    %1276 = vmatpush.bf16.msra.mxu0 %v489
    %1277 = vmatpush.bf16.msra.mxu0 %v483
    %1278 = vmatpush.bf16.msra.mxu0 %v477
    %1279 = vmatmul.bf16.gmra.mxu0 %v1191
    %v1280 = vpop.f32.mrf.mxu0
    %v1281 = vadd.f32 0.0, %v1280
    %v1282 = vpop.f32.mrf.mxu0
    %1283 = vdwg.mxu0
    %1284 = vmatpush.bf16.msra.mxu0 %v567
    %1285 = vmatpush.bf16.msra.mxu0 %v561
    %1286 = vmatpush.bf16.msra.mxu0 %v555
    %1287 = vmatpush.bf16.msra.mxu0 %v549
    %1288 = vmatpush.bf16.msra.mxu0 %v543
    %1289 = vmatpush.bf16.msra.mxu0 %v537
    %1290 = vmatpush.bf16.msra.mxu0 %v531
    %1291 = vmatpush.bf16.msra.mxu0 %v525
    %1292 = vmatmul.bf16.gmra.mxu0 %v1192
    %v1293 = vpop.f32.mrf.mxu0
    %v1294 = vadd.f32 %v1281, %v1293
    %v1295 = vpop.f32.mrf.mxu0
    %1296 = vdwg.mxu0
    %1297 = vmatpush.bf16.msra.mxu0 %v520
    %1298 = vmatpush.bf16.msra.mxu0 %v514
    %1299 = vmatpush.bf16.msra.mxu0 %v508
    %1300 = vmatpush.bf16.msra.mxu0 %v502
    %1301 = vmatpush.bf16.msra.mxu0 %v496
    %1302 = vmatpush.bf16.msra.mxu0 %v490
    %1303 = vmatpush.bf16.msra.mxu0 %v484
    %1304 = vmatpush.bf16.msra.mxu0 %v478
    %1305 = vmatmul.bf16.gmra.mxu0 %v1191
    %v1306 = vpop.f32.mrf.mxu0
    %v1307 = vadd.f32 0.0, %v1306
    %v1308 = vpop.f32.mrf.mxu0
    %1309 = vdwg.mxu0
    %1310 = vmatpush.bf16.msra.mxu0 %v568
    %1311 = vmatpush.bf16.msra.mxu0 %v562
    %1312 = vmatpush.bf16.msra.mxu0 %v556
    %1313 = vmatpush.bf16.msra.mxu0 %v550
    %1314 = vmatpush.bf16.msra.mxu0 %v544
    %1315 = vmatpush.bf16.msra.mxu0 %v538
    %1316 = vmatpush.bf16.msra.mxu0 %v532
    %1317 = vmatpush.bf16.msra.mxu0 %v526
    %1318 = vmatmul.bf16.gmra.mxu0 %v1192
    %v1319 = vpop.f32.mrf.mxu0
    %v1320 = vadd.f32 %v1307, %v1319
    %v1321 = vpop.f32.mrf.mxu0
    %1322 = vdwg.mxu0
    %1323 = vmatpush.bf16.msra.mxu0 %v521
    %1324 = vmatpush.bf16.msra.mxu0 %v515
    %1325 = vmatpush.bf16.msra.mxu0 %v509
    %1326 = vmatpush.bf16.msra.mxu0 %v503
    %1327 = vmatpush.bf16.msra.mxu0 %v497
    %1328 = vmatpush.bf16.msra.mxu0 %v491
    %1329 = vmatpush.bf16.msra.mxu0 %v485
    %1330 = vmatpush.bf16.msra.mxu0 %v479
    %1331 = vmatmul.bf16.gmra.mxu0 %v1191
    %v1332 = vpop.f32.mrf.mxu0
    %v1333 = vadd.f32 0.0, %v1332
    %v1334 = vpop.f32.mrf.mxu0
    %1335 = vdwg.mxu0
    %1336 = vmatpush.bf16.msra.mxu0 %v569
    %1337 = vmatpush.bf16.msra.mxu0 %v563
    %1338 = vmatpush.bf16.msra.mxu0 %v557
    %1339 = vmatpush.bf16.msra.mxu0 %v551
    %1340 = vmatpush.bf16.msra.mxu0 %v545
    %1341 = vmatpush.bf16.msra.mxu0 %v539
    %1342 = vmatpush.bf16.msra.mxu0 %v533
    %1343 = vmatpush.bf16.msra.mxu0 %v527
    %1344 = vmatmul.bf16.gmra.mxu0 %v1192
    %v1345 = vpop.f32.mrf.mxu0
    %v1346 = vadd.f32 %v1333, %v1345
    %v1347 = vpop.f32.mrf.mxu0
    %1348 = vdwg.mxu0
    %v1349 = vadd.f32 %v1185, %v1216
    %v1350 = vadd.f32 %v1186, %v1242
    %v1351 = vxor.u32 %v1349, 2147483648
    %v1352 = vxor.u32 %v1350, 2147483648
    %v1353 = vmul.f32 %v1351, 1.442695
    %v1354 = vpow.pop %v1353
    %v1355 = vmul.f32 %v1352, 1.442695
    %v1356 = vpow.pop %v1355
    %v1357 = vadd.f32 %v1354, 1.0
    %v1358 = vadd.f32 %v1356, 1.0
    %v1359 = vrcp.pop %v1357
    %v1360 = vmul.f32 %v1357, %v1359
    %v1361 = vsub.f32 1.0, %v1360
    %v1362 = vmul.f32 %v1359, %v1361
    %v1363 = vadd.f32 %v1359, %v1362
    %vm1364 = vweird.f32 %v1357
    %vm1365 = vweird.f32 %v1359
    %vm1366 = vmor %vm1364, %vm1365
    %v1367 = vsel %vm1366, %v1359, %v1363
    %v1368 = vand.u32 2147483647, %v1357
    %vm1369 = vcmp.eq.f32.partialorder %v1368, 8.507059e+37
    %v1370 = vand.u32 %v1357, 2147483648
    %v1371 = vor.u32 1.1754944e-38, %v1370
    %v1372 = vsel %vm1369, %v1371, %v1367
    %v1373 = vmul.f32 1.0, %v1372
    %v1374 = vrcp.pop %v1358
    %v1375 = vmul.f32 %v1358, %v1374
    %v1376 = vsub.f32 1.0, %v1375
    %v1377 = vmul.f32 %v1374, %v1376
    %v1378 = vadd.f32 %v1374, %v1377
    %vm1379 = vweird.f32 %v1358
    %vm1380 = vweird.f32 %v1374
    %vm1381 = vmor %vm1379, %vm1380
    %v1382 = vsel %vm1381, %v1374, %v1378
    %v1383 = vand.u32 2147483647, %v1358
    %vm1384 = vcmp.eq.f32.partialorder %v1383, 8.507059e+37
    %v1385 = vand.u32 %v1358, 2147483648
    %v1386 = vor.u32 1.1754944e-38, %v1385
    %v1387 = vsel %vm1384, %v1386, %v1382
    %v1388 = vmul.f32 1.0, %v1387
    %v1389 = vadd.f32 %v1187, %v1268
    %v1390 = vadd.f32 %v1188, %v1294
    %v1391 = vxor.u32 %v1389, 2147483648
    %v1392 = vxor.u32 %v1390, 2147483648
    %v1393 = vmul.f32 %v1391, 1.442695
    %v1394 = vpow.pop %v1393
    %v1395 = vmul.f32 %v1392, 1.442695
    %v1396 = vpow.pop %v1395
    %v1397 = vadd.f32 %v1394, 1.0
    %v1398 = vadd.f32 %v1396, 1.0
    %v1399 = vrcp.pop %v1397
    %v1400 = vmul.f32 %v1397, %v1399
    %v1401 = vsub.f32 1.0, %v1400
    %v1402 = vmul.f32 %v1399, %v1401
    %v1403 = vadd.f32 %v1399, %v1402
    %vm1404 = vweird.f32 %v1397
    %vm1405 = vweird.f32 %v1399
    %vm1406 = vmor %vm1404, %vm1405
    %v1407 = vsel %vm1406, %v1399, %v1403
    %v1408 = vand.u32 2147483647, %v1397
    %vm1409 = vcmp.eq.f32.partialorder %v1408, 8.507059e+37
    %v1410 = vand.u32 %v1397, 2147483648
    %v1411 = vor.u32 1.1754944e-38, %v1410
    %v1412 = vsel %vm1409, %v1411, %v1407
    %v1413 = vmul.f32 1.0, %v1412
    %v1414 = vrcp.pop %v1398
    %v1415 = vmul.f32 %v1398, %v1414
    %v1416 = vsub.f32 1.0, %v1415
    %v1417 = vmul.f32 %v1414, %v1416
    %v1418 = vadd.f32 %v1414, %v1417
    %vm1419 = vweird.f32 %v1398
    %vm1420 = vweird.f32 %v1414
    %vm1421 = vmor %vm1419, %vm1420
    %v1422 = vsel %vm1421, %v1414, %v1418
    %v1423 = vand.u32 2147483647, %v1398
    %vm1424 = vcmp.eq.f32.partialorder %v1423, 8.507059e+37
    %v1425 = vand.u32 %v1398, 2147483648
    %v1426 = vor.u32 1.1754944e-38, %v1425
    %v1427 = vsel %vm1424, %v1426, %v1422
    %v1428 = vmul.f32 1.0, %v1427
    %v1429 = vadd.f32 %v1320, %v903
    %v1430 = vadd.f32 %v1346, %v904
    %v1431 = vmul.f32 %v1373, %v1429
    %v1432 = vmul.f32 %v1388, %v1430
    %v1433 = vadd.f32 %v1189, %v1431
    %v1434 = vadd.f32 %v1190, %v1432
    %v1435 = vtanh.pop %v1433
    %v1436 = vtanh.pop %v1434
    %v1437 = vsub.f32 1.0, %v1413
    %v1438 = vsub.f32 1.0, %v1428
    %v1439 = vmul.f32 %v1437, %v1435
    %v1440 = vmul.f32 %v1438, %v1436
    %v1441 = vmul.f32 %v1413, %v1182
    %v1442 = vmul.f32 %v1428, %v1183
    %v1443 = vadd.f32 %v1439, %v1441
    %v1444 = vadd.f32 %v1440, %v1442
    %s1445 = scalar_lea.vmem [#allocation2], 144
    %v1446 = vld [vmem:[%s1445] sm:$0xff]
    %v1447 = vld [vmem:[%s1445 + $0x8] sm:$0xff]
    %v1448 = vld [vmem:[%s1445 + $0x10] sm:$0xff]
    %v1449 = vld [vmem:[%s1445 + $0x18] sm:$0xff]
    %v1450 = vld [vmem:[%s1445 + $0x20] sm:$0xff]
    %v1451 = vld [vmem:[%s1445 + $0x28] sm:$0xff]
    %v1452 = vpack.c.bf16 %v1443, %v1443
    %v1453 = vpack.c.bf16 %v1444, %v1444
    %1454 = vmatpush.bf16.msra.mxu0 %v516
    %1455 = vmatpush.bf16.msra.mxu0 %v510
    %1456 = vmatpush.bf16.msra.mxu0 %v504
    %1457 = vmatpush.bf16.msra.mxu0 %v498
    %1458 = vmatpush.bf16.msra.mxu0 %v492
    %1459 = vmatpush.bf16.msra.mxu0 %v486
    %1460 = vmatpush.bf16.msra.mxu0 %v480
    %1461 = vmatpush.bf16.msra.mxu0 %v474
    %1462 = vmatmul.bf16.gmra.mxu0 %v1452
    %v1463 = vpop.f32.mrf.mxu0
    %v1464 = vadd.f32 0.0, %v1463
    %v1465 = vpop.f32.mrf.mxu0
    %1466 = vdwg.mxu0
    %1467 = vmatpush.bf16.msra.mxu0 %v564
    %1468 = vmatpush.bf16.msra.mxu0 %v558
    %1469 = vmatpush.bf16.msra.mxu0 %v552
    %1470 = vmatpush.bf16.msra.mxu0 %v546
    %1471 = vmatpush.bf16.msra.mxu0 %v540
    %1472 = vmatpush.bf16.msra.mxu0 %v534
    %1473 = vmatpush.bf16.msra.mxu0 %v528
    %1474 = vmatpush.bf16.msra.mxu0 %v522
    %1475 = vmatmul.bf16.gmra.mxu0 %v1453
    %v1476 = vpop.f32.mrf.mxu0
    %v1477 = vadd.f32 %v1464, %v1476
    %v1478 = vpop.f32.mrf.mxu0
    %1479 = vdwg.mxu0
    %1480 = vmatpush.bf16.msra.mxu0 %v517
    %1481 = vmatpush.bf16.msra.mxu0 %v511
    %1482 = vmatpush.bf16.msra.mxu0 %v505
    %1483 = vmatpush.bf16.msra.mxu0 %v499
    %1484 = vmatpush.bf16.msra.mxu0 %v493
    %1485 = vmatpush.bf16.msra.mxu0 %v487
    %1486 = vmatpush.bf16.msra.mxu0 %v481
    %1487 = vmatpush.bf16.msra.mxu0 %v475
    %1488 = vmatmul.bf16.gmra.mxu0 %v1452
    %v1489 = vpop.f32.mrf.mxu0
    %v1490 = vadd.f32 0.0, %v1489
    %v1491 = vpop.f32.mrf.mxu0
    %1492 = vdwg.mxu0
    %1493 = vmatpush.bf16.msra.mxu0 %v565
    %1494 = vmatpush.bf16.msra.mxu0 %v559
    %1495 = vmatpush.bf16.msra.mxu0 %v553
    %1496 = vmatpush.bf16.msra.mxu0 %v547
    %1497 = vmatpush.bf16.msra.mxu0 %v541
    %1498 = vmatpush.bf16.msra.mxu0 %v535
    %1499 = vmatpush.bf16.msra.mxu0 %v529
    %1500 = vmatpush.bf16.msra.mxu0 %v523
    %1501 = vmatmul.bf16.gmra.mxu0 %v1453
    %v1502 = vpop.f32.mrf.mxu0
    %v1503 = vadd.f32 %v1490, %v1502
    %v1504 = vpop.f32.mrf.mxu0
    %1505 = vdwg.mxu0
    %1506 = vmatpush.bf16.msra.mxu0 %v518
    %1507 = vmatpush.bf16.msra.mxu0 %v512
    %1508 = vmatpush.bf16.msra.mxu0 %v506
    %1509 = vmatpush.bf16.msra.mxu0 %v500
    %1510 = vmatpush.bf16.msra.mxu0 %v494
    %1511 = vmatpush.bf16.msra.mxu0 %v488
    %1512 = vmatpush.bf16.msra.mxu0 %v482
    %1513 = vmatpush.bf16.msra.mxu0 %v476
    %1514 = vmatmul.bf16.gmra.mxu0 %v1452
    %v1515 = vpop.f32.mrf.mxu0
    %v1516 = vadd.f32 0.0, %v1515
    %v1517 = vpop.f32.mrf.mxu0
    %1518 = vdwg.mxu0
    %1519 = vmatpush.bf16.msra.mxu0 %v566
    %1520 = vmatpush.bf16.msra.mxu0 %v560
    %1521 = vmatpush.bf16.msra.mxu0 %v554
    %1522 = vmatpush.bf16.msra.mxu0 %v548
    %1523 = vmatpush.bf16.msra.mxu0 %v542
    %1524 = vmatpush.bf16.msra.mxu0 %v536
    %1525 = vmatpush.bf16.msra.mxu0 %v530
    %1526 = vmatpush.bf16.msra.mxu0 %v524
    %1527 = vmatmul.bf16.gmra.mxu0 %v1453
    %v1528 = vpop.f32.mrf.mxu0
    %v1529 = vadd.f32 %v1516, %v1528
    %v1530 = vpop.f32.mrf.mxu0
    %1531 = vdwg.mxu0
    %1532 = vmatpush.bf16.msra.mxu0 %v519
    %1533 = vmatpush.bf16.msra.mxu0 %v513
    %1534 = vmatpush.bf16.msra.mxu0 %v507
    %1535 = vmatpush.bf16.msra.mxu0 %v501
    %1536 = vmatpush.bf16.msra.mxu0 %v495
    %1537 = vmatpush.bf16.msra.mxu0 %v489
    %1538 = vmatpush.bf16.msra.mxu0 %v483
    %1539 = vmatpush.bf16.msra.mxu0 %v477
    %1540 = vmatmul.bf16.gmra.mxu0 %v1452
    %v1541 = vpop.f32.mrf.mxu0
    %v1542 = vadd.f32 0.0, %v1541
    %v1543 = vpop.f32.mrf.mxu0
    %1544 = vdwg.mxu0
    %1545 = vmatpush.bf16.msra.mxu0 %v567
    %1546 = vmatpush.bf16.msra.mxu0 %v561
    %1547 = vmatpush.bf16.msra.mxu0 %v555
    %1548 = vmatpush.bf16.msra.mxu0 %v549
    %1549 = vmatpush.bf16.msra.mxu0 %v543
    %1550 = vmatpush.bf16.msra.mxu0 %v537
    %1551 = vmatpush.bf16.msra.mxu0 %v531
    %1552 = vmatpush.bf16.msra.mxu0 %v525
    %1553 = vmatmul.bf16.gmra.mxu0 %v1453
    %v1554 = vpop.f32.mrf.mxu0
    %v1555 = vadd.f32 %v1542, %v1554
    %v1556 = vpop.f32.mrf.mxu0
    %1557 = vdwg.mxu0
    %1558 = vmatpush.bf16.msra.mxu0 %v520
    %1559 = vmatpush.bf16.msra.mxu0 %v514
    %1560 = vmatpush.bf16.msra.mxu0 %v508
    %1561 = vmatpush.bf16.msra.mxu0 %v502
    %1562 = vmatpush.bf16.msra.mxu0 %v496
    %1563 = vmatpush.bf16.msra.mxu0 %v490
    %1564 = vmatpush.bf16.msra.mxu0 %v484
    %1565 = vmatpush.bf16.msra.mxu0 %v478
    %1566 = vmatmul.bf16.gmra.mxu0 %v1452
    %v1567 = vpop.f32.mrf.mxu0
    %v1568 = vadd.f32 0.0, %v1567
    %v1569 = vpop.f32.mrf.mxu0
    %1570 = vdwg.mxu0
    %1571 = vmatpush.bf16.msra.mxu0 %v568
    %1572 = vmatpush.bf16.msra.mxu0 %v562
    %1573 = vmatpush.bf16.msra.mxu0 %v556
    %1574 = vmatpush.bf16.msra.mxu0 %v550
    %1575 = vmatpush.bf16.msra.mxu0 %v544
    %1576 = vmatpush.bf16.msra.mxu0 %v538
    %1577 = vmatpush.bf16.msra.mxu0 %v532
    %1578 = vmatpush.bf16.msra.mxu0 %v526
    %1579 = vmatmul.bf16.gmra.mxu0 %v1453
    %v1580 = vpop.f32.mrf.mxu0
    %v1581 = vadd.f32 %v1568, %v1580
    %v1582 = vpop.f32.mrf.mxu0
    %1583 = vdwg.mxu0
    %1584 = vmatpush.bf16.msra.mxu0 %v521
    %1585 = vmatpush.bf16.msra.mxu0 %v515
    %1586 = vmatpush.bf16.msra.mxu0 %v509
    %1587 = vmatpush.bf16.msra.mxu0 %v503
    %1588 = vmatpush.bf16.msra.mxu0 %v497
    %1589 = vmatpush.bf16.msra.mxu0 %v491
    %1590 = vmatpush.bf16.msra.mxu0 %v485
    %1591 = vmatpush.bf16.msra.mxu0 %v479
    %1592 = vmatmul.bf16.gmra.mxu0 %v1452
    %v1593 = vpop.f32.mrf.mxu0
    %v1594 = vadd.f32 0.0, %v1593
    %v1595 = vpop.f32.mrf.mxu0
    %1596 = vdwg.mxu0
    %1597 = vmatpush.bf16.msra.mxu0 %v569
    %1598 = vmatpush.bf16.msra.mxu0 %v563
    %1599 = vmatpush.bf16.msra.mxu0 %v557
    %1600 = vmatpush.bf16.msra.mxu0 %v551
    %1601 = vmatpush.bf16.msra.mxu0 %v545
    %1602 = vmatpush.bf16.msra.mxu0 %v539
    %1603 = vmatpush.bf16.msra.mxu0 %v533
    %1604 = vmatpush.bf16.msra.mxu0 %v527
    %1605 = vmatmul.bf16.gmra.mxu0 %v1453
    %v1606 = vpop.f32.mrf.mxu0
    %v1607 = vadd.f32 %v1594, %v1606
    %v1608 = vpop.f32.mrf.mxu0
    %1609 = vdwg.mxu0
    %v1610 = vadd.f32 %v1446, %v1477
    %v1611 = vadd.f32 %v1447, %v1503
    %v1612 = vxor.u32 %v1610, 2147483648
    %v1613 = vxor.u32 %v1611, 2147483648
    %v1614 = vmul.f32 %v1612, 1.442695
    %v1615 = vpow.pop %v1614
    %v1616 = vmul.f32 %v1613, 1.442695
    %v1617 = vpow.pop %v1616
    %v1618 = vadd.f32 %v1615, 1.0
    %v1619 = vadd.f32 %v1617, 1.0
    %v1620 = vrcp.pop %v1618
    %v1621 = vmul.f32 %v1618, %v1620
    %v1622 = vsub.f32 1.0, %v1621
    %v1623 = vmul.f32 %v1620, %v1622
    %v1624 = vadd.f32 %v1620, %v1623
    %vm1625 = vweird.f32 %v1618
    %vm1626 = vweird.f32 %v1620
    %vm1627 = vmor %vm1625, %vm1626
    %v1628 = vsel %vm1627, %v1620, %v1624
    %v1629 = vand.u32 2147483647, %v1618
    %vm1630 = vcmp.eq.f32.partialorder %v1629, 8.507059e+37
    %v1631 = vand.u32 %v1618, 2147483648
    %v1632 = vor.u32 1.1754944e-38, %v1631
    %v1633 = vsel %vm1630, %v1632, %v1628
    %v1634 = vmul.f32 1.0, %v1633
    %v1635 = vrcp.pop %v1619
    %v1636 = vmul.f32 %v1619, %v1635
    %v1637 = vsub.f32 1.0, %v1636
    %v1638 = vmul.f32 %v1635, %v1637
    %v1639 = vadd.f32 %v1635, %v1638
    %vm1640 = vweird.f32 %v1619
    %vm1641 = vweird.f32 %v1635
    %vm1642 = vmor %vm1640, %vm1641
    %v1643 = vsel %vm1642, %v1635, %v1639
    %v1644 = vand.u32 2147483647, %v1619
    %vm1645 = vcmp.eq.f32.partialorder %v1644, 8.507059e+37
    %v1646 = vand.u32 %v1619, 2147483648
    %v1647 = vor.u32 1.1754944e-38, %v1646
    %v1648 = vsel %vm1645, %v1647, %v1643
    %v1649 = vmul.f32 1.0, %v1648
    %v1650 = vadd.f32 %v1448, %v1529
    %v1651 = vadd.f32 %v1449, %v1555
    %v1652 = vxor.u32 %v1650, 2147483648
    %v1653 = vxor.u32 %v1651, 2147483648
    %v1654 = vmul.f32 %v1652, 1.442695
    %v1655 = vpow.pop %v1654
    %v1656 = vmul.f32 %v1653, 1.442695
    %v1657 = vpow.pop %v1656
    %v1658 = vadd.f32 %v1655, 1.0
    %v1659 = vadd.f32 %v1657, 1.0
    %v1660 = vrcp.pop %v1658
    %v1661 = vmul.f32 %v1658, %v1660
    %v1662 = vsub.f32 1.0, %v1661
    %v1663 = vmul.f32 %v1660, %v1662
    %v1664 = vadd.f32 %v1660, %v1663
    %vm1665 = vweird.f32 %v1658
    %vm1666 = vweird.f32 %v1660
    %vm1667 = vmor %vm1665, %vm1666
    %v1668 = vsel %vm1667, %v1660, %v1664
    %v1669 = vand.u32 2147483647, %v1658
    %vm1670 = vcmp.eq.f32.partialorder %v1669, 8.507059e+37
    %v1671 = vand.u32 %v1658, 2147483648
    %v1672 = vor.u32 1.1754944e-38, %v1671
    %v1673 = vsel %vm1670, %v1672, %v1668
    %v1674 = vmul.f32 1.0, %v1673
    %v1675 = vrcp.pop %v1659
    %v1676 = vmul.f32 %v1659, %v1675
    %v1677 = vsub.f32 1.0, %v1676
    %v1678 = vmul.f32 %v1675, %v1677
    %v1679 = vadd.f32 %v1675, %v1678
    %vm1680 = vweird.f32 %v1659
    %vm1681 = vweird.f32 %v1675
    %vm1682 = vmor %vm1680, %vm1681
    %v1683 = vsel %vm1682, %v1675, %v1679
    %v1684 = vand.u32 2147483647, %v1659
    %vm1685 = vcmp.eq.f32.partialorder %v1684, 8.507059e+37
    %v1686 = vand.u32 %v1659, 2147483648
    %v1687 = vor.u32 1.1754944e-38, %v1686
    %v1688 = vsel %vm1685, %v1687, %v1683
    %v1689 = vmul.f32 1.0, %v1688
    %v1690 = vadd.f32 %v1581, %v903
    %v1691 = vadd.f32 %v1607, %v904
    %v1692 = vmul.f32 %v1634, %v1690
    %v1693 = vmul.f32 %v1649, %v1691
    %v1694 = vadd.f32 %v1450, %v1692
    %v1695 = vadd.f32 %v1451, %v1693
    %v1696 = vtanh.pop %v1694
    %v1697 = vtanh.pop %v1695
    %v1698 = vsub.f32 1.0, %v1674
    %v1699 = vsub.f32 1.0, %v1689
    %v1700 = vmul.f32 %v1698, %v1696
    %v1701 = vmul.f32 %v1699, %v1697
    %v1702 = vmul.f32 %v1674, %v1443
    %v1703 = vmul.f32 %v1689, %v1444
    %v1704 = vadd.f32 %v1700, %v1702
    %v1705 = vadd.f32 %v1701, %v1703
    %s1706 = scalar_lea.vmem [#allocation2], 192
    %v1707 = vld [vmem:[%s1706] sm:$0xff]
    %v1708 = vld [vmem:[%s1706 + $0x8] sm:$0xff]
    %v1709 = vld [vmem:[%s1706 + $0x10] sm:$0xff]
    %v1710 = vld [vmem:[%s1706 + $0x18] sm:$0xff]
    %v1711 = vld [vmem:[%s1706 + $0x20] sm:$0xff]
    %v1712 = vld [vmem:[%s1706 + $0x28] sm:$0xff]
    %v1713 = vpack.c.bf16 %v1704, %v1704
    %v1714 = vpack.c.bf16 %v1705, %v1705
    %1715 = vmatpush.bf16.msra.mxu0 %v516
    %1716 = vmatpush.bf16.msra.mxu0 %v510
    %1717 = vmatpush.bf16.msra.mxu0 %v504
    %1718 = vmatpush.bf16.msra.mxu0 %v498
    %1719 = vmatpush.bf16.msra.mxu0 %v492
    %1720 = vmatpush.bf16.msra.mxu0 %v486
    %1721 = vmatpush.bf16.msra.mxu0 %v480
    %1722 = vmatpush.bf16.msra.mxu0 %v474
    %1723 = vmatmul.bf16.gmra.mxu0 %v1713
    %v1724 = vpop.f32.mrf.mxu0
    %v1725 = vadd.f32 0.0, %v1724
    %v1726 = vpop.f32.mrf.mxu0
    %1727 = vdwg.mxu0
    %1728 = vmatpush.bf16.msra.mxu0 %v564
    %1729 = vmatpush.bf16.msra.mxu0 %v558
    %1730 = vmatpush.bf16.msra.mxu0 %v552
    %1731 = vmatpush.bf16.msra.mxu0 %v546
    %1732 = vmatpush.bf16.msra.mxu0 %v540
    %1733 = vmatpush.bf16.msra.mxu0 %v534
    %1734 = vmatpush.bf16.msra.mxu0 %v528
    %1735 = vmatpush.bf16.msra.mxu0 %v522
    %1736 = vmatmul.bf16.gmra.mxu0 %v1714
    %v1737 = vpop.f32.mrf.mxu0
    %v1738 = vadd.f32 %v1725, %v1737
    %v1739 = vpop.f32.mrf.mxu0
    %1740 = vdwg.mxu0
    %1741 = vmatpush.bf16.msra.mxu0 %v517
    %1742 = vmatpush.bf16.msra.mxu0 %v511
    %1743 = vmatpush.bf16.msra.mxu0 %v505
    %1744 = vmatpush.bf16.msra.mxu0 %v499
    %1745 = vmatpush.bf16.msra.mxu0 %v493
    %1746 = vmatpush.bf16.msra.mxu0 %v487
    %1747 = vmatpush.bf16.msra.mxu0 %v481
    %1748 = vmatpush.bf16.msra.mxu0 %v475
    %1749 = vmatmul.bf16.gmra.mxu0 %v1713
    %v1750 = vpop.f32.mrf.mxu0
    %v1751 = vadd.f32 0.0, %v1750
    %v1752 = vpop.f32.mrf.mxu0
    %1753 = vdwg.mxu0
    %1754 = vmatpush.bf16.msra.mxu0 %v565
    %1755 = vmatpush.bf16.msra.mxu0 %v559
    %1756 = vmatpush.bf16.msra.mxu0 %v553
    %1757 = vmatpush.bf16.msra.mxu0 %v547
    %1758 = vmatpush.bf16.msra.mxu0 %v541
    %1759 = vmatpush.bf16.msra.mxu0 %v535
    %1760 = vmatpush.bf16.msra.mxu0 %v529
    %1761 = vmatpush.bf16.msra.mxu0 %v523
    %1762 = vmatmul.bf16.gmra.mxu0 %v1714
    %v1763 = vpop.f32.mrf.mxu0
    %v1764 = vadd.f32 %v1751, %v1763
    %v1765 = vpop.f32.mrf.mxu0
    %1766 = vdwg.mxu0
    %1767 = vmatpush.bf16.msra.mxu0 %v518
    %1768 = vmatpush.bf16.msra.mxu0 %v512
    %1769 = vmatpush.bf16.msra.mxu0 %v506
    %1770 = vmatpush.bf16.msra.mxu0 %v500
    %1771 = vmatpush.bf16.msra.mxu0 %v494
    %1772 = vmatpush.bf16.msra.mxu0 %v488
    %1773 = vmatpush.bf16.msra.mxu0 %v482
    %1774 = vmatpush.bf16.msra.mxu0 %v476
    %1775 = vmatmul.bf16.gmra.mxu0 %v1713
    %v1776 = vpop.f32.mrf.mxu0
    %v1777 = vadd.f32 0.0, %v1776
    %v1778 = vpop.f32.mrf.mxu0
    %1779 = vdwg.mxu0
    %1780 = vmatpush.bf16.msra.mxu0 %v566
    %1781 = vmatpush.bf16.msra.mxu0 %v560
    %1782 = vmatpush.bf16.msra.mxu0 %v554
    %1783 = vmatpush.bf16.msra.mxu0 %v548
    %1784 = vmatpush.bf16.msra.mxu0 %v542
    %1785 = vmatpush.bf16.msra.mxu0 %v536
    %1786 = vmatpush.bf16.msra.mxu0 %v530
    %1787 = vmatpush.bf16.msra.mxu0 %v524
    %1788 = vmatmul.bf16.gmra.mxu0 %v1714
    %v1789 = vpop.f32.mrf.mxu0
    %v1790 = vadd.f32 %v1777, %v1789
    %v1791 = vpop.f32.mrf.mxu0
    %1792 = vdwg.mxu0
    %1793 = vmatpush.bf16.msra.mxu0 %v519
    %1794 = vmatpush.bf16.msra.mxu0 %v513
    %1795 = vmatpush.bf16.msra.mxu0 %v507
    %1796 = vmatpush.bf16.msra.mxu0 %v501
    %1797 = vmatpush.bf16.msra.mxu0 %v495
    %1798 = vmatpush.bf16.msra.mxu0 %v489
    %1799 = vmatpush.bf16.msra.mxu0 %v483
    %1800 = vmatpush.bf16.msra.mxu0 %v477
    %1801 = vmatmul.bf16.gmra.mxu0 %v1713
    %v1802 = vpop.f32.mrf.mxu0
    %v1803 = vadd.f32 0.0, %v1802
    %v1804 = vpop.f32.mrf.mxu0
    %1805 = vdwg.mxu0
    %1806 = vmatpush.bf16.msra.mxu0 %v567
    %1807 = vmatpush.bf16.msra.mxu0 %v561
    %1808 = vmatpush.bf16.msra.mxu0 %v555
    %1809 = vmatpush.bf16.msra.mxu0 %v549
    %1810 = vmatpush.bf16.msra.mxu0 %v543
    %1811 = vmatpush.bf16.msra.mxu0 %v537
    %1812 = vmatpush.bf16.msra.mxu0 %v531
    %1813 = vmatpush.bf16.msra.mxu0 %v525
    %1814 = vmatmul.bf16.gmra.mxu0 %v1714
    %v1815 = vpop.f32.mrf.mxu0
    %v1816 = vadd.f32 %v1803, %v1815
    %v1817 = vpop.f32.mrf.mxu0
    %1818 = vdwg.mxu0
    %1819 = vmatpush.bf16.msra.mxu0 %v520
    %1820 = vmatpush.bf16.msra.mxu0 %v514
    %1821 = vmatpush.bf16.msra.mxu0 %v508
    %1822 = vmatpush.bf16.msra.mxu0 %v502
    %1823 = vmatpush.bf16.msra.mxu0 %v496
    %1824 = vmatpush.bf16.msra.mxu0 %v490
    %1825 = vmatpush.bf16.msra.mxu0 %v484
    %1826 = vmatpush.bf16.msra.mxu0 %v478
    %1827 = vmatmul.bf16.gmra.mxu0 %v1713
    %v1828 = vpop.f32.mrf.mxu0
    %v1829 = vadd.f32 0.0, %v1828
    %v1830 = vpop.f32.mrf.mxu0
    %1831 = vdwg.mxu0
    %1832 = vmatpush.bf16.msra.mxu0 %v568
    %1833 = vmatpush.bf16.msra.mxu0 %v562
    %1834 = vmatpush.bf16.msra.mxu0 %v556
    %1835 = vmatpush.bf16.msra.mxu0 %v550
    %1836 = vmatpush.bf16.msra.mxu0 %v544
    %1837 = vmatpush.bf16.msra.mxu0 %v538
    %1838 = vmatpush.bf16.msra.mxu0 %v532
    %1839 = vmatpush.bf16.msra.mxu0 %v526
    %1840 = vmatmul.bf16.gmra.mxu0 %v1714
    %v1841 = vpop.f32.mrf.mxu0
    %v1842 = vadd.f32 %v1829, %v1841
    %v1843 = vpop.f32.mrf.mxu0
    %1844 = vdwg.mxu0
    %1845 = vmatpush.bf16.msra.mxu0 %v521
    %1846 = vmatpush.bf16.msra.mxu0 %v515
    %1847 = vmatpush.bf16.msra.mxu0 %v509
    %1848 = vmatpush.bf16.msra.mxu0 %v503
    %1849 = vmatpush.bf16.msra.mxu0 %v497
    %1850 = vmatpush.bf16.msra.mxu0 %v491
    %1851 = vmatpush.bf16.msra.mxu0 %v485
    %1852 = vmatpush.bf16.msra.mxu0 %v479
    %1853 = vmatmul.bf16.gmra.mxu0 %v1713
    %v1854 = vpop.f32.mrf.mxu0
    %v1855 = vadd.f32 0.0, %v1854
    %v1856 = vpop.f32.mrf.mxu0
    %1857 = vdwg.mxu0
    %1858 = vmatpush.bf16.msra.mxu0 %v569
    %1859 = vmatpush.bf16.msra.mxu0 %v563
    %1860 = vmatpush.bf16.msra.mxu0 %v557
    %1861 = vmatpush.bf16.msra.mxu0 %v551
    %1862 = vmatpush.bf16.msra.mxu0 %v545
    %1863 = vmatpush.bf16.msra.mxu0 %v539
    %1864 = vmatpush.bf16.msra.mxu0 %v533
    %1865 = vmatpush.bf16.msra.mxu0 %v527
    %1866 = vmatmul.bf16.gmra.mxu0 %v1714
    %v1867 = vpop.f32.mrf.mxu0
    %v1868 = vadd.f32 %v1855, %v1867
    %v1869 = vpop.f32.mrf.mxu0
    %1870 = vdwg.mxu0
    %v1871 = vadd.f32 %v1707, %v1738
    %v1872 = vadd.f32 %v1708, %v1764
    %v1873 = vxor.u32 %v1871, 2147483648
    %v1874 = vxor.u32 %v1872, 2147483648
    %v1875 = vmul.f32 %v1873, 1.442695
    %v1876 = vpow.pop %v1875
    %v1877 = vmul.f32 %v1874, 1.442695
    %v1878 = vpow.pop %v1877
    %v1879 = vadd.f32 %v1876, 1.0
    %v1880 = vadd.f32 %v1878, 1.0
    %v1881 = vrcp.pop %v1879
    %v1882 = vmul.f32 %v1879, %v1881
    %v1883 = vsub.f32 1.0, %v1882
    %v1884 = vmul.f32 %v1881, %v1883
    %v1885 = vadd.f32 %v1881, %v1884
    %vm1886 = vweird.f32 %v1879
    %vm1887 = vweird.f32 %v1881
    %vm1888 = vmor %vm1886, %vm1887
    %v1889 = vsel %vm1888, %v1881, %v1885
    %v1890 = vand.u32 2147483647, %v1879
    %vm1891 = vcmp.eq.f32.partialorder %v1890, 8.507059e+37
    %v1892 = vand.u32 %v1879, 2147483648
    %v1893 = vor.u32 1.1754944e-38, %v1892
    %v1894 = vsel %vm1891, %v1893, %v1889
    %v1895 = vmul.f32 1.0, %v1894
    %v1896 = vrcp.pop %v1880
    %v1897 = vmul.f32 %v1880, %v1896
    %v1898 = vsub.f32 1.0, %v1897
    %v1899 = vmul.f32 %v1896, %v1898
    %v1900 = vadd.f32 %v1896, %v1899
    %vm1901 = vweird.f32 %v1880
    %vm1902 = vweird.f32 %v1896
    %vm1903 = vmor %vm1901, %vm1902
    %v1904 = vsel %vm1903, %v1896, %v1900
    %v1905 = vand.u32 2147483647, %v1880
    %vm1906 = vcmp.eq.f32.partialorder %v1905, 8.507059e+37
    %v1907 = vand.u32 %v1880, 2147483648
    %v1908 = vor.u32 1.1754944e-38, %v1907
    %v1909 = vsel %vm1906, %v1908, %v1904
    %v1910 = vmul.f32 1.0, %v1909
    %v1911 = vadd.f32 %v1709, %v1790
    %v1912 = vadd.f32 %v1710, %v1816
    %v1913 = vxor.u32 %v1911, 2147483648
    %v1914 = vxor.u32 %v1912, 2147483648
    %v1915 = vmul.f32 %v1913, 1.442695
    %v1916 = vpow.pop %v1915
    %v1917 = vmul.f32 %v1914, 1.442695
    %v1918 = vpow.pop %v1917
    %v1919 = vadd.f32 %v1916, 1.0
    %v1920 = vadd.f32 %v1918, 1.0
    %v1921 = vrcp.pop %v1919
    %v1922 = vmul.f32 %v1919, %v1921
    %v1923 = vsub.f32 1.0, %v1922
    %v1924 = vmul.f32 %v1921, %v1923
    %v1925 = vadd.f32 %v1921, %v1924
    %vm1926 = vweird.f32 %v1919
    %vm1927 = vweird.f32 %v1921
    %vm1928 = vmor %vm1926, %vm1927
    %v1929 = vsel %vm1928, %v1921, %v1925
    %v1930 = vand.u32 2147483647, %v1919
    %vm1931 = vcmp.eq.f32.partialorder %v1930, 8.507059e+37
    %v1932 = vand.u32 %v1919, 2147483648
    %v1933 = vor.u32 1.1754944e-38, %v1932
    %v1934 = vsel %vm1931, %v1933, %v1929
    %v1935 = vmul.f32 1.0, %v1934
    %v1936 = vrcp.pop %v1920
    %v1937 = vmul.f32 %v1920, %v1936
    %v1938 = vsub.f32 1.0, %v1937
    %v1939 = vmul.f32 %v1936, %v1938
    %v1940 = vadd.f32 %v1936, %v1939
    %vm1941 = vweird.f32 %v1920
    %vm1942 = vweird.f32 %v1936
    %vm1943 = vmor %vm1941, %vm1942
    %v1944 = vsel %vm1943, %v1936, %v1940
    %v1945 = vand.u32 2147483647, %v1920
    %vm1946 = vcmp.eq.f32.partialorder %v1945, 8.507059e+37
    %v1947 = vand.u32 %v1920, 2147483648
    %v1948 = vor.u32 1.1754944e-38, %v1947
    %v1949 = vsel %vm1946, %v1948, %v1944
    %v1950 = vmul.f32 1.0, %v1949
    %v1951 = vadd.f32 %v1842, %v903
    %v1952 = vadd.f32 %v1868, %v904
    %v1953 = vmul.f32 %v1895, %v1951
    %v1954 = vmul.f32 %v1910, %v1952
    %v1955 = vadd.f32 %v1711, %v1953
    %v1956 = vadd.f32 %v1712, %v1954
    %v1957 = vtanh.pop %v1955
    %v1958 = vtanh.pop %v1956
    %v1959 = vsub.f32 1.0, %v1935
    %v1960 = vsub.f32 1.0, %v1950
    %v1961 = vmul.f32 %v1959, %v1957
    %v1962 = vmul.f32 %v1960, %v1958
    %v1963 = vmul.f32 %v1935, %v1704
    %v1964 = vmul.f32 %v1950, %v1705
    %v1965 = vadd.f32 %v1961, %v1963
    %v1966 = vadd.f32 %v1962, %v1964
    %s1967 = scalar_lea.vmem [#allocation2], 240
    %v1968 = vld [vmem:[%s1967] sm:$0xff]
    %v1969 = vld [vmem:[%s1967 + $0x8] sm:$0xff]
    %v1970 = vld [vmem:[%s1967 + $0x10] sm:$0xff]
    %v1971 = vld [vmem:[%s1967 + $0x18] sm:$0xff]
    %v1972 = vld [vmem:[%s1967 + $0x20] sm:$0xff]
    %v1973 = vld [vmem:[%s1967 + $0x28] sm:$0xff]
    %v1974 = vpack.c.bf16 %v1965, %v1965
    %v1975 = vpack.c.bf16 %v1966, %v1966
    %1976 = vmatpush.bf16.msra.mxu0 %v516
    %1977 = vmatpush.bf16.msra.mxu0 %v510
    %1978 = vmatpush.bf16.msra.mxu0 %v504
    %1979 = vmatpush.bf16.msra.mxu0 %v498
    %1980 = vmatpush.bf16.msra.mxu0 %v492
    %1981 = vmatpush.bf16.msra.mxu0 %v486
    %1982 = vmatpush.bf16.msra.mxu0 %v480
    %1983 = vmatpush.bf16.msra.mxu0 %v474
    %1984 = vmatmul.bf16.gmra.mxu0 %v1974
    %v1985 = vpop.f32.mrf.mxu0
    %v1986 = vadd.f32 0.0, %v1985
    %v1987 = vpop.f32.mrf.mxu0
    %1988 = vdwg.mxu0
    %1989 = vmatpush.bf16.msra.mxu0 %v564
    %1990 = vmatpush.bf16.msra.mxu0 %v558
    %1991 = vmatpush.bf16.msra.mxu0 %v552
    %1992 = vmatpush.bf16.msra.mxu0 %v546
    %1993 = vmatpush.bf16.msra.mxu0 %v540
    %1994 = vmatpush.bf16.msra.mxu0 %v534
    %1995 = vmatpush.bf16.msra.mxu0 %v528
    %1996 = vmatpush.bf16.msra.mxu0 %v522
    %1997 = vmatmul.bf16.gmra.mxu0 %v1975
    %v1998 = vpop.f32.mrf.mxu0
    %v1999 = vadd.f32 %v1986, %v1998
    %v2000 = vpop.f32.mrf.mxu0
    %2001 = vdwg.mxu0
    %2002 = vmatpush.bf16.msra.mxu0 %v517
    %2003 = vmatpush.bf16.msra.mxu0 %v511
    %2004 = vmatpush.bf16.msra.mxu0 %v505
    %2005 = vmatpush.bf16.msra.mxu0 %v499
    %2006 = vmatpush.bf16.msra.mxu0 %v493
    %2007 = vmatpush.bf16.msra.mxu0 %v487
    %2008 = vmatpush.bf16.msra.mxu0 %v481
    %2009 = vmatpush.bf16.msra.mxu0 %v475
    %2010 = vmatmul.bf16.gmra.mxu0 %v1974
    %v2011 = vpop.f32.mrf.mxu0
    %v2012 = vadd.f32 0.0, %v2011
    %v2013 = vpop.f32.mrf.mxu0
    %2014 = vdwg.mxu0
    %2015 = vmatpush.bf16.msra.mxu0 %v565
    %2016 = vmatpush.bf16.msra.mxu0 %v559
    %2017 = vmatpush.bf16.msra.mxu0 %v553
    %2018 = vmatpush.bf16.msra.mxu0 %v547
    %2019 = vmatpush.bf16.msra.mxu0 %v541
    %2020 = vmatpush.bf16.msra.mxu0 %v535
    %2021 = vmatpush.bf16.msra.mxu0 %v529
    %2022 = vmatpush.bf16.msra.mxu0 %v523
    %2023 = vmatmul.bf16.gmra.mxu0 %v1975
    %v2024 = vpop.f32.mrf.mxu0
    %v2025 = vadd.f32 %v2012, %v2024
    %v2026 = vpop.f32.mrf.mxu0
    %2027 = vdwg.mxu0
    %2028 = vmatpush.bf16.msra.mxu0 %v518
    %2029 = vmatpush.bf16.msra.mxu0 %v512
    %2030 = vmatpush.bf16.msra.mxu0 %v506
    %2031 = vmatpush.bf16.msra.mxu0 %v500
    %2032 = vmatpush.bf16.msra.mxu0 %v494
    %2033 = vmatpush.bf16.msra.mxu0 %v488
    %2034 = vmatpush.bf16.msra.mxu0 %v482
    %2035 = vmatpush.bf16.msra.mxu0 %v476
    %2036 = vmatmul.bf16.gmra.mxu0 %v1974
    %v2037 = vpop.f32.mrf.mxu0
    %v2038 = vadd.f32 0.0, %v2037
    %v2039 = vpop.f32.mrf.mxu0
    %2040 = vdwg.mxu0
    %2041 = vmatpush.bf16.msra.mxu0 %v566
    %2042 = vmatpush.bf16.msra.mxu0 %v560
    %2043 = vmatpush.bf16.msra.mxu0 %v554
    %2044 = vmatpush.bf16.msra.mxu0 %v548
    %2045 = vmatpush.bf16.msra.mxu0 %v542
    %2046 = vmatpush.bf16.msra.mxu0 %v536
    %2047 = vmatpush.bf16.msra.mxu0 %v530
    %2048 = vmatpush.bf16.msra.mxu0 %v524
    %2049 = vmatmul.bf16.gmra.mxu0 %v1975
    %v2050 = vpop.f32.mrf.mxu0
    %v2051 = vadd.f32 %v2038, %v2050
    %v2052 = vpop.f32.mrf.mxu0
    %2053 = vdwg.mxu0
    %2054 = vmatpush.bf16.msra.mxu0 %v519
    %2055 = vmatpush.bf16.msra.mxu0 %v513
    %2056 = vmatpush.bf16.msra.mxu0 %v507
    %2057 = vmatpush.bf16.msra.mxu0 %v501
    %2058 = vmatpush.bf16.msra.mxu0 %v495
    %2059 = vmatpush.bf16.msra.mxu0 %v489
    %2060 = vmatpush.bf16.msra.mxu0 %v483
    %2061 = vmatpush.bf16.msra.mxu0 %v477
    %2062 = vmatmul.bf16.gmra.mxu0 %v1974
    %v2063 = vpop.f32.mrf.mxu0
    %v2064 = vadd.f32 0.0, %v2063
    %v2065 = vpop.f32.mrf.mxu0
    %2066 = vdwg.mxu0
    %2067 = vmatpush.bf16.msra.mxu0 %v567
    %2068 = vmatpush.bf16.msra.mxu0 %v561
    %2069 = vmatpush.bf16.msra.mxu0 %v555
    %2070 = vmatpush.bf16.msra.mxu0 %v549
    %2071 = vmatpush.bf16.msra.mxu0 %v543
    %2072 = vmatpush.bf16.msra.mxu0 %v537
    %2073 = vmatpush.bf16.msra.mxu0 %v531
    %2074 = vmatpush.bf16.msra.mxu0 %v525
    %2075 = vmatmul.bf16.gmra.mxu0 %v1975
    %v2076 = vpop.f32.mrf.mxu0
    %v2077 = vadd.f32 %v2064, %v2076
    %v2078 = vpop.f32.mrf.mxu0
    %2079 = vdwg.mxu0
    %2080 = vmatpush.bf16.msra.mxu0 %v520
    %2081 = vmatpush.bf16.msra.mxu0 %v514
    %2082 = vmatpush.bf16.msra.mxu0 %v508
    %2083 = vmatpush.bf16.msra.mxu0 %v502
    %2084 = vmatpush.bf16.msra.mxu0 %v496
    %2085 = vmatpush.bf16.msra.mxu0 %v490
    %2086 = vmatpush.bf16.msra.mxu0 %v484
    %2087 = vmatpush.bf16.msra.mxu0 %v478
    %2088 = vmatmul.bf16.gmra.mxu0 %v1974
    %v2089 = vpop.f32.mrf.mxu0
    %v2090 = vadd.f32 0.0, %v2089
    %v2091 = vpop.f32.mrf.mxu0
    %2092 = vdwg.mxu0
    %2093 = vmatpush.bf16.msra.mxu0 %v568
    %2094 = vmatpush.bf16.msra.mxu0 %v562
    %2095 = vmatpush.bf16.msra.mxu0 %v556
    %2096 = vmatpush.bf16.msra.mxu0 %v550
    %2097 = vmatpush.bf16.msra.mxu0 %v544
    %2098 = vmatpush.bf16.msra.mxu0 %v538
    %2099 = vmatpush.bf16.msra.mxu0 %v532
    %2100 = vmatpush.bf16.msra.mxu0 %v526
    %2101 = vmatmul.bf16.gmra.mxu0 %v1975
    %v2102 = vpop.f32.mrf.mxu0
    %v2103 = vadd.f32 %v2090, %v2102
    %v2104 = vpop.f32.mrf.mxu0
    %2105 = vdwg.mxu0
    %2106 = vmatpush.bf16.msra.mxu0 %v521
    %2107 = vmatpush.bf16.msra.mxu0 %v515
    %2108 = vmatpush.bf16.msra.mxu0 %v509
    %2109 = vmatpush.bf16.msra.mxu0 %v503
    %2110 = vmatpush.bf16.msra.mxu0 %v497
    %2111 = vmatpush.bf16.msra.mxu0 %v491
    %2112 = vmatpush.bf16.msra.mxu0 %v485
    %2113 = vmatpush.bf16.msra.mxu0 %v479
    %2114 = vmatmul.bf16.gmra.mxu0 %v1974
    %v2115 = vpop.f32.mrf.mxu0
    %v2116 = vadd.f32 0.0, %v2115
    %v2117 = vpop.f32.mrf.mxu0
    %2118 = vdwg.mxu0
    %2119 = vmatpush.bf16.msra.mxu0 %v569
    %2120 = vmatpush.bf16.msra.mxu0 %v563
    %2121 = vmatpush.bf16.msra.mxu0 %v557
    %2122 = vmatpush.bf16.msra.mxu0 %v551
    %2123 = vmatpush.bf16.msra.mxu0 %v545
    %2124 = vmatpush.bf16.msra.mxu0 %v539
    %2125 = vmatpush.bf16.msra.mxu0 %v533
    %2126 = vmatpush.bf16.msra.mxu0 %v527
    %2127 = vmatmul.bf16.gmra.mxu0 %v1975
    %v2128 = vpop.f32.mrf.mxu0
    %v2129 = vadd.f32 %v2116, %v2128
    %v2130 = vpop.f32.mrf.mxu0
    %2131 = vdwg.mxu0
    %v2132 = vadd.f32 %v1968, %v1999
    %v2133 = vadd.f32 %v1969, %v2025
    %v2134 = vxor.u32 %v2132, 2147483648
    %v2135 = vxor.u32 %v2133, 2147483648
    %v2136 = vmul.f32 %v2134, 1.442695
    %v2137 = vpow.pop %v2136
    %v2138 = vmul.f32 %v2135, 1.442695
    %v2139 = vpow.pop %v2138
    %v2140 = vadd.f32 %v2137, 1.0
    %v2141 = vadd.f32 %v2139, 1.0
    %v2142 = vrcp.pop %v2140
    %v2143 = vmul.f32 %v2140, %v2142
    %v2144 = vsub.f32 1.0, %v2143
    %v2145 = vmul.f32 %v2142, %v2144
    %v2146 = vadd.f32 %v2142, %v2145
    %vm2147 = vweird.f32 %v2140
    %vm2148 = vweird.f32 %v2142
    %vm2149 = vmor %vm2147, %vm2148
    %v2150 = vsel %vm2149, %v2142, %v2146
    %v2151 = vand.u32 2147483647, %v2140
    %vm2152 = vcmp.eq.f32.partialorder %v2151, 8.507059e+37
    %v2153 = vand.u32 %v2140, 2147483648
    %v2154 = vor.u32 1.1754944e-38, %v2153
    %v2155 = vsel %vm2152, %v2154, %v2150
    %v2156 = vmul.f32 1.0, %v2155
    %v2157 = vrcp.pop %v2141
    %v2158 = vmul.f32 %v2141, %v2157
    %v2159 = vsub.f32 1.0, %v2158
    %v2160 = vmul.f32 %v2157, %v2159
    %v2161 = vadd.f32 %v2157, %v2160
    %vm2162 = vweird.f32 %v2141
    %vm2163 = vweird.f32 %v2157
    %vm2164 = vmor %vm2162, %vm2163
    %v2165 = vsel %vm2164, %v2157, %v2161
    %v2166 = vand.u32 2147483647, %v2141
    %vm2167 = vcmp.eq.f32.partialorder %v2166, 8.507059e+37
    %v2168 = vand.u32 %v2141, 2147483648
    %v2169 = vor.u32 1.1754944e-38, %v2168
    %v2170 = vsel %vm2167, %v2169, %v2165
    %v2171 = vmul.f32 1.0, %v2170
    %v2172 = vadd.f32 %v1970, %v2051
    %v2173 = vadd.f32 %v1971, %v2077
    %v2174 = vxor.u32 %v2172, 2147483648
    %v2175 = vxor.u32 %v2173, 2147483648
    %v2176 = vmul.f32 %v2174, 1.442695
    %v2177 = vpow.pop %v2176
    %v2178 = vmul.f32 %v2175, 1.442695
    %v2179 = vpow.pop %v2178
    %v2180 = vadd.f32 %v2177, 1.0
    %v2181 = vadd.f32 %v2179, 1.0
    %v2182 = vrcp.pop %v2180
    %v2183 = vmul.f32 %v2180, %v2182
    %v2184 = vsub.f32 1.0, %v2183
    %v2185 = vmul.f32 %v2182, %v2184
    %v2186 = vadd.f32 %v2182, %v2185
    %vm2187 = vweird.f32 %v2180
    %vm2188 = vweird.f32 %v2182
    %vm2189 = vmor %vm2187, %vm2188
    %v2190 = vsel %vm2189, %v2182, %v2186
    %v2191 = vand.u32 2147483647, %v2180
    %vm2192 = vcmp.eq.f32.partialorder %v2191, 8.507059e+37
    %v2193 = vand.u32 %v2180, 2147483648
    %v2194 = vor.u32 1.1754944e-38, %v2193
    %v2195 = vsel %vm2192, %v2194, %v2190
    %v2196 = vmul.f32 1.0, %v2195
    %v2197 = vrcp.pop %v2181
    %v2198 = vmul.f32 %v2181, %v2197
    %v2199 = vsub.f32 1.0, %v2198
    %v2200 = vmul.f32 %v2197, %v2199
    %v2201 = vadd.f32 %v2197, %v2200
    %vm2202 = vweird.f32 %v2181
    %vm2203 = vweird.f32 %v2197
    %vm2204 = vmor %vm2202, %vm2203
    %v2205 = vsel %vm2204, %v2197, %v2201
    %v2206 = vand.u32 2147483647, %v2181
    %vm2207 = vcmp.eq.f32.partialorder %v2206, 8.507059e+37
    %v2208 = vand.u32 %v2181, 2147483648
    %v2209 = vor.u32 1.1754944e-38, %v2208
    %v2210 = vsel %vm2207, %v2209, %v2205
    %v2211 = vmul.f32 1.0, %v2210
    %v2212 = vadd.f32 %v2103, %v903
    %v2213 = vadd.f32 %v2129, %v904
    %v2214 = vmul.f32 %v2156, %v2212
    %v2215 = vmul.f32 %v2171, %v2213
    %v2216 = vadd.f32 %v1972, %v2214
    %v2217 = vadd.f32 %v1973, %v2215
    %v2218 = vtanh.pop %v2216
    %v2219 = vtanh.pop %v2217
    %v2220 = vsub.f32 1.0, %v2196
    %v2221 = vsub.f32 1.0, %v2211
    %v2222 = vmul.f32 %v2220, %v2218
    %v2223 = vmul.f32 %v2221, %v2219
    %v2224 = vmul.f32 %v2196, %v1965
    %v2225 = vmul.f32 %v2211, %v1966
    %v2226 = vadd.f32 %v2222, %v2224
    %v2227 = vadd.f32 %v2223, %v2225
    %s2228 = scalar_lea.vmem [#allocation2], 288
    %v2229 = vld [vmem:[%s2228] sm:$0xff]
    %v2230 = vld [vmem:[%s2228 + $0x8] sm:$0xff]
    %v2231 = vld [vmem:[%s2228 + $0x10] sm:$0xff]
    %v2232 = vld [vmem:[%s2228 + $0x18] sm:$0xff]
    %v2233 = vld [vmem:[%s2228 + $0x20] sm:$0xff]
    %v2234 = vld [vmem:[%s2228 + $0x28] sm:$0xff]
    %v2235 = vpack.c.bf16 %v2226, %v2226
    %v2236 = vpack.c.bf16 %v2227, %v2227
    %2237 = vmatpush.bf16.msra.mxu0 %v516
    %2238 = vmatpush.bf16.msra.mxu0 %v510
    %2239 = vmatpush.bf16.msra.mxu0 %v504
    %2240 = vmatpush.bf16.msra.mxu0 %v498
    %2241 = vmatpush.bf16.msra.mxu0 %v492
    %2242 = vmatpush.bf16.msra.mxu0 %v486
    %2243 = vmatpush.bf16.msra.mxu0 %v480
    %2244 = vmatpush.bf16.msra.mxu0 %v474
    %2245 = vmatmul.bf16.gmra.mxu0 %v2235
    %v2246 = vpop.f32.mrf.mxu0
    %v2247 = vadd.f32 0.0, %v2246
    %v2248 = vpop.f32.mrf.mxu0
    %2249 = vdwg.mxu0
    %2250 = vmatpush.bf16.msra.mxu0 %v564
    %2251 = vmatpush.bf16.msra.mxu0 %v558
    %2252 = vmatpush.bf16.msra.mxu0 %v552
    %2253 = vmatpush.bf16.msra.mxu0 %v546
    %2254 = vmatpush.bf16.msra.mxu0 %v540
    %2255 = vmatpush.bf16.msra.mxu0 %v534
    %2256 = vmatpush.bf16.msra.mxu0 %v528
    %2257 = vmatpush.bf16.msra.mxu0 %v522
    %2258 = vmatmul.bf16.gmra.mxu0 %v2236
    %v2259 = vpop.f32.mrf.mxu0
    %v2260 = vadd.f32 %v2247, %v2259
    %v2261 = vpop.f32.mrf.mxu0
    %2262 = vdwg.mxu0
    %2263 = vmatpush.bf16.msra.mxu0 %v517
    %2264 = vmatpush.bf16.msra.mxu0 %v511
    %2265 = vmatpush.bf16.msra.mxu0 %v505
    %2266 = vmatpush.bf16.msra.mxu0 %v499
    %2267 = vmatpush.bf16.msra.mxu0 %v493
    %2268 = vmatpush.bf16.msra.mxu0 %v487
    %2269 = vmatpush.bf16.msra.mxu0 %v481
    %2270 = vmatpush.bf16.msra.mxu0 %v475
    %2271 = vmatmul.bf16.gmra.mxu0 %v2235
    %v2272 = vpop.f32.mrf.mxu0
    %v2273 = vadd.f32 0.0, %v2272
    %v2274 = vpop.f32.mrf.mxu0
    %2275 = vdwg.mxu0
    %2276 = vmatpush.bf16.msra.mxu0 %v565
    %2277 = vmatpush.bf16.msra.mxu0 %v559
    %2278 = vmatpush.bf16.msra.mxu0 %v553
    %2279 = vmatpush.bf16.msra.mxu0 %v547
    %2280 = vmatpush.bf16.msra.mxu0 %v541
    %2281 = vmatpush.bf16.msra.mxu0 %v535
    %2282 = vmatpush.bf16.msra.mxu0 %v529
    %2283 = vmatpush.bf16.msra.mxu0 %v523
    %2284 = vmatmul.bf16.gmra.mxu0 %v2236
    %v2285 = vpop.f32.mrf.mxu0
    %v2286 = vadd.f32 %v2273, %v2285
    %v2287 = vpop.f32.mrf.mxu0
    %2288 = vdwg.mxu0
    %2289 = vmatpush.bf16.msra.mxu0 %v518
    %2290 = vmatpush.bf16.msra.mxu0 %v512
    %2291 = vmatpush.bf16.msra.mxu0 %v506
    %2292 = vmatpush.bf16.msra.mxu0 %v500
    %2293 = vmatpush.bf16.msra.mxu0 %v494
    %2294 = vmatpush.bf16.msra.mxu0 %v488
    %2295 = vmatpush.bf16.msra.mxu0 %v482
    %2296 = vmatpush.bf16.msra.mxu0 %v476
    %2297 = vmatmul.bf16.gmra.mxu0 %v2235
    %v2298 = vpop.f32.mrf.mxu0
    %v2299 = vadd.f32 0.0, %v2298
    %v2300 = vpop.f32.mrf.mxu0
    %2301 = vdwg.mxu0
    %2302 = vmatpush.bf16.msra.mxu0 %v566
    %2303 = vmatpush.bf16.msra.mxu0 %v560
    %2304 = vmatpush.bf16.msra.mxu0 %v554
    %2305 = vmatpush.bf16.msra.mxu0 %v548
    %2306 = vmatpush.bf16.msra.mxu0 %v542
    %2307 = vmatpush.bf16.msra.mxu0 %v536
    %2308 = vmatpush.bf16.msra.mxu0 %v530
    %2309 = vmatpush.bf16.msra.mxu0 %v524
    %2310 = vmatmul.bf16.gmra.mxu0 %v2236
    %v2311 = vpop.f32.mrf.mxu0
    %v2312 = vadd.f32 %v2299, %v2311
    %v2313 = vpop.f32.mrf.mxu0
    %2314 = vdwg.mxu0
    %2315 = vmatpush.bf16.msra.mxu0 %v519
    %2316 = vmatpush.bf16.msra.mxu0 %v513
    %2317 = vmatpush.bf16.msra.mxu0 %v507
    %2318 = vmatpush.bf16.msra.mxu0 %v501
    %2319 = vmatpush.bf16.msra.mxu0 %v495
    %2320 = vmatpush.bf16.msra.mxu0 %v489
    %2321 = vmatpush.bf16.msra.mxu0 %v483
    %2322 = vmatpush.bf16.msra.mxu0 %v477
    %2323 = vmatmul.bf16.gmra.mxu0 %v2235
    %v2324 = vpop.f32.mrf.mxu0
    %v2325 = vadd.f32 0.0, %v2324
    %v2326 = vpop.f32.mrf.mxu0
    %2327 = vdwg.mxu0
    %2328 = vmatpush.bf16.msra.mxu0 %v567
    %2329 = vmatpush.bf16.msra.mxu0 %v561
    %2330 = vmatpush.bf16.msra.mxu0 %v555
    %2331 = vmatpush.bf16.msra.mxu0 %v549
    %2332 = vmatpush.bf16.msra.mxu0 %v543
    %2333 = vmatpush.bf16.msra.mxu0 %v537
    %2334 = vmatpush.bf16.msra.mxu0 %v531
    %2335 = vmatpush.bf16.msra.mxu0 %v525
    %2336 = vmatmul.bf16.gmra.mxu0 %v2236
    %v2337 = vpop.f32.mrf.mxu0
    %v2338 = vadd.f32 %v2325, %v2337
    %v2339 = vpop.f32.mrf.mxu0
    %2340 = vdwg.mxu0
    %2341 = vmatpush.bf16.msra.mxu0 %v520
    %2342 = vmatpush.bf16.msra.mxu0 %v514
    %2343 = vmatpush.bf16.msra.mxu0 %v508
    %2344 = vmatpush.bf16.msra.mxu0 %v502
    %2345 = vmatpush.bf16.msra.mxu0 %v496
    %2346 = vmatpush.bf16.msra.mxu0 %v490
    %2347 = vmatpush.bf16.msra.mxu0 %v484
    %2348 = vmatpush.bf16.msra.mxu0 %v478
    %2349 = vmatmul.bf16.gmra.mxu0 %v2235
    %v2350 = vpop.f32.mrf.mxu0
    %v2351 = vadd.f32 0.0, %v2350
    %v2352 = vpop.f32.mrf.mxu0
    %2353 = vdwg.mxu0
    %2354 = vmatpush.bf16.msra.mxu0 %v568
    %2355 = vmatpush.bf16.msra.mxu0 %v562
    %2356 = vmatpush.bf16.msra.mxu0 %v556
    %2357 = vmatpush.bf16.msra.mxu0 %v550
    %2358 = vmatpush.bf16.msra.mxu0 %v544
    %2359 = vmatpush.bf16.msra.mxu0 %v538
    %2360 = vmatpush.bf16.msra.mxu0 %v532
    %2361 = vmatpush.bf16.msra.mxu0 %v526
    %2362 = vmatmul.bf16.gmra.mxu0 %v2236
    %v2363 = vpop.f32.mrf.mxu0
    %v2364 = vadd.f32 %v2351, %v2363
    %v2365 = vpop.f32.mrf.mxu0
    %2366 = vdwg.mxu0
    %2367 = vmatpush.bf16.msra.mxu0 %v521
    %2368 = vmatpush.bf16.msra.mxu0 %v515
    %2369 = vmatpush.bf16.msra.mxu0 %v509
    %2370 = vmatpush.bf16.msra.mxu0 %v503
    %2371 = vmatpush.bf16.msra.mxu0 %v497
    %2372 = vmatpush.bf16.msra.mxu0 %v491
    %2373 = vmatpush.bf16.msra.mxu0 %v485
    %2374 = vmatpush.bf16.msra.mxu0 %v479
    %2375 = vmatmul.bf16.gmra.mxu0 %v2235
    %v2376 = vpop.f32.mrf.mxu0
    %v2377 = vadd.f32 0.0, %v2376
    %v2378 = vpop.f32.mrf.mxu0
    %2379 = vdwg.mxu0
    %2380 = vmatpush.bf16.msra.mxu0 %v569
    %2381 = vmatpush.bf16.msra.mxu0 %v563
    %2382 = vmatpush.bf16.msra.mxu0 %v557
    %2383 = vmatpush.bf16.msra.mxu0 %v551
    %2384 = vmatpush.bf16.msra.mxu0 %v545
    %2385 = vmatpush.bf16.msra.mxu0 %v539
    %2386 = vmatpush.bf16.msra.mxu0 %v533
    %2387 = vmatpush.bf16.msra.mxu0 %v527
    %2388 = vmatmul.bf16.gmra.mxu0 %v2236
    %v2389 = vpop.f32.mrf.mxu0
    %v2390 = vadd.f32 %v2377, %v2389
    %v2391 = vpop.f32.mrf.mxu0
    %2392 = vdwg.mxu0
    %v2393 = vadd.f32 %v2229, %v2260
    %v2394 = vadd.f32 %v2230, %v2286
    %v2395 = vxor.u32 %v2393, 2147483648
    %v2396 = vxor.u32 %v2394, 2147483648
    %v2397 = vmul.f32 %v2395, 1.442695
    %v2398 = vpow.pop %v2397
    %v2399 = vmul.f32 %v2396, 1.442695
    %v2400 = vpow.pop %v2399
    %v2401 = vadd.f32 %v2398, 1.0
    %v2402 = vadd.f32 %v2400, 1.0
    %v2403 = vrcp.pop %v2401
    %v2404 = vmul.f32 %v2401, %v2403
    %v2405 = vsub.f32 1.0, %v2404
    %v2406 = vmul.f32 %v2403, %v2405
    %v2407 = vadd.f32 %v2403, %v2406
    %vm2408 = vweird.f32 %v2401
    %vm2409 = vweird.f32 %v2403
    %vm2410 = vmor %vm2408, %vm2409
    %v2411 = vsel %vm2410, %v2403, %v2407
    %v2412 = vand.u32 2147483647, %v2401
    %vm2413 = vcmp.eq.f32.partialorder %v2412, 8.507059e+37
    %v2414 = vand.u32 %v2401, 2147483648
    %v2415 = vor.u32 1.1754944e-38, %v2414
    %v2416 = vsel %vm2413, %v2415, %v2411
    %v2417 = vmul.f32 1.0, %v2416
    %v2418 = vrcp.pop %v2402
    %v2419 = vmul.f32 %v2402, %v2418
    %v2420 = vsub.f32 1.0, %v2419
    %v2421 = vmul.f32 %v2418, %v2420
    %v2422 = vadd.f32 %v2418, %v2421
    %vm2423 = vweird.f32 %v2402
    %vm2424 = vweird.f32 %v2418
    %vm2425 = vmor %vm2423, %vm2424
    %v2426 = vsel %vm2425, %v2418, %v2422
    %v2427 = vand.u32 2147483647, %v2402
    %vm2428 = vcmp.eq.f32.partialorder %v2427, 8.507059e+37
    %v2429 = vand.u32 %v2402, 2147483648
    %v2430 = vor.u32 1.1754944e-38, %v2429
    %v2431 = vsel %vm2428, %v2430, %v2426
    %v2432 = vmul.f32 1.0, %v2431
    %v2433 = vadd.f32 %v2231, %v2312
    %v2434 = vadd.f32 %v2232, %v2338
    %v2435 = vxor.u32 %v2433, 2147483648
    %v2436 = vxor.u32 %v2434, 2147483648
    %v2437 = vmul.f32 %v2435, 1.442695
    %v2438 = vpow.pop %v2437
    %v2439 = vmul.f32 %v2436, 1.442695
    %v2440 = vpow.pop %v2439
    %v2441 = vadd.f32 %v2438, 1.0
    %v2442 = vadd.f32 %v2440, 1.0
    %v2443 = vrcp.pop %v2441
    %v2444 = vmul.f32 %v2441, %v2443
    %v2445 = vsub.f32 1.0, %v2444
    %v2446 = vmul.f32 %v2443, %v2445
    %v2447 = vadd.f32 %v2443, %v2446
    %vm2448 = vweird.f32 %v2441
    %vm2449 = vweird.f32 %v2443
    %vm2450 = vmor %vm2448, %vm2449
    %v2451 = vsel %vm2450, %v2443, %v2447
    %v2452 = vand.u32 2147483647, %v2441
    %vm2453 = vcmp.eq.f32.partialorder %v2452, 8.507059e+37
    %v2454 = vand.u32 %v2441, 2147483648
    %v2455 = vor.u32 1.1754944e-38, %v2454
    %v2456 = vsel %vm2453, %v2455, %v2451
    %v2457 = vmul.f32 1.0, %v2456
    %v2458 = vrcp.pop %v2442
    %v2459 = vmul.f32 %v2442, %v2458
    %v2460 = vsub.f32 1.0, %v2459
    %v2461 = vmul.f32 %v2458, %v2460
    %v2462 = vadd.f32 %v2458, %v2461
    %vm2463 = vweird.f32 %v2442
    %vm2464 = vweird.f32 %v2458
    %vm2465 = vmor %vm2463, %vm2464
    %v2466 = vsel %vm2465, %v2458, %v2462
    %v2467 = vand.u32 2147483647, %v2442
    %vm2468 = vcmp.eq.f32.partialorder %v2467, 8.507059e+37
    %v2469 = vand.u32 %v2442, 2147483648
    %v2470 = vor.u32 1.1754944e-38, %v2469
    %v2471 = vsel %vm2468, %v2470, %v2466
    %v2472 = vmul.f32 1.0, %v2471
    %v2473 = vadd.f32 %v2364, %v903
    %v2474 = vadd.f32 %v2390, %v904
    %v2475 = vmul.f32 %v2417, %v2473
    %v2476 = vmul.f32 %v2432, %v2474
    %v2477 = vadd.f32 %v2233, %v2475
    %v2478 = vadd.f32 %v2234, %v2476
    %v2479 = vtanh.pop %v2477
    %v2480 = vtanh.pop %v2478
    %v2481 = vsub.f32 1.0, %v2457
    %v2482 = vsub.f32 1.0, %v2472
    %v2483 = vmul.f32 %v2481, %v2479
    %v2484 = vmul.f32 %v2482, %v2480
    %v2485 = vmul.f32 %v2457, %v2226
    %v2486 = vmul.f32 %v2472, %v2227
    %v2487 = vadd.f32 %v2483, %v2485
    %v2488 = vadd.f32 %v2484, %v2486
    %s2489 = scalar_lea.vmem [#allocation2], 336
    %v2490 = vld [vmem:[%s2489] sm:$0xff]
    %v2491 = vld [vmem:[%s2489 + $0x8] sm:$0xff]
    %v2492 = vld [vmem:[%s2489 + $0x10] sm:$0xff]
    %v2493 = vld [vmem:[%s2489 + $0x18] sm:$0xff]
    %v2494 = vld [vmem:[%s2489 + $0x20] sm:$0xff]
    %v2495 = vld [vmem:[%s2489 + $0x28] sm:$0xff]
    %v2496 = vpack.c.bf16 %v2487, %v2487
    %v2497 = vpack.c.bf16 %v2488, %v2488
    %2498 = vmatpush.bf16.msra.mxu0 %v516
    %2499 = vmatpush.bf16.msra.mxu0 %v510
    %2500 = vmatpush.bf16.msra.mxu0 %v504
    %2501 = vmatpush.bf16.msra.mxu0 %v498
    %2502 = vmatpush.bf16.msra.mxu0 %v492
    %2503 = vmatpush.bf16.msra.mxu0 %v486
    %2504 = vmatpush.bf16.msra.mxu0 %v480
    %2505 = vmatpush.bf16.msra.mxu0 %v474
    %2506 = vmatmul.bf16.gmra.mxu0 %v2496
    %v2507 = vpop.f32.mrf.mxu0
    %v2508 = vadd.f32 0.0, %v2507
    %v2509 = vpop.f32.mrf.mxu0
    %2510 = vdwg.mxu0
    %2511 = vmatpush.bf16.msra.mxu0 %v564
    %2512 = vmatpush.bf16.msra.mxu0 %v558
    %2513 = vmatpush.bf16.msra.mxu0 %v552
    %2514 = vmatpush.bf16.msra.mxu0 %v546
    %2515 = vmatpush.bf16.msra.mxu0 %v540
    %2516 = vmatpush.bf16.msra.mxu0 %v534
    %2517 = vmatpush.bf16.msra.mxu0 %v528
    %2518 = vmatpush.bf16.msra.mxu0 %v522
    %2519 = vmatmul.bf16.gmra.mxu0 %v2497
    %v2520 = vpop.f32.mrf.mxu0
    %v2521 = vadd.f32 %v2508, %v2520
    %v2522 = vpop.f32.mrf.mxu0
    %2523 = vdwg.mxu0
    %2524 = vmatpush.bf16.msra.mxu0 %v517
    %2525 = vmatpush.bf16.msra.mxu0 %v511
    %2526 = vmatpush.bf16.msra.mxu0 %v505
    %2527 = vmatpush.bf16.msra.mxu0 %v499
    %2528 = vmatpush.bf16.msra.mxu0 %v493
    %2529 = vmatpush.bf16.msra.mxu0 %v487
    %2530 = vmatpush.bf16.msra.mxu0 %v481
    %2531 = vmatpush.bf16.msra.mxu0 %v475
    %2532 = vmatmul.bf16.gmra.mxu0 %v2496
    %v2533 = vpop.f32.mrf.mxu0
    %v2534 = vadd.f32 0.0, %v2533
    %v2535 = vpop.f32.mrf.mxu0
    %2536 = vdwg.mxu0
    %2537 = vmatpush.bf16.msra.mxu0 %v565
    %2538 = vmatpush.bf16.msra.mxu0 %v559
    %2539 = vmatpush.bf16.msra.mxu0 %v553
    %2540 = vmatpush.bf16.msra.mxu0 %v547
    %2541 = vmatpush.bf16.msra.mxu0 %v541
    %2542 = vmatpush.bf16.msra.mxu0 %v535
    %2543 = vmatpush.bf16.msra.mxu0 %v529
    %2544 = vmatpush.bf16.msra.mxu0 %v523
    %2545 = vmatmul.bf16.gmra.mxu0 %v2497
    %v2546 = vpop.f32.mrf.mxu0
    %v2547 = vadd.f32 %v2534, %v2546
    %v2548 = vpop.f32.mrf.mxu0
    %2549 = vdwg.mxu0
    %2550 = vmatpush.bf16.msra.mxu0 %v518
    %2551 = vmatpush.bf16.msra.mxu0 %v512
    %2552 = vmatpush.bf16.msra.mxu0 %v506
    %2553 = vmatpush.bf16.msra.mxu0 %v500
    %2554 = vmatpush.bf16.msra.mxu0 %v494
    %2555 = vmatpush.bf16.msra.mxu0 %v488
    %2556 = vmatpush.bf16.msra.mxu0 %v482
    %2557 = vmatpush.bf16.msra.mxu0 %v476
    %2558 = vmatmul.bf16.gmra.mxu0 %v2496
    %v2559 = vpop.f32.mrf.mxu0
    %v2560 = vadd.f32 0.0, %v2559
    %v2561 = vpop.f32.mrf.mxu0
    %2562 = vdwg.mxu0
    %2563 = vmatpush.bf16.msra.mxu0 %v566
    %2564 = vmatpush.bf16.msra.mxu0 %v560
    %2565 = vmatpush.bf16.msra.mxu0 %v554
    %2566 = vmatpush.bf16.msra.mxu0 %v548
    %2567 = vmatpush.bf16.msra.mxu0 %v542
    %2568 = vmatpush.bf16.msra.mxu0 %v536
    %2569 = vmatpush.bf16.msra.mxu0 %v530
    %2570 = vmatpush.bf16.msra.mxu0 %v524
    %2571 = vmatmul.bf16.gmra.mxu0 %v2497
    %v2572 = vpop.f32.mrf.mxu0
    %v2573 = vadd.f32 %v2560, %v2572
    %v2574 = vpop.f32.mrf.mxu0
    %2575 = vdwg.mxu0
    %2576 = vmatpush.bf16.msra.mxu0 %v519
    %2577 = vmatpush.bf16.msra.mxu0 %v513
    %2578 = vmatpush.bf16.msra.mxu0 %v507
    %2579 = vmatpush.bf16.msra.mxu0 %v501
    %2580 = vmatpush.bf16.msra.mxu0 %v495
    %2581 = vmatpush.bf16.msra.mxu0 %v489
    %2582 = vmatpush.bf16.msra.mxu0 %v483
    %2583 = vmatpush.bf16.msra.mxu0 %v477
    %2584 = vmatmul.bf16.gmra.mxu0 %v2496
    %v2585 = vpop.f32.mrf.mxu0
    %v2586 = vadd.f32 0.0, %v2585
    %v2587 = vpop.f32.mrf.mxu0
    %2588 = vdwg.mxu0
    %2589 = vmatpush.bf16.msra.mxu0 %v567
    %2590 = vmatpush.bf16.msra.mxu0 %v561
    %2591 = vmatpush.bf16.msra.mxu0 %v555
    %2592 = vmatpush.bf16.msra.mxu0 %v549
    %2593 = vmatpush.bf16.msra.mxu0 %v543
    %2594 = vmatpush.bf16.msra.mxu0 %v537
    %2595 = vmatpush.bf16.msra.mxu0 %v531
    %2596 = vmatpush.bf16.msra.mxu0 %v525
    %2597 = vmatmul.bf16.gmra.mxu0 %v2497
    %v2598 = vpop.f32.mrf.mxu0
    %v2599 = vadd.f32 %v2586, %v2598
    %v2600 = vpop.f32.mrf.mxu0
    %2601 = vdwg.mxu0
    %2602 = vmatpush.bf16.msra.mxu0 %v520
    %2603 = vmatpush.bf16.msra.mxu0 %v514
    %2604 = vmatpush.bf16.msra.mxu0 %v508
    %2605 = vmatpush.bf16.msra.mxu0 %v502
    %2606 = vmatpush.bf16.msra.mxu0 %v496
    %2607 = vmatpush.bf16.msra.mxu0 %v490
    %2608 = vmatpush.bf16.msra.mxu0 %v484
    %2609 = vmatpush.bf16.msra.mxu0 %v478
    %2610 = vmatmul.bf16.gmra.mxu0 %v2496
    %v2611 = vpop.f32.mrf.mxu0
    %v2612 = vadd.f32 0.0, %v2611
    %v2613 = vpop.f32.mrf.mxu0
    %2614 = vdwg.mxu0
    %2615 = vmatpush.bf16.msra.mxu0 %v568
    %2616 = vmatpush.bf16.msra.mxu0 %v562
    %2617 = vmatpush.bf16.msra.mxu0 %v556
    %2618 = vmatpush.bf16.msra.mxu0 %v550
    %2619 = vmatpush.bf16.msra.mxu0 %v544
    %2620 = vmatpush.bf16.msra.mxu0 %v538
    %2621 = vmatpush.bf16.msra.mxu0 %v532
    %2622 = vmatpush.bf16.msra.mxu0 %v526
    %2623 = vmatmul.bf16.gmra.mxu0 %v2497
    %v2624 = vpop.f32.mrf.mxu0
    %v2625 = vadd.f32 %v2612, %v2624
    %v2626 = vpop.f32.mrf.mxu0
    %2627 = vdwg.mxu0
    %2628 = vmatpush.bf16.msra.mxu0 %v521
    %2629 = vmatpush.bf16.msra.mxu0 %v515
    %2630 = vmatpush.bf16.msra.mxu0 %v509
    %2631 = vmatpush.bf16.msra.mxu0 %v503
    %2632 = vmatpush.bf16.msra.mxu0 %v497
    %2633 = vmatpush.bf16.msra.mxu0 %v491
    %2634 = vmatpush.bf16.msra.mxu0 %v485
    %2635 = vmatpush.bf16.msra.mxu0 %v479
    %2636 = vmatmul.bf16.gmra.mxu0 %v2496
    %v2637 = vpop.f32.mrf.mxu0
    %v2638 = vadd.f32 0.0, %v2637
    %v2639 = vpop.f32.mrf.mxu0
    %2640 = vdwg.mxu0
    %2641 = vmatpush.bf16.msra.mxu0 %v569
    %2642 = vmatpush.bf16.msra.mxu0 %v563
    %2643 = vmatpush.bf16.msra.mxu0 %v557
    %2644 = vmatpush.bf16.msra.mxu0 %v551
    %2645 = vmatpush.bf16.msra.mxu0 %v545
    %2646 = vmatpush.bf16.msra.mxu0 %v539
    %2647 = vmatpush.bf16.msra.mxu0 %v533
    %2648 = vmatpush.bf16.msra.mxu0 %v527
    %2649 = vmatmul.bf16.gmra.mxu0 %v2497
    %v2650 = vpop.f32.mrf.mxu0
    %v2651 = vadd.f32 %v2638, %v2650
    %v2652 = vpop.f32.mrf.mxu0
    %2653 = vdwg.mxu0
    %v2654 = vadd.f32 %v2490, %v2521
    %v2655 = vadd.f32 %v2491, %v2547
    %v2656 = vxor.u32 %v2654, 2147483648
    %v2657 = vxor.u32 %v2655, 2147483648
    %v2658 = vmul.f32 %v2656, 1.442695
    %v2659 = vpow.pop %v2658
    %v2660 = vmul.f32 %v2657, 1.442695
    %v2661 = vpow.pop %v2660
    %v2662 = vadd.f32 %v2659, 1.0
    %v2663 = vadd.f32 %v2661, 1.0
    %v2664 = vrcp.pop %v2662
    %v2665 = vmul.f32 %v2662, %v2664
    %v2666 = vsub.f32 1.0, %v2665
    %v2667 = vmul.f32 %v2664, %v2666
    %v2668 = vadd.f32 %v2664, %v2667
    %vm2669 = vweird.f32 %v2662
    %vm2670 = vweird.f32 %v2664
    %vm2671 = vmor %vm2669, %vm2670
    %v2672 = vsel %vm2671, %v2664, %v2668
    %v2673 = vand.u32 2147483647, %v2662
    %vm2674 = vcmp.eq.f32.partialorder %v2673, 8.507059e+37
    %v2675 = vand.u32 %v2662, 2147483648
    %v2676 = vor.u32 1.1754944e-38, %v2675
    %v2677 = vsel %vm2674, %v2676, %v2672
    %v2678 = vmul.f32 1.0, %v2677
    %v2679 = vrcp.pop %v2663
    %v2680 = vmul.f32 %v2663, %v2679
    %v2681 = vsub.f32 1.0, %v2680
    %v2682 = vmul.f32 %v2679, %v2681
    %v2683 = vadd.f32 %v2679, %v2682
    %vm2684 = vweird.f32 %v2663
    %vm2685 = vweird.f32 %v2679
    %vm2686 = vmor %vm2684, %vm2685
    %v2687 = vsel %vm2686, %v2679, %v2683
    %v2688 = vand.u32 2147483647, %v2663
    %vm2689 = vcmp.eq.f32.partialorder %v2688, 8.507059e+37
    %v2690 = vand.u32 %v2663, 2147483648
    %v2691 = vor.u32 1.1754944e-38, %v2690
    %v2692 = vsel %vm2689, %v2691, %v2687
    %v2693 = vmul.f32 1.0, %v2692
    %v2694 = vadd.f32 %v2492, %v2573
    %v2695 = vadd.f32 %v2493, %v2599
    %v2696 = vxor.u32 %v2694, 2147483648
    %v2697 = vxor.u32 %v2695, 2147483648
    %v2698 = vmul.f32 %v2696, 1.442695
    %v2699 = vpow.pop %v2698
    %v2700 = vmul.f32 %v2697, 1.442695
    %v2701 = vpow.pop %v2700
    %v2702 = vadd.f32 %v2699, 1.0
    %v2703 = vadd.f32 %v2701, 1.0
    %v2704 = vrcp.pop %v2702
    %v2705 = vmul.f32 %v2702, %v2704
    %v2706 = vsub.f32 1.0, %v2705
    %v2707 = vmul.f32 %v2704, %v2706
    %v2708 = vadd.f32 %v2704, %v2707
    %vm2709 = vweird.f32 %v2702
    %vm2710 = vweird.f32 %v2704
    %vm2711 = vmor %vm2709, %vm2710
    %v2712 = vsel %vm2711, %v2704, %v2708
    %v2713 = vand.u32 2147483647, %v2702
    %vm2714 = vcmp.eq.f32.partialorder %v2713, 8.507059e+37
    %v2715 = vand.u32 %v2702, 2147483648
    %v2716 = vor.u32 1.1754944e-38, %v2715
    %v2717 = vsel %vm2714, %v2716, %v2712
    %v2718 = vmul.f32 1.0, %v2717
    %v2719 = vrcp.pop %v2703
    %v2720 = vmul.f32 %v2703, %v2719
    %v2721 = vsub.f32 1.0, %v2720
    %v2722 = vmul.f32 %v2719, %v2721
    %v2723 = vadd.f32 %v2719, %v2722
    %vm2724 = vweird.f32 %v2703
    %vm2725 = vweird.f32 %v2719
    %vm2726 = vmor %vm2724, %vm2725
    %v2727 = vsel %vm2726, %v2719, %v2723
    %v2728 = vand.u32 2147483647, %v2703
    %vm2729 = vcmp.eq.f32.partialorder %v2728, 8.507059e+37
    %v2730 = vand.u32 %v2703, 2147483648
    %v2731 = vor.u32 1.1754944e-38, %v2730
    %v2732 = vsel %vm2729, %v2731, %v2727
    %v2733 = vmul.f32 1.0, %v2732
    %v2734 = vadd.f32 %v2625, %v903
    %v2735 = vadd.f32 %v2651, %v904
    %v2736 = vmul.f32 %v2678, %v2734
    %v2737 = vmul.f32 %v2693, %v2735
    %v2738 = vadd.f32 %v2494, %v2736
    %v2739 = vadd.f32 %v2495, %v2737
    %v2740 = vtanh.pop %v2738
    %v2741 = vtanh.pop %v2739
    %v2742 = vsub.f32 1.0, %v2718
    %v2743 = vsub.f32 1.0, %v2733
    %v2744 = vmul.f32 %v2742, %v2740
    %v2745 = vmul.f32 %v2743, %v2741
    %v2746 = vmul.f32 %v2718, %v2487
    %v2747 = vmul.f32 %v2733, %v2488
    %v2748 = vadd.f32 %v2744, %v2746
    %v2749 = vadd.f32 %v2745, %v2747
    %v2750 = vpack.c.bf16 %v2748, %v2748
    %v2751 = vpack.c.bf16 %v2749, %v2749
    %v2752 = vld [vmem:[#allocation8] sm:$0xf]
    %v2753 = vld [vmem:[#allocation8 + $0x4] sm:$0xf]
    %v2754 = vld [vmem:[#allocation8 + $0x8] sm:$0xf]
    %v2755 = vld [vmem:[#allocation8 + $0xc] sm:$0xf]
    %v2756 = vld [vmem:[#allocation8 + $0x10] sm:$0xf]
    %v2757 = vld [vmem:[#allocation8 + $0x14] sm:$0xf]
    %v2758 = vld [vmem:[#allocation8 + $0x18] sm:$0xf]
    %v2759 = vld [vmem:[#allocation8 + $0x1c] sm:$0xf]
    %v2760 = vld [vmem:[#allocation8 + $0x20] sm:$0xf]
    %v2761 = vld [vmem:[#allocation8 + $0x24] sm:$0xf]
    %v2762 = vld [vmem:[#allocation8 + $0x28] sm:$0xf]
    %v2763 = vld [vmem:[#allocation8 + $0x2c] sm:$0xf]
    %v2764 = vld [vmem:[#allocation8 + $0x30] sm:$0xf]
    %v2765 = vld [vmem:[#allocation8 + $0x34] sm:$0xf]
    %v2766 = vld [vmem:[#allocation8 + $0x38] sm:$0xf]
    %v2767 = vld [vmem:[#allocation8 + $0x3c] sm:$0xf]
    %v2768 = vld [vmem:[#allocation8 + $0x40] sm:$0xf]
    %v2769 = vld [vmem:[#allocation8 + $0x44] sm:$0xf]
    %v2770 = vld [vmem:[#allocation8 + $0x48] sm:$0xf]
    %v2771 = vld [vmem:[#allocation8 + $0x4c] sm:$0xf]
    %v2772 = vld [vmem:[#allocation8 + $0x50] sm:$0xf]
    %v2773 = vld [vmem:[#allocation8 + $0x54] sm:$0xf]
    %v2774 = vld [vmem:[#allocation8 + $0x58] sm:$0xf]
    %v2775 = vld [vmem:[#allocation8 + $0x5c] sm:$0xf]
    %v2776 = vld [vmem:[#allocation8 + $0x60] sm:$0xf]
    %v2777 = vld [vmem:[#allocation8 + $0x64] sm:$0xf]
    %v2778 = vld [vmem:[#allocation8 + $0x68] sm:$0xf]
    %v2779 = vld [vmem:[#allocation8 + $0x6c] sm:$0xf]
    %v2780 = vld [vmem:[#allocation8 + $0x70] sm:$0xf]
    %v2781 = vld [vmem:[#allocation8 + $0x74] sm:$0xf]
    %v2782 = vld [vmem:[#allocation8 + $0x78] sm:$0xf]
    %v2783 = vld [vmem:[#allocation8 + $0x7c] sm:$0xf]
    %v2784 = vld [vmem:[%s4] sm:$0x1]
    %v2786 = vperm.slane %v2784, 0
    %v2820 = vunpack.c.l.b16 %v2752
    %v2821 = vunpack.c.l.b16 %v2753
    %v2822 = vunpack.c.l.b16 %v2754
    %v2823 = vunpack.c.l.b16 %v2755
    %v2824 = vunpack.c.l.b16 %v2756
    %v2825 = vunpack.c.l.b16 %v2757
    %v2826 = vunpack.c.l.b16 %v2758
    %v2827 = vunpack.c.l.b16 %v2759
    %v2828 = vunpack.c.l.b16 %v2760
    %v2829 = vunpack.c.l.b16 %v2761
    %v2830 = vunpack.c.l.b16 %v2762
    %v2831 = vunpack.c.l.b16 %v2763
    %v2832 = vunpack.c.l.b16 %v2764
    %v2833 = vunpack.c.l.b16 %v2765
    %v2834 = vunpack.c.l.b16 %v2766
    %v2835 = vunpack.c.l.b16 %v2767
    %v2836 = vunpack.c.l.b16 %v2768
    %v2837 = vunpack.c.l.b16 %v2769
    %v2838 = vunpack.c.l.b16 %v2770
    %v2839 = vunpack.c.l.b16 %v2771
    %v2840 = vunpack.c.l.b16 %v2772
    %v2841 = vunpack.c.l.b16 %v2773
    %v2842 = vunpack.c.l.b16 %v2774
    %v2843 = vunpack.c.l.b16 %v2775
    %v2844 = vunpack.c.l.b16 %v2776
    %v2845 = vunpack.c.l.b16 %v2777
    %v2846 = vunpack.c.l.b16 %v2778
    %v2847 = vunpack.c.l.b16 %v2779
    %v2848 = vunpack.c.l.b16 %v2780
    %v2849 = vunpack.c.l.b16 %v2781
    %v2850 = vunpack.c.l.b16 %v2782
    %v2851 = vunpack.c.l.b16 %v2783
    %v2852 = vpack.c.b16 %v2821, %v2820
    %v2853 = vpack.c.b16 %v2823, %v2822
    %v2854 = vpack.c.b16 %v2825, %v2824
    %v2855 = vpack.c.b16 %v2827, %v2826
    %v2856 = vpack.c.b16 %v2829, %v2828
    %v2857 = vpack.c.b16 %v2831, %v2830
    %v2858 = vpack.c.b16 %v2833, %v2832
    %v2859 = vpack.c.b16 %v2835, %v2834
    %v2860 = vpack.c.b16 %v2837, %v2836
    %v2861 = vpack.c.b16 %v2839, %v2838
    %v2862 = vpack.c.b16 %v2841, %v2840
    %v2863 = vpack.c.b16 %v2843, %v2842
    %v2864 = vpack.c.b16 %v2845, %v2844
    %v2865 = vpack.c.b16 %v2847, %v2846
    %v2866 = vpack.c.b16 %v2849, %v2848
    %v2867 = vpack.c.b16 %v2851, %v2850
    %2884 = vmatpush.bf16.msra.mxu0 %v2859
    %2885 = vmatpush.bf16.msra.mxu0 %v2858
    %2886 = vmatpush.bf16.msra.mxu0 %v2857
    %2887 = vmatpush.bf16.msra.mxu0 %v2856
    %2888 = vmatpush.bf16.msra.mxu0 %v2855
    %2889 = vmatpush.bf16.msra.mxu0 %v2854
    %2890 = vmatpush.bf16.msra.mxu0 %v2853
    %2891 = vmatpush.bf16.msra.mxu0 %v2852
    %2892 = vmatmul.bf16.gmra.mxu0 %v2750
    %v2893 = vpop.f32.mrf.mxu0
    %v2894 = vadd.f32 %v2786, %v2893
    %v2895 = vpop.f32.mrf.mxu0
    %2896 = vdwg.mxu0
    %2897 = vmatpush.bf16.msra.mxu0 %v2867
    %2898 = vmatpush.bf16.msra.mxu0 %v2866
    %2899 = vmatpush.bf16.msra.mxu0 %v2865
    %2900 = vmatpush.bf16.msra.mxu0 %v2864
    %2901 = vmatpush.bf16.msra.mxu0 %v2863
    %2902 = vmatpush.bf16.msra.mxu0 %v2862
    %2903 = vmatpush.bf16.msra.mxu0 %v2861
    %2904 = vmatpush.bf16.msra.mxu0 %v2860
    %2905 = vmatmul.bf16.gmra.mxu0 %v2751
    %v2906 = vpop.f32.mrf.mxu0
    %v2907 = vadd.f32 %v2894, %v2906
    %v2908 = vpop.f32.mrf.mxu0
    %2909 = vdwg.mxu0
    %2910 = vmax.xlane.f32.xlu0 %v2907
    %v2911 = vpop.xlane.xlu0 %2910
    %v2912 = vsub.f32 %v2907, %v2911
    %v2913 = vmul.f32 %v2912, 1.442695
    %v2914 = vpow.pop %v2913
    %2915 = vadd.xlane.f32.xlu0 %v2914
    %v2916 = vpop.xlane.xlu0 %2915
    %v2917 = vrcp.pop %v2916
    %v2918 = vmul.f32 %v2916, %v2917
    %v2919 = vsub.f32 2.0, %v2918
    %v2920 = vmul.f32 %v2917, %v2919
    %v2921 = vmul.f32 %v2914, %v2920
    %2922 = vst [vmem:[#allocation10] sm:$0xff] %v2921
    // Predicated region
    $region38: #{tpu_custom_call.1} parent=1 // pred_check
      _
    $region39: #{tpu_custom_call.1} parent=1 // pred_check_branch
      %2924 = sbr.rel (0) target = $region41
    $region40: #{tpu_custom_call.1} parent=1 // pred_region
      %2926 = vsyncadd [#allocation4], 0
      %s2928 = sshll.u32 [#allocation10], 4
      %s2929 = int_to_ptr.vmem [resolvable:$true] %s2928
      %s2930 = sshll.u32 %s5, 4
      %s2931 = int_to_ptr.hbm [resolvable:$true] %s2930
      %2933 = dma.vmem_to_hbm [thread:$0]  %s2929, 128, %s2931, [#allocation4]
    $region41: #{tpu_custom_call.1} parent=1 // pred_fallthru
      _
    // Predicated region
    $region42: #{tpu_custom_call.1} parent=1 // pred_check
      _
    $region43: #{tpu_custom_call.1} parent=1 // pred_check_branch
      %2935 = sbr.rel (0) target = $region45
    $region44: #{tpu_custom_call.1} parent=1 // pred_region
      %2937 = dma.done [#allocation4], 128
    $region45: #{tpu_custom_call.1} parent=1 // pred_fallthru
      _
    %2938 = vsyncpa [#allocation3], 1
    %2939 = vsyncpa [#allocation6], 1
    %2940 = vsyncpa [#allocation9], 1
    %2941 = vsyncpa [#allocation4], 1

</llo_original>
